<compile_context>
chip_gen: v7x
topology: tpu7x:2x2x1
jax: 0.10.0
libtpu: 0.0.40
codegen_flags: <defaults>
</compile_context>

<pallas_src>
import functools

import jax
import jax.numpy as jnp
import numpy as np
from jax import lax
from jax.experimental import pallas as pl
from jax.experimental.pallas import tpu as pltpu

NEG_SLOPE = 0.01      # nn.LeakyReLU default negative slope
_LANE_PAD = 128       # lane-aligned zero halo on each side of the padded scratch


def _lrelu(v):
    return jnp.where(v >= 0, v, NEG_SLOPE * v)


def imdb_kernel(x_ref,
                w_in_ref, b_in_ref,
                w_r0_ref, b_r0_ref,
                w_r1_ref, b_r1_ref,
                w_r2_ref, b_r2_ref,
                w_a1_ref, b_a1_ref,
                w_a2_ref, b_a2_ref,
                w_out_ref, b_out_ref,
                o_ref,
                pad_ref, fused_ref,
                *, H, W, C, Cd):
    HW = H * W
    LP = _LANE_PAD
    Cr = C - Cd

    # Zero only the two halo strips; the interior is always overwritten below.
    # Kept per-step (not pl.when) so it stays correct if the grid axis is ever
    # split across TensorCores.
    pad_ref[:, 0:LP] = jnp.zeros((C, LP), jnp.bfloat16)
    pad_ref[:, LP + HW:LP + HW + LP] = jnp.zeros((C, LP), jnp.bfloat16)

    # Column-boundary masks (row boundary is handled by the zero halo).
    col = lax.broadcasted_iota(jnp.int32, (1, HW), 1) % W
    ok_left = col != 0            # source column w-1 is valid
    ok_right = col != (W - 1)     # source column w+1 is valid

    def conv3x3(ci, w_ref, b_ref):
        """Feature (ci, HW) bf16 sits in pad_ref interior -> (Cout, HW) f32.

        9 tap MXU matmuls accumulated in f32; no im2col patch slab, no
        per-conv feature-map repacking stores."""
        acc = None
        t = 0
        for oy in (-1, 0, 1):
            for ox in (-1, 0, 1):
                s = oy * W + ox
                tap = pad_ref[0:ci, LP + s:LP + s + HW]          # bf16
                if ox == -1:
                    tap = jnp.where(ok_left, tap, 0.0)
                elif ox == 1:
                    tap = jnp.where(ok_right, tap, 0.0)
                d = jnp.dot(w_ref[t], tap, preferred_element_type=jnp.float32)
                acc = d if acc is None else acc + d
                t += 1
        return acc + b_ref[...]

    # --- progressive distillation; activations chained through VMEM ---------
    # stage 0: conv_in (no activation)
    pad_ref[0:C, LP:LP + HW] = x_ref[0].astype(jnp.bfloat16)
    a0 = conv3x3(C, w_in_ref, b_in_ref)
    fused_ref[0:Cd, :] = a0[0:Cd, :]
    pad_ref[0:Cr, LP:LP + HW] = a0[Cd:, :].astype(jnp.bfloat16)

    # stage 1: conv_remains[0] + LeakyReLU
    a1 = _lrelu(conv3x3(Cr, w_r0_ref, b_r0_ref))
    fused_ref[Cd:2 * Cd, :] = a1[0:Cd, :]
    pad_ref[0:Cr, LP:LP + HW] = a1[Cd:, :].astype(jnp.bfloat16)

    # stage 2: conv_remains[1] + LeakyReLU
    a2 = _lrelu(conv3x3(Cr, w_r1_ref, b_r1_ref))
    fused_ref[2 * Cd:3 * Cd, :] = a2[0:Cd, :]
    pad_ref[0:Cr, LP:LP + HW] = a2[Cd:, :].astype(jnp.bfloat16)

    # stage 3: conv_remains[2] (no activation, Cout = Cd)
    fused_ref[3 * Cd:, :] = conv3x3(Cr, w_r2_ref, b_r2_ref)

    # --- CCA: two-pass channel mean/std; FCs on VPU/XLU (no N=1 MXU dots) ---
    fused = fused_ref[...]                                   # (C, HW) f32
    inv_n = 1.0 / float(HW)
    mean = jnp.sum(fused, axis=1, keepdims=True) * inv_n                 # (C,1)
    ctr = fused - mean
    var = jnp.sum(ctr * ctr, axis=1, keepdims=True) * inv_n
    y = jnp.sqrt(var) + mean                                             # (C,1)
    # attn FC1 (Ca,C)@y -> done as sublane reduce of (C,Ca)*(C,1)
    h = jnp.maximum(
        jnp.sum(w_a1_ref[...] * y, axis=0, keepdims=True) + b_a1_ref[...],
        0.0)                                                             # (1,Ca)
    # attn FC2 (C,Ca)@h -> lane reduce of (C,Ca)*(1,Ca)
    s_att = jax.nn.sigmoid(
        jnp.sum(w_a2_ref[...] * h, axis=1, keepdims=True) + b_a2_ref[...])  # (C,1)
    cca = fused * s_att

    # --- conv_out (1x1) + residual -------------------------------------------
    out = (jnp.dot(w_out_ref[...], cca.astype(jnp.bfloat16),
                   preferred_element_type=jnp.float32)
           + b_out_ref[...] + x_ref[0])
    o_ref[0] = out.astype(o_ref.dtype)


def _kernel_weights(p):
    """Host-side prep.

    3x3 conv OIHW (Co,Ci,3,3) -> (9, Co, Ci) bf16 per-tap matrices (tap order
    matches the (oy, ox) loop inside the kernel); biases -> (Co,1) f32.
    CCA FC weights stay f32 in the layouts the VPU/XLU reductions expect.
    """
    def taps(w):
        co, ci = w.shape[0], w.shape[1]
        return jnp.transpose(w, (2, 3, 0, 1)).reshape(9, co, ci).astype(jnp.bfloat16)

    def colb(b):
        return b.reshape(-1, 1).astype(jnp.float32)

    return (taps(p['conv_in_w']), colb(p['conv_in_b']),
            taps(p['conv_r0_w']), colb(p['conv_r0_b']),
            taps(p['conv_r1_w']), colb(p['conv_r1_b']),
            taps(p['conv_r2_w']), colb(p['conv_r2_b']),
            jnp.transpose(p['attn1_w']).astype(jnp.float32),   # (C, Ca)
            p['attn1_b'].reshape(1, -1).astype(jnp.float32),   # (1, Ca)
            p['attn2_w'].astype(jnp.float32),                  # (C, Ca)
            colb(p['attn2_b']),                                # (C, 1)
            p['conv_out_w'].astype(jnp.bfloat16),              # (C, C)
            colb(p['conv_out_b']))                             # (C, 1)


def imdb_forward(x, p):
    """x: (B, C, H, W) float32 (NCHW, same layout as the PyTorch module)."""
    B, C, H, W = x.shape
    assert C % 4 == 0 and C >= 16, "n_feat must be divisible by 4 and >= 16"
    assert W + 1 <= _LANE_PAD
    Cd = C // 4
    Cr = C - Cd
    HW = H * W

    x2 = x.reshape(B, C, HW)
    weights = _kernel_weights(p)
    args = (x2,) + weights

    def full_spec(a):
        nd = a.ndim
        return pl.BlockSpec(a.shape, lambda b: (0,) * nd)

    in_specs = [pl.BlockSpec((1, C, HW), lambda b: (b, 0, 0))]
    in_specs += [full_spec(a) for a in args[1:]]

    flops = int(2 * B * HW * (9 * C * C + 2 * 9 * Cr * C + 9 * Cr * Cd + C * C))
    transcendentals = int(4 * B * C)
    bytes_accessed = int(8 * B * C * HW
                         + sum(a.size * a.dtype.itemsize for a in weights))

    kern = functools.partial(imdb_kernel, H=H, W=W, C=C, Cd=Cd)

    # TODO(synk): for production SR sizes add a 'parallel' H-band grid axis
    # (1-row halos via overlapping Element-indexed blocks or pl.ANY + manual
    # make_async_copy) so blocks fit v7x's 64 MiB VMEM and its second
    # TensorCore is used even at B=1; re-size bands (and vmem_limit_bytes) per
    # generation.
    out2 = pl.pallas_call(
        kern,
        out_shape=jax.ShapeDtypeStruct((B, C, HW), x.dtype),
        grid_spec=pltpu.PrefetchScalarGridSpec(
            num_scalar_prefetch=0,
            grid=(B,),
            in_specs=in_specs,
            out_specs=pl.BlockSpec((1, C, HW), lambda b: (b, 0, 0)),
            scratch_shapes=[
                pltpu.VMEM((C, HW + 2 * _LANE_PAD), jnp.bfloat16),  # padded taps
                pltpu.VMEM((C, HW), jnp.float32),                   # fused splits
            ]),
        compiler_params=pltpu.CompilerParams(
            dimension_semantics=("parallel",),
            vmem_limit_bytes=32 * 1024 * 1024),
        cost_estimate=pl.CostEstimate(
            flops=flops, transcendentals=transcendentals,
            bytes_accessed=bytes_accessed),
    )(*args)
    return out2.reshape(B, C, H, W)


def init_params(key, C):
    """Deterministic synthetic parameters (shapes from IMDB_Module.__init__)."""
    Cd = C // 4            # nf_distill
    Cr = C - Cd            # nf_remain
    Ca = max(C // 16, 1)   # CCA squeeze channels (sf=16)
    ks = jax.random.split(key, 14)

    def w(k, shape, scale=0.1):
        return scale * jax.random.normal(k, shape, jnp.float32)

    p = {}
    p['conv_in_w'] = w(ks[0], (C, C, 3, 3));    p['conv_in_b'] = w(ks[1], (C,), 0.01)
    p['conv_r0_w'] = w(ks[2], (C, Cr, 3, 3));   p['conv_r0_b'] = w(ks[3], (C,), 0.01)
    p['conv_r1_w'] = w(ks[4], (C, Cr, 3, 3));   p['conv_r1_b'] = w(ks[5], (C,), 0.01)
    p['conv_r2_w'] = w(ks[6], (Cd, Cr, 3, 3));  p['conv_r2_b'] = w(ks[7], (Cd,), 0.01)
    p['attn1_w'] = w(ks[8], (Ca, C));           p['attn1_b'] = w(ks[9], (Ca,), 0.01)
    p['attn2_w'] = w(ks[10], (C, Ca));          p['attn2_b'] = w(ks[11], (C,), 0.01)
    p['conv_out_w'] = w(ks[12], (C, C));        p['conv_out_b'] = w(ks[13], (C,), 0.01)
    return p


def ref_forward(x, p):
    """Pure-JAX (f32/HIGHEST) reference of IMDB_Module.forward in NCHW."""
    C = x.shape[1]
    Cd = C // 4
    HI = lax.Precision.HIGHEST

    def conv3(v, w, b):
        return lax.conv_general_dilated(
            v, w, (1, 1), ((1, 1), (1, 1)),
            dimension_numbers=('NCHW', 'OIHW', 'NCHW'),
            precision=HI) + b.reshape(1, -1, 1, 1)

    def conv1(v, w, b):
        return jnp.einsum('bchw,oc->bohw', v, w, precision=HI) + b.reshape(1, -1, 1, 1)

    feat_in = conv3(x, p['conv_in_w'], p['conv_in_b'])
    d0, r = feat_in[:, :Cd], feat_in[:, Cd:]
    dr1 = _lrelu(conv3(r, p['conv_r0_w'], p['conv_r0_b']))
    d1, r = dr1[:, :Cd], dr1[:, Cd:]
    dr2 = _lrelu(conv3(r, p['conv_r1_w'], p['conv_r1_b']))
    d2, r = dr2[:, :Cd], dr2[:, Cd:]
    d3 = conv3(r, p['conv_r2_w'], p['conv_r2_b'])
    fused = jnp.concatenate([d0, d1, d2, d3], axis=1)

    mean = jnp.mean(fused, axis=(2, 3), keepdims=True)
    std = jnp.sqrt(jnp.mean((fused - mean) ** 2, axis=(2, 3), keepdims=True))
    y = std + mean
    h = jnp.maximum(conv1(y, p['attn1_w'], p['attn1_b']), 0.0)
    s = jax.nn.sigmoid(conv1(h, p['attn2_w'], p['attn2_b']))
    cca = fused * s
    out = conv1(cca, p['conv_out_w'], p['conv_out_b'])
    return out + x


if __name__ == "__main__":
    # n_feat must be divisible by 4 (num_split=3) and >= 16 (CCA uses nf // 16).
    B, C, H, W = 2, 16, 16, 16
    key = jax.random.PRNGKey(0)
    kx, kp = jax.random.split(key)
    x = jax.random.normal(kx, (B, C, H, W), jnp.float32)   # NCHW, like PyTorch
    params = init_params(kp, C)

    out = jax.block_until_ready(jax.jit(imdb_forward)(x, params))
    ref = jax.block_until_ready(ref_forward(x, params))
    # Kernel matmuls run in bf16 with f32 accumulation -> tolerance is looser
    # than an exact f32/HIGHEST comparison.
    np.testing.assert_allclose(np.asarray(out), np.asarray(ref), rtol=5e-2, atol=5e-2)
    # NOTE: the PyTorch module's print() debug statements are intentionally omitted.
    print("KERNEL_OK")
</pallas_src>

<mosaic_0001>
module attributes {stable_mosaic.version = 11 : i64} {
  func.func @imdb_kernel(%arg0: i32, %arg1: memref<1x16x256xf32, #tpu.memory_space<vmem>>, %arg2: memref<9x16x16xbf16, #tpu.memory_space<vmem>>, %arg3: memref<16x1xf32, #tpu.memory_space<vmem>>, %arg4: memref<9x16x12xbf16, #tpu.memory_space<vmem>>, %arg5: memref<16x1xf32, #tpu.memory_space<vmem>>, %arg6: memref<9x16x12xbf16, #tpu.memory_space<vmem>>, %arg7: memref<16x1xf32, #tpu.memory_space<vmem>>, %arg8: memref<9x4x12xbf16, #tpu.memory_space<vmem>>, %arg9: memref<4x1xf32, #tpu.memory_space<vmem>>, %arg10: memref<16x1xf32, #tpu.memory_space<vmem>>, %arg11: memref<1x1xf32, #tpu.memory_space<vmem>>, %arg12: memref<16x1xf32, #tpu.memory_space<vmem>>, %arg13: memref<16x1xf32, #tpu.memory_space<vmem>>, %arg14: memref<16x16xbf16, #tpu.memory_space<vmem>>, %arg15: memref<16x1xf32, #tpu.memory_space<vmem>>, %arg16: memref<1x16x256xf32, #tpu.memory_space<vmem>>, %arg17: memref<16x512xbf16, #tpu.memory_space<vmem>>, %arg18: memref<16x256xf32, #tpu.memory_space<vmem>>) attributes {dimension_semantics = [#tpu.dimension_semantics<parallel>], iteration_bounds = array<i64: 2>, scalar_prefetch = 0 : i64, scratch_operands = 2 : i64, tpu.core_type = #tpu.core_type<tc>, window_params = [{transform_indices = @transform_0, window_bounds = array<i64: 1, 16, 256>}, {pipeline_mode = #tpu.pipeline_mode<synchronous>, transform_indices = @transform_1, window_bounds = array<i64: 9, 16, 16>}, {pipeline_mode = #tpu.pipeline_mode<synchronous>, transform_indices = @transform_2, window_bounds = array<i64: 16, 1>}, {pipeline_mode = #tpu.pipeline_mode<synchronous>, transform_indices = @transform_3, window_bounds = array<i64: 9, 16, 12>}, {pipeline_mode = #tpu.pipeline_mode<synchronous>, transform_indices = @transform_4, window_bounds = array<i64: 16, 1>}, {pipeline_mode = #tpu.pipeline_mode<synchronous>, transform_indices = @transform_5, window_bounds = array<i64: 9, 16, 12>}, {pipeline_mode = #tpu.pipeline_mode<synchronous>, transform_indices = @transform_6, window_bounds = array<i64: 16, 1>}, {pipeline_mode = #tpu.pipeline_mode<synchronous>, transform_indices = @transform_7, window_bounds = array<i64: 9, 4, 12>}, {pipeline_mode = #tpu.pipeline_mode<synchronous>, transform_indices = @transform_8, window_bounds = array<i64: 4, 1>}, {pipeline_mode = #tpu.pipeline_mode<synchronous>, transform_indices = @transform_9, window_bounds = array<i64: 16, 1>}, {pipeline_mode = #tpu.pipeline_mode<synchronous>, transform_indices = @transform_10, window_bounds = array<i64: 1, 1>}, {pipeline_mode = #tpu.pipeline_mode<synchronous>, transform_indices = @transform_11, window_bounds = array<i64: 16, 1>}, {pipeline_mode = #tpu.pipeline_mode<synchronous>, transform_indices = @transform_12, window_bounds = array<i64: 16, 1>}, {pipeline_mode = #tpu.pipeline_mode<synchronous>, transform_indices = @transform_13, window_bounds = array<i64: 16, 16>}, {pipeline_mode = #tpu.pipeline_mode<synchronous>, transform_indices = @transform_14, window_bounds = array<i64: 16, 1>}, {transform_indices = @transform_15, window_bounds = array<i64: 1, 16, 256>}]} {
    %cst = arith.constant 0.000000e+00 : bf16
    %0 = vector.broadcast %cst : bf16 to vector<16x128xbf16>
    %c0 = arith.constant 0 : index
    %c0_0 = arith.constant 0 : index
    %1 = vector.load %arg17[%c0, %c0_0] : memref<16x512xbf16, #tpu.memory_space<vmem>>, vector<16x128xbf16>
    tpu.vector_store %arg17[%c0, %c0_0], %0 {strides = array<i32>} : memref<16x512xbf16, #tpu.memory_space<vmem>>, vector<16x128xbf16>,
    %cst_1 = arith.constant 0.000000e+00 : bf16
    %2 = vector.broadcast %cst_1 : bf16 to vector<16x128xbf16>
    %c0_2 = arith.constant 0 : index
    %c384 = arith.constant 384 : index
    %3 = vector.load %arg17[%c0_2, %c384] : memref<16x512xbf16, #tpu.memory_space<vmem>>, vector<16x128xbf16>
    tpu.vector_store %arg17[%c0_2, %c384], %2 {strides = array<i32>} : memref<16x512xbf16, #tpu.memory_space<vmem>>, vector<16x128xbf16>,
    %4 = tpu.iota {dimensions = array<i32: 1>} : vector<1x256xi32>
    %c16_i32 = arith.constant 16 : i32
    %c0_i32 = arith.constant 0 : i32
    %5 = arith.cmpi eq, %c16_i32, %c0_i32 : i32
    %c1_i32 = arith.constant 1 : i32
    %6 = arith.select %5, %c1_i32, %c16_i32 : i32
    %7 = vector.broadcast %6 : i32 to vector<1x256xi32>
    %8 = arith.remsi %4, %7 : vector<1x256xi32>
    %c0_i32_3 = arith.constant 0 : i32
    %9 = vector.broadcast %c0_i32_3 : i32 to vector<1x256xi32>
    %10 = arith.cmpi ne, %8, %9 : vector<1x256xi32>
    %c0_i32_4 = arith.constant 0 : i32
    %11 = vector.broadcast %c0_i32_4 : i32 to vector<1x256xi32>
    %12 = arith.cmpi slt, %8, %11 : vector<1x256xi32>
    %c0_i32_5 = arith.constant 0 : i32
    %13 = arith.cmpi slt, %6, %c0_i32_5 : i32
    %14 = vector.broadcast %13 : i1 to vector<1x256xi1>
    %15 = vector.broadcast %14 : vector<1x256xi1> to vector<1x256xi1>
    %16 = arith.xori %12, %15 : vector<1x256xi1>
    %17 = arith.andi %16, %10 : vector<1x256xi1>
    %18 = vector.broadcast %6 : i32 to vector<1x256xi32>
    %19 = arith.addi %8, %18 : vector<1x256xi32>
    %20 = arith.select %17, %19, %8 : vector<1x256xi1>, vector<1x256xi32>
    %c0_i32_6 = arith.constant 0 : i32
    %21 = vector.broadcast %c0_i32_6 : i32 to vector<1x256xi32>
    %22 = arith.cmpi ne, %20, %21 : vector<1x256xi32>
    %c15_i32 = arith.constant 15 : i32
    %23 = vector.broadcast %c15_i32 : i32 to vector<1x256xi32>
    %24 = arith.cmpi ne, %20, %23 : vector<1x256xi32>
    %c0_7 = arith.constant 0 : index
    %c0_8 = arith.constant 0 : index
    %c0_9 = arith.constant 0 : index
    %25 = vector.load %arg1[%c0_7, %c0_8, %c0_9] : memref<1x16x256xf32, #tpu.memory_space<vmem>>, vector<1x16x256xf32>
    %26 = vector.shape_cast %25 : vector<1x16x256xf32> to vector<16x256xf32>
    %27 = arith.truncf %26 : vector<16x256xf32> to vector<16x256xbf16>
    %c0_10 = arith.constant 0 : index
    %c128 = arith.constant 128 : index
    %28 = vector.load %arg17[%c0_10, %c128] : memref<16x512xbf16, #tpu.memory_space<vmem>>, vector<16x256xbf16>
    tpu.vector_store %arg17[%c0_10, %c128], %27 {strides = array<i32>} : memref<16x512xbf16, #tpu.memory_space<vmem>>, vector<16x256xbf16>,
    %c0_11 = arith.constant 0 : index
    %c111 = arith.constant 111 : index
    %29 = vector.load %arg17[%c0_11, %c111] : memref<16x512xbf16, #tpu.memory_space<vmem>>, vector<16x256xbf16>
    %cst_12 = arith.constant 0.000000e+00 : f32
    %30 = arith.truncf %cst_12 : f32 to bf16
    %31 = vector.shape_cast %22 : vector<1x256xi1> to vector<1x256xi1>
    %32 = vector.broadcast %31 : vector<1x256xi1> to vector<16x256xi1>
    %33 = vector.broadcast %30 : bf16 to vector<16x256xbf16>
    %34 = arith.select %32, %29, %33 : vector<16x256xi1>, vector<16x256xbf16>
    %c0_13 = arith.constant 0 : index
    %c0_14 = arith.constant 0 : index
    %c0_15 = arith.constant 0 : index
    %35 = vector.load %arg2[%c0_13, %c0_14, %c0_15] : memref<9x16x16xbf16, #tpu.memory_space<vmem>>, vector<1x16x16xbf16>
    %36 = vector.shape_cast %35 : vector<1x16x16xbf16> to vector<16x16xbf16>
    %cst_16 = arith.constant dense<0.000000e+00> : vector<16x256xf32>
    %37 = tpu.matmul %36, %34, %cst_16 {dimension_numbers = #tpu.dot_dimension_numbers<[1], [0], [0], [1], [0, 0, 1, 1], [], []>} : vector<16x16xbf16>, vector<16x256xbf16>, vector<16x256xf32> -> vector<16x256xf32>
    %c0_17 = arith.constant 0 : index
    %c112 = arith.constant 112 : index
    %38 = vector.load %arg17[%c0_17, %c112] : memref<16x512xbf16, #tpu.memory_space<vmem>>, vector<16x256xbf16>
    %c1 = arith.constant 1 : index
    %c0_18 = arith.constant 0 : index
    %c0_19 = arith.constant 0 : index
    %39 = vector.load %arg2[%c1, %c0_18, %c0_19] : memref<9x16x16xbf16, #tpu.memory_space<vmem>>, vector<1x16x16xbf16>
    %40 = vector.shape_cast %39 : vector<1x16x16xbf16> to vector<16x16xbf16>
    %cst_20 = arith.constant dense<0.000000e+00> : vector<16x256xf32>
    %41 = tpu.matmul %40, %38, %cst_20 {dimension_numbers = #tpu.dot_dimension_numbers<[1], [0], [0], [1], [0, 0, 1, 1], [], []>} : vector<16x16xbf16>, vector<16x256xbf16>, vector<16x256xf32> -> vector<16x256xf32>
    %42 = arith.addf %37, %41 : vector<16x256xf32>
    %c0_21 = arith.constant 0 : index
    %c113 = arith.constant 113 : index
    %43 = vector.load %arg17[%c0_21, %c113] : memref<16x512xbf16, #tpu.memory_space<vmem>>, vector<16x256xbf16>
    %cst_22 = arith.constant 0.000000e+00 : f32
    %44 = arith.truncf %cst_22 : f32 to bf16
    %45 = vector.shape_cast %24 : vector<1x256xi1> to vector<1x256xi1>
    %46 = vector.broadcast %45 : vector<1x256xi1> to vector<16x256xi1>
    %47 = vector.broadcast %44 : bf16 to vector<16x256xbf16>
    %48 = arith.select %46, %43, %47 : vector<16x256xi1>, vector<16x256xbf16>
    %c2 = arith.constant 2 : index
    %c0_23 = arith.constant 0 : index
    %c0_24 = arith.constant 0 : index
    %49 = vector.load %arg2[%c2, %c0_23, %c0_24] : memref<9x16x16xbf16, #tpu.memory_space<vmem>>, vector<1x16x16xbf16>
    %50 = vector.shape_cast %49 : vector<1x16x16xbf16> to vector<16x16xbf16>
    %cst_25 = arith.constant dense<0.000000e+00> : vector<16x256xf32>
    %51 = tpu.matmul %50, %48, %cst_25 {dimension_numbers = #tpu.dot_dimension_numbers<[1], [0], [0], [1], [0, 0, 1, 1], [], []>} : vector<16x16xbf16>, vector<16x256xbf16>, vector<16x256xf32> -> vector<16x256xf32>
    %52 = arith.addf %42, %51 : vector<16x256xf32>
    %c0_26 = arith.constant 0 : index
    %c127 = arith.constant 127 : index
    %53 = vector.load %arg17[%c0_26, %c127] : memref<16x512xbf16, #tpu.memory_space<vmem>>, vector<16x256xbf16>
    %cst_27 = arith.constant 0.000000e+00 : f32
    %54 = arith.truncf %cst_27 : f32 to bf16
    %55 = vector.shape_cast %22 : vector<1x256xi1> to vector<1x256xi1>
    %56 = vector.broadcast %55 : vector<1x256xi1> to vector<16x256xi1>
    %57 = vector.broadcast %54 : bf16 to vector<16x256xbf16>
    %58 = arith.select %56, %53, %57 : vector<16x256xi1>, vector<16x256xbf16>
    %c3 = arith.constant 3 : index
    %c0_28 = arith.constant 0 : index
    %c0_29 = arith.constant 0 : index
    %59 = vector.load %arg2[%c3, %c0_28, %c0_29] : memref<9x16x16xbf16, #tpu.memory_space<vmem>>, vector<1x16x16xbf16>
    %60 = vector.shape_cast %59 : vector<1x16x16xbf16> to vector<16x16xbf16>
    %cst_30 = arith.constant dense<0.000000e+00> : vector<16x256xf32>
    %61 = tpu.matmul %60, %58, %cst_30 {dimension_numbers = #tpu.dot_dimension_numbers<[1], [0], [0], [1], [0, 0, 1, 1], [], []>} : vector<16x16xbf16>, vector<16x256xbf16>, vector<16x256xf32> -> vector<16x256xf32>
    %62 = arith.addf %52, %61 : vector<16x256xf32>
    %c0_31 = arith.constant 0 : index
    %c128_32 = arith.constant 128 : index
    %63 = vector.load %arg17[%c0_31, %c128_32] : memref<16x512xbf16, #tpu.memory_space<vmem>>, vector<16x256xbf16>
    %c4 = arith.constant 4 : index
    %c0_33 = arith.constant 0 : index
    %c0_34 = arith.constant 0 : index
    %64 = vector.load %arg2[%c4, %c0_33, %c0_34] : memref<9x16x16xbf16, #tpu.memory_space<vmem>>, vector<1x16x16xbf16>
    %65 = vector.shape_cast %64 : vector<1x16x16xbf16> to vector<16x16xbf16>
    %cst_35 = arith.constant dense<0.000000e+00> : vector<16x256xf32>
    %66 = tpu.matmul %65, %63, %cst_35 {dimension_numbers = #tpu.dot_dimension_numbers<[1], [0], [0], [1], [0, 0, 1, 1], [], []>} : vector<16x16xbf16>, vector<16x256xbf16>, vector<16x256xf32> -> vector<16x256xf32>
    %67 = arith.addf %62, %66 : vector<16x256xf32>
    %c0_36 = arith.constant 0 : index
    %c129 = arith.constant 129 : index
    %68 = vector.load %arg17[%c0_36, %c129] : memref<16x512xbf16, #tpu.memory_space<vmem>>, vector<16x256xbf16>
    %cst_37 = arith.constant 0.000000e+00 : f32
    %69 = arith.truncf %cst_37 : f32 to bf16
    %70 = vector.shape_cast %24 : vector<1x256xi1> to vector<1x256xi1>
    %71 = vector.broadcast %70 : vector<1x256xi1> to vector<16x256xi1>
    %72 = vector.broadcast %69 : bf16 to vector<16x256xbf16>
    %73 = arith.select %71, %68, %72 : vector<16x256xi1>, vector<16x256xbf16>
    %c5 = arith.constant 5 : index
    %c0_38 = arith.constant 0 : index
    %c0_39 = arith.constant 0 : index
    %74 = vector.load %arg2[%c5, %c0_38, %c0_39] : memref<9x16x16xbf16, #tpu.memory_space<vmem>>, vector<1x16x16xbf16>
    %75 = vector.shape_cast %74 : vector<1x16x16xbf16> to vector<16x16xbf16>
    %cst_40 = arith.constant dense<0.000000e+00> : vector<16x256xf32>
    %76 = tpu.matmul %75, %73, %cst_40 {dimension_numbers = #tpu.dot_dimension_numbers<[1], [0], [0], [1], [0, 0, 1, 1], [], []>} : vector<16x16xbf16>, vector<16x256xbf16>, vector<16x256xf32> -> vector<16x256xf32>
    %77 = arith.addf %67, %76 : vector<16x256xf32>
    %c0_41 = arith.constant 0 : index
    %c143 = arith.constant 143 : index
    %78 = vector.load %arg17[%c0_41, %c143] : memref<16x512xbf16, #tpu.memory_space<vmem>>, vector<16x256xbf16>
    %cst_42 = arith.constant 0.000000e+00 : f32
    %79 = arith.truncf %cst_42 : f32 to bf16
    %80 = vector.shape_cast %22 : vector<1x256xi1> to vector<1x256xi1>
    %81 = vector.broadcast %80 : vector<1x256xi1> to vector<16x256xi1>
    %82 = vector.broadcast %79 : bf16 to vector<16x256xbf16>
    %83 = arith.select %81, %78, %82 : vector<16x256xi1>, vector<16x256xbf16>
    %c6 = arith.constant 6 : index
    %c0_43 = arith.constant 0 : index
    %c0_44 = arith.constant 0 : index
    %84 = vector.load %arg2[%c6, %c0_43, %c0_44] : memref<9x16x16xbf16, #tpu.memory_space<vmem>>, vector<1x16x16xbf16>
    %85 = vector.shape_cast %84 : vector<1x16x16xbf16> to vector<16x16xbf16>
    %cst_45 = arith.constant dense<0.000000e+00> : vector<16x256xf32>
    %86 = tpu.matmul %85, %83, %cst_45 {dimension_numbers = #tpu.dot_dimension_numbers<[1], [0], [0], [1], [0, 0, 1, 1], [], []>} : vector<16x16xbf16>, vector<16x256xbf16>, vector<16x256xf32> -> vector<16x256xf32>
    %87 = arith.addf %77, %86 : vector<16x256xf32>
    %c0_46 = arith.constant 0 : index
    %c144 = arith.constant 144 : index
    %88 = vector.load %arg17[%c0_46, %c144] : memref<16x512xbf16, #tpu.memory_space<vmem>>, vector<16x256xbf16>
    %c7 = arith.constant 7 : index
    %c0_47 = arith.constant 0 : index
    %c0_48 = arith.constant 0 : index
    %89 = vector.load %arg2[%c7, %c0_47, %c0_48] : memref<9x16x16xbf16, #tpu.memory_space<vmem>>, vector<1x16x16xbf16>
    %90 = vector.shape_cast %89 : vector<1x16x16xbf16> to vector<16x16xbf16>
    %cst_49 = arith.constant dense<0.000000e+00> : vector<16x256xf32>
    %91 = tpu.matmul %90, %88, %cst_49 {dimension_numbers = #tpu.dot_dimension_numbers<[1], [0], [0], [1], [0, 0, 1, 1], [], []>} : vector<16x16xbf16>, vector<16x256xbf16>, vector<16x256xf32> -> vector<16x256xf32>
    %92 = arith.addf %87, %91 : vector<16x256xf32>
    %c0_50 = arith.constant 0 : index
    %c145 = arith.constant 145 : index
    %93 = vector.load %arg17[%c0_50, %c145] : memref<16x512xbf16, #tpu.memory_space<vmem>>, vector<16x256xbf16>
    %cst_51 = arith.constant 0.000000e+00 : f32
    %94 = arith.truncf %cst_51 : f32 to bf16
    %95 = vector.shape_cast %24 : vector<1x256xi1> to vector<1x256xi1>
    %96 = vector.broadcast %95 : vector<1x256xi1> to vector<16x256xi1>
    %97 = vector.broadcast %94 : bf16 to vector<16x256xbf16>
    %98 = arith.select %96, %93, %97 : vector<16x256xi1>, vector<16x256xbf16>
    %c8 = arith.constant 8 : index
    %c0_52 = arith.constant 0 : index
    %c0_53 = arith.constant 0 : index
    %99 = vector.load %arg2[%c8, %c0_52, %c0_53] : memref<9x16x16xbf16, #tpu.memory_space<vmem>>, vector<1x16x16xbf16>
    %100 = vector.shape_cast %99 : vector<1x16x16xbf16> to vector<16x16xbf16>
    %cst_54 = arith.constant dense<0.000000e+00> : vector<16x256xf32>
    %101 = tpu.matmul %100, %98, %cst_54 {dimension_numbers = #tpu.dot_dimension_numbers<[1], [0], [0], [1], [0, 0, 1, 1], [], []>} : vector<16x16xbf16>, vector<16x256xbf16>, vector<16x256xf32> -> vector<16x256xf32>
    %102 = arith.addf %92, %101 : vector<16x256xf32>
    %c0_55 = arith.constant 0 : index
    %c0_56 = arith.constant 0 : index
    %103 = vector.load %arg3[%c0_55, %c0_56] : memref<16x1xf32, #tpu.memory_space<vmem>>, vector<16x1xf32>
    %104 = vector.broadcast %103 : vector<16x1xf32> to vector<16x256xf32>
    %105 = arith.addf %102, %104 : vector<16x256xf32>
    %106 = vector.extract_strided_slice %105 {offsets = [0, 0], sizes = [4, 256], strides = [1, 1]} : vector<16x256xf32> to vector<4x256xf32>
    %c0_57 = arith.constant 0 : index
    %c0_58 = arith.constant 0 : index
    %107 = vector.load %arg18[%c0_57, %c0_58] : memref<16x256xf32, #tpu.memory_space<vmem>>, vector<4x256xf32>
    tpu.vector_store %arg18[%c0_57, %c0_58], %106 {strides = array<i32>} : memref<16x256xf32, #tpu.memory_space<vmem>>, vector<4x256xf32>,
    %108 = vector.extract_strided_slice %105 {offsets = [4, 0], sizes = [12, 256], strides = [1, 1]} : vector<16x256xf32> to vector<12x256xf32>
    %109 = arith.truncf %108 : vector<12x256xf32> to vector<12x256xbf16>
    %c0_59 = arith.constant 0 : index
    %c128_60 = arith.constant 128 : index
    %110 = vector.load %arg17[%c0_59, %c128_60] : memref<16x512xbf16, #tpu.memory_space<vmem>>, vector<12x256xbf16>
    tpu.vector_store %arg17[%c0_59, %c128_60], %109 {strides = array<i32>} : memref<16x512xbf16, #tpu.memory_space<vmem>>, vector<12x256xbf16>,
    %c0_61 = arith.constant 0 : index
    %c111_62 = arith.constant 111 : index
    %111 = vector.load %arg17[%c0_61, %c111_62] : memref<16x512xbf16, #tpu.memory_space<vmem>>, vector<12x256xbf16>
    %cst_63 = arith.constant 0.000000e+00 : f32
    %112 = arith.truncf %cst_63 : f32 to bf16
    %113 = vector.shape_cast %22 : vector<1x256xi1> to vector<1x256xi1>
    %114 = vector.broadcast %113 : vector<1x256xi1> to vector<12x256xi1>
    %115 = vector.broadcast %112 : bf16 to vector<12x256xbf16>
    %116 = arith.select %114, %111, %115 : vector<12x256xi1>, vector<12x256xbf16>
    %c0_64 = arith.constant 0 : index
    %c0_65 = arith.constant 0 : index
    %c0_66 = arith.constant 0 : index
    %117 = vector.load %arg4[%c0_64, %c0_65, %c0_66] : memref<9x16x12xbf16, #tpu.memory_space<vmem>>, vector<1x16x12xbf16>
    %118 = vector.shape_cast %117 : vector<1x16x12xbf16> to vector<16x12xbf16>
    %cst_67 = arith.constant dense<0.000000e+00> : vector<16x256xf32>
    %119 = tpu.matmul %118, %116, %cst_67 {dimension_numbers = #tpu.dot_dimension_numbers<[1], [0], [0], [1], [0, 0, 1, 1], [], []>} : vector<16x12xbf16>, vector<12x256xbf16>, vector<16x256xf32> -> vector<16x256xf32>
    %c0_68 = arith.constant 0 : index
    %c112_69 = arith.constant 112 : index
    %120 = vector.load %arg17[%c0_68, %c112_69] : memref<16x512xbf16, #tpu.memory_space<vmem>>, vector<12x256xbf16>
    %c1_70 = arith.constant 1 : index
    %c0_71 = arith.constant 0 : index
    %c0_72 = arith.constant 0 : index
    %121 = vector.load %arg4[%c1_70, %c0_71, %c0_72] : memref<9x16x12xbf16, #tpu.memory_space<vmem>>, vector<1x16x12xbf16>
    %122 = vector.shape_cast %121 : vector<1x16x12xbf16> to vector<16x12xbf16>
    %cst_73 = arith.constant dense<0.000000e+00> : vector<16x256xf32>
    %123 = tpu.matmul %122, %120, %cst_73 {dimension_numbers = #tpu.dot_dimension_numbers<[1], [0], [0], [1], [0, 0, 1, 1], [], []>} : vector<16x12xbf16>, vector<12x256xbf16>, vector<16x256xf32> -> vector<16x256xf32>
    %124 = arith.addf %119, %123 : vector<16x256xf32>
    %c0_74 = arith.constant 0 : index
    %c113_75 = arith.constant 113 : index
    %125 = vector.load %arg17[%c0_74, %c113_75] : memref<16x512xbf16, #tpu.memory_space<vmem>>, vector<12x256xbf16>
    %cst_76 = arith.constant 0.000000e+00 : f32
    %126 = arith.truncf %cst_76 : f32 to bf16
    %127 = vector.shape_cast %24 : vector<1x256xi1> to vector<1x256xi1>
    %128 = vector.broadcast %127 : vector<1x256xi1> to vector<12x256xi1>
    %129 = vector.broadcast %126 : bf16 to vector<12x256xbf16>
    %130 = arith.select %128, %125, %129 : vector<12x256xi1>, vector<12x256xbf16>
    %c2_77 = arith.constant 2 : index
    %c0_78 = arith.constant 0 : index
    %c0_79 = arith.constant 0 : index
    %131 = vector.load %arg4[%c2_77, %c0_78, %c0_79] : memref<9x16x12xbf16, #tpu.memory_space<vmem>>, vector<1x16x12xbf16>
    %132 = vector.shape_cast %131 : vector<1x16x12xbf16> to vector<16x12xbf16>
    %cst_80 = arith.constant dense<0.000000e+00> : vector<16x256xf32>
    %133 = tpu.matmul %132, %130, %cst_80 {dimension_numbers = #tpu.dot_dimension_numbers<[1], [0], [0], [1], [0, 0, 1, 1], [], []>} : vector<16x12xbf16>, vector<12x256xbf16>, vector<16x256xf32> -> vector<16x256xf32>
    %134 = arith.addf %124, %133 : vector<16x256xf32>
    %c0_81 = arith.constant 0 : index
    %c127_82 = arith.constant 127 : index
    %135 = vector.load %arg17[%c0_81, %c127_82] : memref<16x512xbf16, #tpu.memory_space<vmem>>, vector<12x256xbf16>
    %cst_83 = arith.constant 0.000000e+00 : f32
    %136 = arith.truncf %cst_83 : f32 to bf16
    %137 = vector.shape_cast %22 : vector<1x256xi1> to vector<1x256xi1>
    %138 = vector.broadcast %137 : vector<1x256xi1> to vector<12x256xi1>
    %139 = vector.broadcast %136 : bf16 to vector<12x256xbf16>
    %140 = arith.select %138, %135, %139 : vector<12x256xi1>, vector<12x256xbf16>
    %c3_84 = arith.constant 3 : index
    %c0_85 = arith.constant 0 : index
    %c0_86 = arith.constant 0 : index
    %141 = vector.load %arg4[%c3_84, %c0_85, %c0_86] : memref<9x16x12xbf16, #tpu.memory_space<vmem>>, vector<1x16x12xbf16>
    %142 = vector.shape_cast %141 : vector<1x16x12xbf16> to vector<16x12xbf16>
    %cst_87 = arith.constant dense<0.000000e+00> : vector<16x256xf32>
    %143 = tpu.matmul %142, %140, %cst_87 {dimension_numbers = #tpu.dot_dimension_numbers<[1], [0], [0], [1], [0, 0, 1, 1], [], []>} : vector<16x12xbf16>, vector<12x256xbf16>, vector<16x256xf32> -> vector<16x256xf32>
    %144 = arith.addf %134, %143 : vector<16x256xf32>
    %c0_88 = arith.constant 0 : index
    %c128_89 = arith.constant 128 : index
    %145 = vector.load %arg17[%c0_88, %c128_89] : memref<16x512xbf16, #tpu.memory_space<vmem>>, vector<12x256xbf16>
    %c4_90 = arith.constant 4 : index
    %c0_91 = arith.constant 0 : index
    %c0_92 = arith.constant 0 : index
    %146 = vector.load %arg4[%c4_90, %c0_91, %c0_92] : memref<9x16x12xbf16, #tpu.memory_space<vmem>>, vector<1x16x12xbf16>
    %147 = vector.shape_cast %146 : vector<1x16x12xbf16> to vector<16x12xbf16>
    %cst_93 = arith.constant dense<0.000000e+00> : vector<16x256xf32>
    %148 = tpu.matmul %147, %145, %cst_93 {dimension_numbers = #tpu.dot_dimension_numbers<[1], [0], [0], [1], [0, 0, 1, 1], [], []>} : vector<16x12xbf16>, vector<12x256xbf16>, vector<16x256xf32> -> vector<16x256xf32>
    %149 = arith.addf %144, %148 : vector<16x256xf32>
    %c0_94 = arith.constant 0 : index
    %c129_95 = arith.constant 129 : index
    %150 = vector.load %arg17[%c0_94, %c129_95] : memref<16x512xbf16, #tpu.memory_space<vmem>>, vector<12x256xbf16>
    %cst_96 = arith.constant 0.000000e+00 : f32
    %151 = arith.truncf %cst_96 : f32 to bf16
    %152 = vector.shape_cast %24 : vector<1x256xi1> to vector<1x256xi1>
    %153 = vector.broadcast %152 : vector<1x256xi1> to vector<12x256xi1>
    %154 = vector.broadcast %151 : bf16 to vector<12x256xbf16>
    %155 = arith.select %153, %150, %154 : vector<12x256xi1>, vector<12x256xbf16>
    %c5_97 = arith.constant 5 : index
    %c0_98 = arith.constant 0 : index
    %c0_99 = arith.constant 0 : index
    %156 = vector.load %arg4[%c5_97, %c0_98, %c0_99] : memref<9x16x12xbf16, #tpu.memory_space<vmem>>, vector<1x16x12xbf16>
    %157 = vector.shape_cast %156 : vector<1x16x12xbf16> to vector<16x12xbf16>
    %cst_100 = arith.constant dense<0.000000e+00> : vector<16x256xf32>
    %158 = tpu.matmul %157, %155, %cst_100 {dimension_numbers = #tpu.dot_dimension_numbers<[1], [0], [0], [1], [0, 0, 1, 1], [], []>} : vector<16x12xbf16>, vector<12x256xbf16>, vector<16x256xf32> -> vector<16x256xf32>
    %159 = arith.addf %149, %158 : vector<16x256xf32>
    %c0_101 = arith.constant 0 : index
    %c143_102 = arith.constant 143 : index
    %160 = vector.load %arg17[%c0_101, %c143_102] : memref<16x512xbf16, #tpu.memory_space<vmem>>, vector<12x256xbf16>
    %cst_103 = arith.constant 0.000000e+00 : f32
    %161 = arith.truncf %cst_103 : f32 to bf16
    %162 = vector.shape_cast %22 : vector<1x256xi1> to vector<1x256xi1>
    %163 = vector.broadcast %162 : vector<1x256xi1> to vector<12x256xi1>
    %164 = vector.broadcast %161 : bf16 to vector<12x256xbf16>
    %165 = arith.select %163, %160, %164 : vector<12x256xi1>, vector<12x256xbf16>
    %c6_104 = arith.constant 6 : index
    %c0_105 = arith.constant 0 : index
    %c0_106 = arith.constant 0 : index
    %166 = vector.load %arg4[%c6_104, %c0_105, %c0_106] : memref<9x16x12xbf16, #tpu.memory_space<vmem>>, vector<1x16x12xbf16>
    %167 = vector.shape_cast %166 : vector<1x16x12xbf16> to vector<16x12xbf16>
    %cst_107 = arith.constant dense<0.000000e+00> : vector<16x256xf32>
    %168 = tpu.matmul %167, %165, %cst_107 {dimension_numbers = #tpu.dot_dimension_numbers<[1], [0], [0], [1], [0, 0, 1, 1], [], []>} : vector<16x12xbf16>, vector<12x256xbf16>, vector<16x256xf32> -> vector<16x256xf32>
    %169 = arith.addf %159, %168 : vector<16x256xf32>
    %c0_108 = arith.constant 0 : index
    %c144_109 = arith.constant 144 : index
    %170 = vector.load %arg17[%c0_108, %c144_109] : memref<16x512xbf16, #tpu.memory_space<vmem>>, vector<12x256xbf16>
    %c7_110 = arith.constant 7 : index
    %c0_111 = arith.constant 0 : index
    %c0_112 = arith.constant 0 : index
    %171 = vector.load %arg4[%c7_110, %c0_111, %c0_112] : memref<9x16x12xbf16, #tpu.memory_space<vmem>>, vector<1x16x12xbf16>
    %172 = vector.shape_cast %171 : vector<1x16x12xbf16> to vector<16x12xbf16>
    %cst_113 = arith.constant dense<0.000000e+00> : vector<16x256xf32>
    %173 = tpu.matmul %172, %170, %cst_113 {dimension_numbers = #tpu.dot_dimension_numbers<[1], [0], [0], [1], [0, 0, 1, 1], [], []>} : vector<16x12xbf16>, vector<12x256xbf16>, vector<16x256xf32> -> vector<16x256xf32>
    %174 = arith.addf %169, %173 : vector<16x256xf32>
    %c0_114 = arith.constant 0 : index
    %c145_115 = arith.constant 145 : index
    %175 = vector.load %arg17[%c0_114, %c145_115] : memref<16x512xbf16, #tpu.memory_space<vmem>>, vector<12x256xbf16>
    %cst_116 = arith.constant 0.000000e+00 : f32
    %176 = arith.truncf %cst_116 : f32 to bf16
    %177 = vector.shape_cast %24 : vector<1x256xi1> to vector<1x256xi1>
    %178 = vector.broadcast %177 : vector<1x256xi1> to vector<12x256xi1>
    %179 = vector.broadcast %176 : bf16 to vector<12x256xbf16>
    %180 = arith.select %178, %175, %179 : vector<12x256xi1>, vector<12x256xbf16>
    %c8_117 = arith.constant 8 : index
    %c0_118 = arith.constant 0 : index
    %c0_119 = arith.constant 0 : index
    %181 = vector.load %arg4[%c8_117, %c0_118, %c0_119] : memref<9x16x12xbf16, #tpu.memory_space<vmem>>, vector<1x16x12xbf16>
    %182 = vector.shape_cast %181 : vector<1x16x12xbf16> to vector<16x12xbf16>
    %cst_120 = arith.constant dense<0.000000e+00> : vector<16x256xf32>
    %183 = tpu.matmul %182, %180, %cst_120 {dimension_numbers = #tpu.dot_dimension_numbers<[1], [0], [0], [1], [0, 0, 1, 1], [], []>} : vector<16x12xbf16>, vector<12x256xbf16>, vector<16x256xf32> -> vector<16x256xf32>
    %184 = arith.addf %174, %183 : vector<16x256xf32>
    %c0_121 = arith.constant 0 : index
    %c0_122 = arith.constant 0 : index
    %185 = vector.load %arg5[%c0_121, %c0_122] : memref<16x1xf32, #tpu.memory_space<vmem>>, vector<16x1xf32>
    %186 = vector.broadcast %185 : vector<16x1xf32> to vector<16x256xf32>
    %187 = arith.addf %184, %186 : vector<16x256xf32>
    %cst_123 = arith.constant 0.000000e+00 : f32
    %188 = vector.broadcast %cst_123 : f32 to vector<16x256xf32>
    %189 = arith.cmpf oge, %187, %188 : vector<16x256xf32>
    %cst_124 = arith.constant 0.00999999977 : f32
    %190 = vector.broadcast %cst_124 : f32 to vector<16x256xf32>
    %191 = arith.mulf %190, %187 : vector<16x256xf32>
    %192 = arith.select %189, %187, %191 : vector<16x256xi1>, vector<16x256xf32>
    %193 = vector.extract_strided_slice %192 {offsets = [0, 0], sizes = [4, 256], strides = [1, 1]} : vector<16x256xf32> to vector<4x256xf32>
    %c4_125 = arith.constant 4 : index
    %c0_126 = arith.constant 0 : index
    %194 = vector.load %arg18[%c4_125, %c0_126] : memref<16x256xf32, #tpu.memory_space<vmem>>, vector<4x256xf32>
    tpu.vector_store %arg18[%c4_125, %c0_126], %193 {strides = array<i32>} : memref<16x256xf32, #tpu.memory_space<vmem>>, vector<4x256xf32>,
    %195 = vector.extract_strided_slice %192 {offsets = [4, 0], sizes = [12, 256], strides = [1, 1]} : vector<16x256xf32> to vector<12x256xf32>
    %196 = arith.truncf %195 : vector<12x256xf32> to vector<12x256xbf16>
    %c0_127 = arith.constant 0 : index
    %c128_128 = arith.constant 128 : index
    %197 = vector.load %arg17[%c0_127, %c128_128] : memref<16x512xbf16, #tpu.memory_space<vmem>>, vector<12x256xbf16>
    tpu.vector_store %arg17[%c0_127, %c128_128], %196 {strides = array<i32>} : memref<16x512xbf16, #tpu.memory_space<vmem>>, vector<12x256xbf16>,
    %c0_129 = arith.constant 0 : index
    %c111_130 = arith.constant 111 : index
    %198 = vector.load %arg17[%c0_129, %c111_130] : memref<16x512xbf16, #tpu.memory_space<vmem>>, vector<12x256xbf16>
    %cst_131 = arith.constant 0.000000e+00 : f32
    %199 = arith.truncf %cst_131 : f32 to bf16
    %200 = vector.shape_cast %22 : vector<1x256xi1> to vector<1x256xi1>
    %201 = vector.broadcast %200 : vector<1x256xi1> to vector<12x256xi1>
    %202 = vector.broadcast %199 : bf16 to vector<12x256xbf16>
    %203 = arith.select %201, %198, %202 : vector<12x256xi1>, vector<12x256xbf16>
    %c0_132 = arith.constant 0 : index
    %c0_133 = arith.constant 0 : index
    %c0_134 = arith.constant 0 : index
    %204 = vector.load %arg6[%c0_132, %c0_133, %c0_134] : memref<9x16x12xbf16, #tpu.memory_space<vmem>>, vector<1x16x12xbf16>
    %205 = vector.shape_cast %204 : vector<1x16x12xbf16> to vector<16x12xbf16>
    %cst_135 = arith.constant dense<0.000000e+00> : vector<16x256xf32>
    %206 = tpu.matmul %205, %203, %cst_135 {dimension_numbers = #tpu.dot_dimension_numbers<[1], [0], [0], [1], [0, 0, 1, 1], [], []>} : vector<16x12xbf16>, vector<12x256xbf16>, vector<16x256xf32> -> vector<16x256xf32>
    %c0_136 = arith.constant 0 : index
    %c112_137 = arith.constant 112 : index
    %207 = vector.load %arg17[%c0_136, %c112_137] : memref<16x512xbf16, #tpu.memory_space<vmem>>, vector<12x256xbf16>
    %c1_138 = arith.constant 1 : index
    %c0_139 = arith.constant 0 : index
    %c0_140 = arith.constant 0 : index
    %208 = vector.load %arg6[%c1_138, %c0_139, %c0_140] : memref<9x16x12xbf16, #tpu.memory_space<vmem>>, vector<1x16x12xbf16>
    %209 = vector.shape_cast %208 : vector<1x16x12xbf16> to vector<16x12xbf16>
    %cst_141 = arith.constant dense<0.000000e+00> : vector<16x256xf32>
    %210 = tpu.matmul %209, %207, %cst_141 {dimension_numbers = #tpu.dot_dimension_numbers<[1], [0], [0], [1], [0, 0, 1, 1], [], []>} : vector<16x12xbf16>, vector<12x256xbf16>, vector<16x256xf32> -> vector<16x256xf32>
    %211 = arith.addf %206, %210 : vector<16x256xf32>
    %c0_142 = arith.constant 0 : index
    %c113_143 = arith.constant 113 : index
    %212 = vector.load %arg17[%c0_142, %c113_143] : memref<16x512xbf16, #tpu.memory_space<vmem>>, vector<12x256xbf16>
    %cst_144 = arith.constant 0.000000e+00 : f32
    %213 = arith.truncf %cst_144 : f32 to bf16
    %214 = vector.shape_cast %24 : vector<1x256xi1> to vector<1x256xi1>
    %215 = vector.broadcast %214 : vector<1x256xi1> to vector<12x256xi1>
    %216 = vector.broadcast %213 : bf16 to vector<12x256xbf16>
    %217 = arith.select %215, %212, %216 : vector<12x256xi1>, vector<12x256xbf16>
    %c2_145 = arith.constant 2 : index
    %c0_146 = arith.constant 0 : index
    %c0_147 = arith.constant 0 : index
    %218 = vector.load %arg6[%c2_145, %c0_146, %c0_147] : memref<9x16x12xbf16, #tpu.memory_space<vmem>>, vector<1x16x12xbf16>
    %219 = vector.shape_cast %218 : vector<1x16x12xbf16> to vector<16x12xbf16>
    %cst_148 = arith.constant dense<0.000000e+00> : vector<16x256xf32>
    %220 = tpu.matmul %219, %217, %cst_148 {dimension_numbers = #tpu.dot_dimension_numbers<[1], [0], [0], [1], [0, 0, 1, 1], [], []>} : vector<16x12xbf16>, vector<12x256xbf16>, vector<16x256xf32> -> vector<16x256xf32>
    %221 = arith.addf %211, %220 : vector<16x256xf32>
    %c0_149 = arith.constant 0 : index
    %c127_150 = arith.constant 127 : index
    %222 = vector.load %arg17[%c0_149, %c127_150] : memref<16x512xbf16, #tpu.memory_space<vmem>>, vector<12x256xbf16>
    %cst_151 = arith.constant 0.000000e+00 : f32
    %223 = arith.truncf %cst_151 : f32 to bf16
    %224 = vector.shape_cast %22 : vector<1x256xi1> to vector<1x256xi1>
    %225 = vector.broadcast %224 : vector<1x256xi1> to vector<12x256xi1>
    %226 = vector.broadcast %223 : bf16 to vector<12x256xbf16>
    %227 = arith.select %225, %222, %226 : vector<12x256xi1>, vector<12x256xbf16>
    %c3_152 = arith.constant 3 : index
    %c0_153 = arith.constant 0 : index
    %c0_154 = arith.constant 0 : index
    %228 = vector.load %arg6[%c3_152, %c0_153, %c0_154] : memref<9x16x12xbf16, #tpu.memory_space<vmem>>, vector<1x16x12xbf16>
    %229 = vector.shape_cast %228 : vector<1x16x12xbf16> to vector<16x12xbf16>
    %cst_155 = arith.constant dense<0.000000e+00> : vector<16x256xf32>
    %230 = tpu.matmul %229, %227, %cst_155 {dimension_numbers = #tpu.dot_dimension_numbers<[1], [0], [0], [1], [0, 0, 1, 1], [], []>} : vector<16x12xbf16>, vector<12x256xbf16>, vector<16x256xf32> -> vector<16x256xf32>
    %231 = arith.addf %221, %230 : vector<16x256xf32>
    %c0_156 = arith.constant 0 : index
    %c128_157 = arith.constant 128 : index
    %232 = vector.load %arg17[%c0_156, %c128_157] : memref<16x512xbf16, #tpu.memory_space<vmem>>, vector<12x256xbf16>
    %c4_158 = arith.constant 4 : index
    %c0_159 = arith.constant 0 : index
    %c0_160 = arith.constant 0 : index
    %233 = vector.load %arg6[%c4_158, %c0_159, %c0_160] : memref<9x16x12xbf16, #tpu.memory_space<vmem>>, vector<1x16x12xbf16>
    %234 = vector.shape_cast %233 : vector<1x16x12xbf16> to vector<16x12xbf16>
    %cst_161 = arith.constant dense<0.000000e+00> : vector<16x256xf32>
    %235 = tpu.matmul %234, %232, %cst_161 {dimension_numbers = #tpu.dot_dimension_numbers<[1], [0], [0], [1], [0, 0, 1, 1], [], []>} : vector<16x12xbf16>, vector<12x256xbf16>, vector<16x256xf32> -> vector<16x256xf32>
    %236 = arith.addf %231, %235 : vector<16x256xf32>
    %c0_162 = arith.constant 0 : index
    %c129_163 = arith.constant 129 : index
    %237 = vector.load %arg17[%c0_162, %c129_163] : memref<16x512xbf16, #tpu.memory_space<vmem>>, vector<12x256xbf16>
    %cst_164 = arith.constant 0.000000e+00 : f32
    %238 = arith.truncf %cst_164 : f32 to bf16
    %239 = vector.shape_cast %24 : vector<1x256xi1> to vector<1x256xi1>
    %240 = vector.broadcast %239 : vector<1x256xi1> to vector<12x256xi1>
    %241 = vector.broadcast %238 : bf16 to vector<12x256xbf16>
    %242 = arith.select %240, %237, %241 : vector<12x256xi1>, vector<12x256xbf16>
    %c5_165 = arith.constant 5 : index
    %c0_166 = arith.constant 0 : index
    %c0_167 = arith.constant 0 : index
    %243 = vector.load %arg6[%c5_165, %c0_166, %c0_167] : memref<9x16x12xbf16, #tpu.memory_space<vmem>>, vector<1x16x12xbf16>
    %244 = vector.shape_cast %243 : vector<1x16x12xbf16> to vector<16x12xbf16>
    %cst_168 = arith.constant dense<0.000000e+00> : vector<16x256xf32>
    %245 = tpu.matmul %244, %242, %cst_168 {dimension_numbers = #tpu.dot_dimension_numbers<[1], [0], [0], [1], [0, 0, 1, 1], [], []>} : vector<16x12xbf16>, vector<12x256xbf16>, vector<16x256xf32> -> vector<16x256xf32>
    %246 = arith.addf %236, %245 : vector<16x256xf32>
    %c0_169 = arith.constant 0 : index
    %c143_170 = arith.constant 143 : index
    %247 = vector.load %arg17[%c0_169, %c143_170] : memref<16x512xbf16, #tpu.memory_space<vmem>>, vector<12x256xbf16>
    %cst_171 = arith.constant 0.000000e+00 : f32
    %248 = arith.truncf %cst_171 : f32 to bf16
    %249 = vector.shape_cast %22 : vector<1x256xi1> to vector<1x256xi1>
    %250 = vector.broadcast %249 : vector<1x256xi1> to vector<12x256xi1>
    %251 = vector.broadcast %248 : bf16 to vector<12x256xbf16>
    %252 = arith.select %250, %247, %251 : vector<12x256xi1>, vector<12x256xbf16>
    %c6_172 = arith.constant 6 : index
    %c0_173 = arith.constant 0 : index
    %c0_174 = arith.constant 0 : index
    %253 = vector.load %arg6[%c6_172, %c0_173, %c0_174] : memref<9x16x12xbf16, #tpu.memory_space<vmem>>, vector<1x16x12xbf16>
    %254 = vector.shape_cast %253 : vector<1x16x12xbf16> to vector<16x12xbf16>
    %cst_175 = arith.constant dense<0.000000e+00> : vector<16x256xf32>
    %255 = tpu.matmul %254, %252, %cst_175 {dimension_numbers = #tpu.dot_dimension_numbers<[1], [0], [0], [1], [0, 0, 1, 1], [], []>} : vector<16x12xbf16>, vector<12x256xbf16>, vector<16x256xf32> -> vector<16x256xf32>
    %256 = arith.addf %246, %255 : vector<16x256xf32>
    %c0_176 = arith.constant 0 : index
    %c144_177 = arith.constant 144 : index
    %257 = vector.load %arg17[%c0_176, %c144_177] : memref<16x512xbf16, #tpu.memory_space<vmem>>, vector<12x256xbf16>
    %c7_178 = arith.constant 7 : index
    %c0_179 = arith.constant 0 : index
    %c0_180 = arith.constant 0 : index
    %258 = vector.load %arg6[%c7_178, %c0_179, %c0_180] : memref<9x16x12xbf16, #tpu.memory_space<vmem>>, vector<1x16x12xbf16>
    %259 = vector.shape_cast %258 : vector<1x16x12xbf16> to vector<16x12xbf16>
    %cst_181 = arith.constant dense<0.000000e+00> : vector<16x256xf32>
    %260 = tpu.matmul %259, %257, %cst_181 {dimension_numbers = #tpu.dot_dimension_numbers<[1], [0], [0], [1], [0, 0, 1, 1], [], []>} : vector<16x12xbf16>, vector<12x256xbf16>, vector<16x256xf32> -> vector<16x256xf32>
    %261 = arith.addf %256, %260 : vector<16x256xf32>
    %c0_182 = arith.constant 0 : index
    %c145_183 = arith.constant 145 : index
    %262 = vector.load %arg17[%c0_182, %c145_183] : memref<16x512xbf16, #tpu.memory_space<vmem>>, vector<12x256xbf16>
    %cst_184 = arith.constant 0.000000e+00 : f32
    %263 = arith.truncf %cst_184 : f32 to bf16
    %264 = vector.shape_cast %24 : vector<1x256xi1> to vector<1x256xi1>
    %265 = vector.broadcast %264 : vector<1x256xi1> to vector<12x256xi1>
    %266 = vector.broadcast %263 : bf16 to vector<12x256xbf16>
    %267 = arith.select %265, %262, %266 : vector<12x256xi1>, vector<12x256xbf16>
    %c8_185 = arith.constant 8 : index
    %c0_186 = arith.constant 0 : index
    %c0_187 = arith.constant 0 : index
    %268 = vector.load %arg6[%c8_185, %c0_186, %c0_187] : memref<9x16x12xbf16, #tpu.memory_space<vmem>>, vector<1x16x12xbf16>
    %269 = vector.shape_cast %268 : vector<1x16x12xbf16> to vector<16x12xbf16>
    %cst_188 = arith.constant dense<0.000000e+00> : vector<16x256xf32>
    %270 = tpu.matmul %269, %267, %cst_188 {dimension_numbers = #tpu.dot_dimension_numbers<[1], [0], [0], [1], [0, 0, 1, 1], [], []>} : vector<16x12xbf16>, vector<12x256xbf16>, vector<16x256xf32> -> vector<16x256xf32>
    %271 = arith.addf %261, %270 : vector<16x256xf32>
    %c0_189 = arith.constant 0 : index
    %c0_190 = arith.constant 0 : index
    %272 = vector.load %arg7[%c0_189, %c0_190] : memref<16x1xf32, #tpu.memory_space<vmem>>, vector<16x1xf32>
    %273 = vector.broadcast %272 : vector<16x1xf32> to vector<16x256xf32>
    %274 = arith.addf %271, %273 : vector<16x256xf32>
    %cst_191 = arith.constant 0.000000e+00 : f32
    %275 = vector.broadcast %cst_191 : f32 to vector<16x256xf32>
    %276 = arith.cmpf oge, %274, %275 : vector<16x256xf32>
    %cst_192 = arith.constant 0.00999999977 : f32
    %277 = vector.broadcast %cst_192 : f32 to vector<16x256xf32>
    %278 = arith.mulf %277, %274 : vector<16x256xf32>
    %279 = arith.select %276, %274, %278 : vector<16x256xi1>, vector<16x256xf32>
    %280 = vector.extract_strided_slice %279 {offsets = [0, 0], sizes = [4, 256], strides = [1, 1]} : vector<16x256xf32> to vector<4x256xf32>
    %c8_193 = arith.constant 8 : index
    %c0_194 = arith.constant 0 : index
    %281 = vector.load %arg18[%c8_193, %c0_194] : memref<16x256xf32, #tpu.memory_space<vmem>>, vector<4x256xf32>
    tpu.vector_store %arg18[%c8_193, %c0_194], %280 {strides = array<i32>} : memref<16x256xf32, #tpu.memory_space<vmem>>, vector<4x256xf32>,
    %282 = vector.extract_strided_slice %279 {offsets = [4, 0], sizes = [12, 256], strides = [1, 1]} : vector<16x256xf32> to vector<12x256xf32>
    %283 = arith.truncf %282 : vector<12x256xf32> to vector<12x256xbf16>
    %c0_195 = arith.constant 0 : index
    %c128_196 = arith.constant 128 : index
    %284 = vector.load %arg17[%c0_195, %c128_196] : memref<16x512xbf16, #tpu.memory_space<vmem>>, vector<12x256xbf16>
    tpu.vector_store %arg17[%c0_195, %c128_196], %283 {strides = array<i32>} : memref<16x512xbf16, #tpu.memory_space<vmem>>, vector<12x256xbf16>,
    %c0_197 = arith.constant 0 : index
    %c111_198 = arith.constant 111 : index
    %285 = vector.load %arg17[%c0_197, %c111_198] : memref<16x512xbf16, #tpu.memory_space<vmem>>, vector<12x256xbf16>
    %cst_199 = arith.constant 0.000000e+00 : f32
    %286 = arith.truncf %cst_199 : f32 to bf16
    %287 = vector.shape_cast %22 : vector<1x256xi1> to vector<1x256xi1>
    %288 = vector.broadcast %287 : vector<1x256xi1> to vector<12x256xi1>
    %289 = vector.broadcast %286 : bf16 to vector<12x256xbf16>
    %290 = arith.select %288, %285, %289 : vector<12x256xi1>, vector<12x256xbf16>
    %c0_200 = arith.constant 0 : index
    %c0_201 = arith.constant 0 : index
    %c0_202 = arith.constant 0 : index
    %291 = vector.load %arg8[%c0_200, %c0_201, %c0_202] : memref<9x4x12xbf16, #tpu.memory_space<vmem>>, vector<1x4x12xbf16>
    %292 = vector.shape_cast %291 : vector<1x4x12xbf16> to vector<4x12xbf16>
    %cst_203 = arith.constant dense<0.000000e+00> : vector<4x256xf32>
    %293 = tpu.matmul %292, %290, %cst_203 {dimension_numbers = #tpu.dot_dimension_numbers<[1], [0], [0], [1], [0, 0, 1, 1], [], []>} : vector<4x12xbf16>, vector<12x256xbf16>, vector<4x256xf32> -> vector<4x256xf32>
    %c0_204 = arith.constant 0 : index
    %c112_205 = arith.constant 112 : index
    %294 = vector.load %arg17[%c0_204, %c112_205] : memref<16x512xbf16, #tpu.memory_space<vmem>>, vector<12x256xbf16>
    %c1_206 = arith.constant 1 : index
    %c0_207 = arith.constant 0 : index
    %c0_208 = arith.constant 0 : index
    %295 = vector.load %arg8[%c1_206, %c0_207, %c0_208] : memref<9x4x12xbf16, #tpu.memory_space<vmem>>, vector<1x4x12xbf16>
    %296 = vector.shape_cast %295 : vector<1x4x12xbf16> to vector<4x12xbf16>
    %cst_209 = arith.constant dense<0.000000e+00> : vector<4x256xf32>
    %297 = tpu.matmul %296, %294, %cst_209 {dimension_numbers = #tpu.dot_dimension_numbers<[1], [0], [0], [1], [0, 0, 1, 1], [], []>} : vector<4x12xbf16>, vector<12x256xbf16>, vector<4x256xf32> -> vector<4x256xf32>
    %298 = arith.addf %293, %297 : vector<4x256xf32>
    %c0_210 = arith.constant 0 : index
    %c113_211 = arith.constant 113 : index
    %299 = vector.load %arg17[%c0_210, %c113_211] : memref<16x512xbf16, #tpu.memory_space<vmem>>, vector<12x256xbf16>
    %cst_212 = arith.constant 0.000000e+00 : f32
    %300 = arith.truncf %cst_212 : f32 to bf16
    %301 = vector.shape_cast %24 : vector<1x256xi1> to vector<1x256xi1>
    %302 = vector.broadcast %301 : vector<1x256xi1> to vector<12x256xi1>
    %303 = vector.broadcast %300 : bf16 to vector<12x256xbf16>
    %304 = arith.select %302, %299, %303 : vector<12x256xi1>, vector<12x256xbf16>
    %c2_213 = arith.constant 2 : index
    %c0_214 = arith.constant 0 : index
    %c0_215 = arith.constant 0 : index
    %305 = vector.load %arg8[%c2_213, %c0_214, %c0_215] : memref<9x4x12xbf16, #tpu.memory_space<vmem>>, vector<1x4x12xbf16>
    %306 = vector.shape_cast %305 : vector<1x4x12xbf16> to vector<4x12xbf16>
    %cst_216 = arith.constant dense<0.000000e+00> : vector<4x256xf32>
    %307 = tpu.matmul %306, %304, %cst_216 {dimension_numbers = #tpu.dot_dimension_numbers<[1], [0], [0], [1], [0, 0, 1, 1], [], []>} : vector<4x12xbf16>, vector<12x256xbf16>, vector<4x256xf32> -> vector<4x256xf32>
    %308 = arith.addf %298, %307 : vector<4x256xf32>
    %c0_217 = arith.constant 0 : index
    %c127_218 = arith.constant 127 : index
    %309 = vector.load %arg17[%c0_217, %c127_218] : memref<16x512xbf16, #tpu.memory_space<vmem>>, vector<12x256xbf16>
    %cst_219 = arith.constant 0.000000e+00 : f32
    %310 = arith.truncf %cst_219 : f32 to bf16
    %311 = vector.shape_cast %22 : vector<1x256xi1> to vector<1x256xi1>
    %312 = vector.broadcast %311 : vector<1x256xi1> to vector<12x256xi1>
    %313 = vector.broadcast %310 : bf16 to vector<12x256xbf16>
    %314 = arith.select %312, %309, %313 : vector<12x256xi1>, vector<12x256xbf16>
    %c3_220 = arith.constant 3 : index
    %c0_221 = arith.constant 0 : index
    %c0_222 = arith.constant 0 : index
    %315 = vector.load %arg8[%c3_220, %c0_221, %c0_222] : memref<9x4x12xbf16, #tpu.memory_space<vmem>>, vector<1x4x12xbf16>
    %316 = vector.shape_cast %315 : vector<1x4x12xbf16> to vector<4x12xbf16>
    %cst_223 = arith.constant dense<0.000000e+00> : vector<4x256xf32>
    %317 = tpu.matmul %316, %314, %cst_223 {dimension_numbers = #tpu.dot_dimension_numbers<[1], [0], [0], [1], [0, 0, 1, 1], [], []>} : vector<4x12xbf16>, vector<12x256xbf16>, vector<4x256xf32> -> vector<4x256xf32>
    %318 = arith.addf %308, %317 : vector<4x256xf32>
    %c0_224 = arith.constant 0 : index
    %c128_225 = arith.constant 128 : index
    %319 = vector.load %arg17[%c0_224, %c128_225] : memref<16x512xbf16, #tpu.memory_space<vmem>>, vector<12x256xbf16>
    %c4_226 = arith.constant 4 : index
    %c0_227 = arith.constant 0 : index
    %c0_228 = arith.constant 0 : index
    %320 = vector.load %arg8[%c4_226, %c0_227, %c0_228] : memref<9x4x12xbf16, #tpu.memory_space<vmem>>, vector<1x4x12xbf16>
    %321 = vector.shape_cast %320 : vector<1x4x12xbf16> to vector<4x12xbf16>
    %cst_229 = arith.constant dense<0.000000e+00> : vector<4x256xf32>
    %322 = tpu.matmul %321, %319, %cst_229 {dimension_numbers = #tpu.dot_dimension_numbers<[1], [0], [0], [1], [0, 0, 1, 1], [], []>} : vector<4x12xbf16>, vector<12x256xbf16>, vector<4x256xf32> -> vector<4x256xf32>
    %323 = arith.addf %318, %322 : vector<4x256xf32>
    %c0_230 = arith.constant 0 : index
    %c129_231 = arith.constant 129 : index
    %324 = vector.load %arg17[%c0_230, %c129_231] : memref<16x512xbf16, #tpu.memory_space<vmem>>, vector<12x256xbf16>
    %cst_232 = arith.constant 0.000000e+00 : f32
    %325 = arith.truncf %cst_232 : f32 to bf16
    %326 = vector.shape_cast %24 : vector<1x256xi1> to vector<1x256xi1>
    %327 = vector.broadcast %326 : vector<1x256xi1> to vector<12x256xi1>
    %328 = vector.broadcast %325 : bf16 to vector<12x256xbf16>
    %329 = arith.select %327, %324, %328 : vector<12x256xi1>, vector<12x256xbf16>
    %c5_233 = arith.constant 5 : index
    %c0_234 = arith.constant 0 : index
    %c0_235 = arith.constant 0 : index
    %330 = vector.load %arg8[%c5_233, %c0_234, %c0_235] : memref<9x4x12xbf16, #tpu.memory_space<vmem>>, vector<1x4x12xbf16>
    %331 = vector.shape_cast %330 : vector<1x4x12xbf16> to vector<4x12xbf16>
    %cst_236 = arith.constant dense<0.000000e+00> : vector<4x256xf32>
    %332 = tpu.matmul %331, %329, %cst_236 {dimension_numbers = #tpu.dot_dimension_numbers<[1], [0], [0], [1], [0, 0, 1, 1], [], []>} : vector<4x12xbf16>, vector<12x256xbf16>, vector<4x256xf32> -> vector<4x256xf32>
    %333 = arith.addf %323, %332 : vector<4x256xf32>
    %c0_237 = arith.constant 0 : index
    %c143_238 = arith.constant 143 : index
    %334 = vector.load %arg17[%c0_237, %c143_238] : memref<16x512xbf16, #tpu.memory_space<vmem>>, vector<12x256xbf16>
    %cst_239 = arith.constant 0.000000e+00 : f32
    %335 = arith.truncf %cst_239 : f32 to bf16
    %336 = vector.shape_cast %22 : vector<1x256xi1> to vector<1x256xi1>
    %337 = vector.broadcast %336 : vector<1x256xi1> to vector<12x256xi1>
    %338 = vector.broadcast %335 : bf16 to vector<12x256xbf16>
    %339 = arith.select %337, %334, %338 : vector<12x256xi1>, vector<12x256xbf16>
    %c6_240 = arith.constant 6 : index
    %c0_241 = arith.constant 0 : index
    %c0_242 = arith.constant 0 : index
    %340 = vector.load %arg8[%c6_240, %c0_241, %c0_242] : memref<9x4x12xbf16, #tpu.memory_space<vmem>>, vector<1x4x12xbf16>
    %341 = vector.shape_cast %340 : vector<1x4x12xbf16> to vector<4x12xbf16>
    %cst_243 = arith.constant dense<0.000000e+00> : vector<4x256xf32>
    %342 = tpu.matmul %341, %339, %cst_243 {dimension_numbers = #tpu.dot_dimension_numbers<[1], [0], [0], [1], [0, 0, 1, 1], [], []>} : vector<4x12xbf16>, vector<12x256xbf16>, vector<4x256xf32> -> vector<4x256xf32>
    %343 = arith.addf %333, %342 : vector<4x256xf32>
    %c0_244 = arith.constant 0 : index
    %c144_245 = arith.constant 144 : index
    %344 = vector.load %arg17[%c0_244, %c144_245] : memref<16x512xbf16, #tpu.memory_space<vmem>>, vector<12x256xbf16>
    %c7_246 = arith.constant 7 : index
    %c0_247 = arith.constant 0 : index
    %c0_248 = arith.constant 0 : index
    %345 = vector.load %arg8[%c7_246, %c0_247, %c0_248] : memref<9x4x12xbf16, #tpu.memory_space<vmem>>, vector<1x4x12xbf16>
    %346 = vector.shape_cast %345 : vector<1x4x12xbf16> to vector<4x12xbf16>
    %cst_249 = arith.constant dense<0.000000e+00> : vector<4x256xf32>
    %347 = tpu.matmul %346, %344, %cst_249 {dimension_numbers = #tpu.dot_dimension_numbers<[1], [0], [0], [1], [0, 0, 1, 1], [], []>} : vector<4x12xbf16>, vector<12x256xbf16>, vector<4x256xf32> -> vector<4x256xf32>
    %348 = arith.addf %343, %347 : vector<4x256xf32>
    %c0_250 = arith.constant 0 : index
    %c145_251 = arith.constant 145 : index
    %349 = vector.load %arg17[%c0_250, %c145_251] : memref<16x512xbf16, #tpu.memory_space<vmem>>, vector<12x256xbf16>
    %cst_252 = arith.constant 0.000000e+00 : f32
    %350 = arith.truncf %cst_252 : f32 to bf16
    %351 = vector.shape_cast %24 : vector<1x256xi1> to vector<1x256xi1>
    %352 = vector.broadcast %351 : vector<1x256xi1> to vector<12x256xi1>
    %353 = vector.broadcast %350 : bf16 to vector<12x256xbf16>
    %354 = arith.select %352, %349, %353 : vector<12x256xi1>, vector<12x256xbf16>
    %c8_253 = arith.constant 8 : index
    %c0_254 = arith.constant 0 : index
    %c0_255 = arith.constant 0 : index
    %355 = vector.load %arg8[%c8_253, %c0_254, %c0_255] : memref<9x4x12xbf16, #tpu.memory_space<vmem>>, vector<1x4x12xbf16>
    %356 = vector.shape_cast %355 : vector<1x4x12xbf16> to vector<4x12xbf16>
    %cst_256 = arith.constant dense<0.000000e+00> : vector<4x256xf32>
    %357 = tpu.matmul %356, %354, %cst_256 {dimension_numbers = #tpu.dot_dimension_numbers<[1], [0], [0], [1], [0, 0, 1, 1], [], []>} : vector<4x12xbf16>, vector<12x256xbf16>, vector<4x256xf32> -> vector<4x256xf32>
    %358 = arith.addf %348, %357 : vector<4x256xf32>
    %c0_257 = arith.constant 0 : index
    %c0_258 = arith.constant 0 : index
    %359 = vector.load %arg9[%c0_257, %c0_258] : memref<4x1xf32, #tpu.memory_space<vmem>>, vector<4x1xf32>
    %360 = vector.broadcast %359 : vector<4x1xf32> to vector<4x256xf32>
    %361 = arith.addf %358, %360 : vector<4x256xf32>
    %c12 = arith.constant 12 : index
    %c0_259 = arith.constant 0 : index
    %362 = vector.load %arg18[%c12, %c0_259] : memref<16x256xf32, #tpu.memory_space<vmem>>, vector<4x256xf32>
    tpu.vector_store %arg18[%c12, %c0_259], %361 {strides = array<i32>} : memref<16x256xf32, #tpu.memory_space<vmem>>, vector<4x256xf32>,
    %c0_260 = arith.constant 0 : index
    %c0_261 = arith.constant 0 : index
    %363 = vector.load %arg18[%c0_260, %c0_261] : memref<16x256xf32, #tpu.memory_space<vmem>>, vector<16x256xf32>
    %cst_262 = arith.constant dense<0.000000e+00> : vector<16xf32>
    %364 = vector.multi_reduction <add>, %363, %cst_262 [1] : vector<16x256xf32> to vector<16xf32>
    %365 = vector.shape_cast %364 : vector<16xf32> to vector<16x1xf32>
    %cst_263 = arith.constant 3.906250e-03 : f32
    %366 = vector.broadcast %cst_263 : f32 to vector<16x1xf32>
    %367 = arith.mulf %365, %366 : vector<16x1xf32>
    %368 = vector.broadcast %367 : vector<16x1xf32> to vector<16x256xf32>
    %369 = arith.subf %363, %368 : vector<16x256xf32>
    %370 = arith.mulf %369, %369 : vector<16x256xf32>
    %cst_264 = arith.constant dense<0.000000e+00> : vector<16xf32>
    %371 = vector.multi_reduction <add>, %370, %cst_264 [1] : vector<16x256xf32> to vector<16xf32>
    %372 = vector.shape_cast %371 : vector<16xf32> to vector<16x1xf32>
    %cst_265 = arith.constant 3.906250e-03 : f32
    %373 = vector.broadcast %cst_265 : f32 to vector<16x1xf32>
    %374 = arith.mulf %372, %373 : vector<16x1xf32>
    %375 = math.sqrt %374 : vector<16x1xf32>
    %376 = arith.addf %375, %367 : vector<16x1xf32>
    %c0_266 = arith.constant 0 : index
    %c0_267 = arith.constant 0 : index
    %377 = vector.load %arg10[%c0_266, %c0_267] : memref<16x1xf32, #tpu.memory_space<vmem>>, vector<16x1xf32>
    %378 = arith.mulf %377, %376 : vector<16x1xf32>
    %cst_268 = arith.constant dense<0.000000e+00> : vector<1xf32>
    %379 = vector.multi_reduction <add>, %378, %cst_268 [0] : vector<16x1xf32> to vector<1xf32>
    %380 = vector.shape_cast %379 : vector<1xf32> to vector<1x1xf32>
    %c0_269 = arith.constant 0 : index
    %c0_270 = arith.constant 0 : index
    %381 = vector.load %arg11[%c0_269, %c0_270] : memref<1x1xf32, #tpu.memory_space<vmem>>, vector<1x1xf32>
    %382 = arith.addf %380, %381 : vector<1x1xf32>
    %cst_271 = arith.constant 0.000000e+00 : f32
    %383 = vector.broadcast %cst_271 : f32 to vector<1x1xf32>
    %384 = arith.maximumf %382, %383 : vector<1x1xf32>
    %c0_272 = arith.constant 0 : index
    %c0_273 = arith.constant 0 : index
    %385 = vector.load %arg12[%c0_272, %c0_273] : memref<16x1xf32, #tpu.memory_space<vmem>>, vector<16x1xf32>
    %386 = vector.broadcast %384 : vector<1x1xf32> to vector<16x1xf32>
    %387 = arith.mulf %385, %386 : vector<16x1xf32>
    %cst_274 = arith.constant dense<0.000000e+00> : vector<16xf32>
    %388 = vector.multi_reduction <add>, %387, %cst_274 [1] : vector<16x1xf32> to vector<16xf32>
    %389 = vector.shape_cast %388 : vector<16xf32> to vector<16x1xf32>
    %c0_275 = arith.constant 0 : index
    %c0_276 = arith.constant 0 : index
    %390 = vector.load %arg13[%c0_275, %c0_276] : memref<16x1xf32, #tpu.memory_space<vmem>>, vector<16x1xf32>
    %391 = arith.addf %389, %390 : vector<16x1xf32>
    %392 = arith.negf %391 : vector<16x1xf32>
    %393 = math.exp %392 : vector<16x1xf32>
    %cst_277 = arith.constant 1.000000e+00 : f32
    %394 = vector.broadcast %cst_277 : f32 to vector<16x1xf32>
    %395 = arith.addf %394, %393 : vector<16x1xf32>
    %396 = arith.divf %394, %395 : vector<16x1xf32>
    %397 = vector.broadcast %396 : vector<16x1xf32> to vector<16x256xf32>
    %398 = arith.mulf %363, %397 : vector<16x256xf32>
    %c0_278 = arith.constant 0 : index
    %c0_279 = arith.constant 0 : index
    %399 = vector.load %arg14[%c0_278, %c0_279] : memref<16x16xbf16, #tpu.memory_space<vmem>>, vector<16x16xbf16>
    %400 = arith.truncf %398 : vector<16x256xf32> to vector<16x256xbf16>
    %cst_280 = arith.constant dense<0.000000e+00> : vector<16x256xf32>
    %401 = tpu.matmul %399, %400, %cst_280 {dimension_numbers = #tpu.dot_dimension_numbers<[1], [0], [0], [1], [0, 0, 1, 1], [], []>} : vector<16x16xbf16>, vector<16x256xbf16>, vector<16x256xf32> -> vector<16x256xf32>
    %c0_281 = arith.constant 0 : index
    %c0_282 = arith.constant 0 : index
    %402 = vector.load %arg15[%c0_281, %c0_282] : memref<16x1xf32, #tpu.memory_space<vmem>>, vector<16x1xf32>
    %403 = vector.broadcast %402 : vector<16x1xf32> to vector<16x256xf32>
    %404 = arith.addf %401, %403 : vector<16x256xf32>
    %c0_283 = arith.constant 0 : index
    %c0_284 = arith.constant 0 : index
    %c0_285 = arith.constant 0 : index
    %405 = vector.load %arg1[%c0_283, %c0_284, %c0_285] : memref<1x16x256xf32, #tpu.memory_space<vmem>>, vector<1x16x256xf32>
    %406 = vector.shape_cast %405 : vector<1x16x256xf32> to vector<16x256xf32>
    %407 = arith.addf %404, %406 : vector<16x256xf32>
    %c0_286 = arith.constant 0 : index
    %c0_287 = arith.constant 0 : index
    %c0_288 = arith.constant 0 : index
    %408 = vector.load %arg16[%c0_286, %c0_287, %c0_288] : memref<1x16x256xf32, #tpu.memory_space<vmem>>, vector<1x16x256xf32>
    %409 = vector.shape_cast %408 : vector<1x16x256xf32> to vector<16x256xf32>
    %410 = vector.shape_cast %407 : vector<16x256xf32> to vector<1x16x256xf32>
    tpu.vector_store %arg16[%c0_286, %c0_287, %c0_288], %410 {strides = array<i32>} : memref<1x16x256xf32, #tpu.memory_space<vmem>>, vector<1x16x256xf32>,
    return
  }
  func.func @transform_0(%arg0: i32) -> (i32, i32, i32) {
    %c0_i32 = arith.constant 0 : i32
    %c0_i32_0 = arith.constant 0 : i32
    %c0_i32_1 = arith.constant 0 : i32
    return %arg0, %c0_i32, %c0_i32_0 : i32, i32, i32
  }
  func.func @transform_1(%arg0: i32) -> (i32, i32, i32) {
    %c0_i32 = arith.constant 0 : i32
    %c0_i32_0 = arith.constant 0 : i32
    %c0_i32_1 = arith.constant 0 : i32
    %c0_i32_2 = arith.constant 0 : i32
    return %c0_i32, %c0_i32_0, %c0_i32_1 : i32, i32, i32
  }
  func.func @transform_2(%arg0: i32) -> (i32, i32) {
    %c0_i32 = arith.constant 0 : i32
    %c0_i32_0 = arith.constant 0 : i32
    %c0_i32_1 = arith.constant 0 : i32
    return %c0_i32, %c0_i32_0 : i32, i32
  }
  func.func @transform_3(%arg0: i32) -> (i32, i32, i32) {
    %c0_i32 = arith.constant 0 : i32
    %c0_i32_0 = arith.constant 0 : i32
    %c0_i32_1 = arith.constant 0 : i32
    %c0_i32_2 = arith.constant 0 : i32
    return %c0_i32, %c0_i32_0, %c0_i32_1 : i32, i32, i32
  }
  func.func @transform_4(%arg0: i32) -> (i32, i32) {
    %c0_i32 = arith.constant 0 : i32
    %c0_i32_0 = arith.constant 0 : i32
    %c0_i32_1 = arith.constant 0 : i32
    return %c0_i32, %c0_i32_0 : i32, i32
  }
  func.func @transform_5(%arg0: i32) -> (i32, i32, i32) {
    %c0_i32 = arith.constant 0 : i32
    %c0_i32_0 = arith.constant 0 : i32
    %c0_i32_1 = arith.constant 0 : i32
    %c0_i32_2 = arith.constant 0 : i32
    return %c0_i32, %c0_i32_0, %c0_i32_1 : i32, i32, i32
  }
  func.func @transform_6(%arg0: i32) -> (i32, i32) {
    %c0_i32 = arith.constant 0 : i32
    %c0_i32_0 = arith.constant 0 : i32
    %c0_i32_1 = arith.constant 0 : i32
    return %c0_i32, %c0_i32_0 : i32, i32
  }
  func.func @transform_7(%arg0: i32) -> (i32, i32, i32) {
    %c0_i32 = arith.constant 0 : i32
    %c0_i32_0 = arith.constant 0 : i32
    %c0_i32_1 = arith.constant 0 : i32
    %c0_i32_2 = arith.constant 0 : i32
    return %c0_i32, %c0_i32_0, %c0_i32_1 : i32, i32, i32
  }
  func.func @transform_8(%arg0: i32) -> (i32, i32) {
    %c0_i32 = arith.constant 0 : i32
    %c0_i32_0 = arith.constant 0 : i32
    %c0_i32_1 = arith.constant 0 : i32
    return %c0_i32, %c0_i32_0 : i32, i32
  }
  func.func @transform_9(%arg0: i32) -> (i32, i32) {
    %c0_i32 = arith.constant 0 : i32
    %c0_i32_0 = arith.constant 0 : i32
    %c0_i32_1 = arith.constant 0 : i32
    return %c0_i32, %c0_i32_0 : i32, i32
  }
  func.func @transform_10(%arg0: i32) -> (i32, i32) {
    %c0_i32 = arith.constant 0 : i32
    %c0_i32_0 = arith.constant 0 : i32
    %c0_i32_1 = arith.constant 0 : i32
    return %c0_i32, %c0_i32_0 : i32, i32
  }
  func.func @transform_11(%arg0: i32) -> (i32, i32) {
    %c0_i32 = arith.constant 0 : i32
    %c0_i32_0 = arith.constant 0 : i32
    %c0_i32_1 = arith.constant 0 : i32
    return %c0_i32, %c0_i32_0 : i32, i32
  }
  func.func @transform_12(%arg0: i32) -> (i32, i32) {
    %c0_i32 = arith.constant 0 : i32
    %c0_i32_0 = arith.constant 0 : i32
    %c0_i32_1 = arith.constant 0 : i32
    return %c0_i32, %c0_i32_0 : i32, i32
  }
  func.func @transform_13(%arg0: i32) -> (i32, i32) {
    %c0_i32 = arith.constant 0 : i32
    %c0_i32_0 = arith.constant 0 : i32
    %c0_i32_1 = arith.constant 0 : i32
    return %c0_i32, %c0_i32_0 : i32, i32
  }
  func.func @transform_14(%arg0: i32) -> (i32, i32) {
    %c0_i32 = arith.constant 0 : i32
    %c0_i32_0 = arith.constant 0 : i32
    %c0_i32_1 = arith.constant 0 : i32
    return %c0_i32, %c0_i32_0 : i32, i32
  }
  func.func @transform_15(%arg0: i32) -> (i32, i32, i32) {
    %c0_i32 = arith.constant 0 : i32
    %c0_i32_0 = arith.constant 0 : i32
    %c0_i32_1 = arith.constant 0 : i32
    return %arg0, %c0_i32, %c0_i32_0 : i32, i32, i32
  }
}

</mosaic_0001>

<llo_original>
// kernel: imdb_forward.1
$region0: #{imdb_forward.1}
  #allocation0 [shape = 'u32[]', space=smem, size = 0x4, offset = 0x4, fixed_abs, tag = 'smem constant byte address 0x4 - core index']
  #allocation1 [shape = 'u32[144,128]{1,0:T(1,128)}', space=vmem, size = 0x12000, scoped, tag = 'internal scratch']
  #allocation2 [shape = 'bf16[16,512]{1,0:T(16,128)(2,1)}', space=vmem, size = 0x4000, scoped, tag = 'scratch operand']
  #allocation3 [shape = 'f32[16,256]{1,0:T(8,128)}', space=vmem, size = 0x4000, scoped, tag = 'scratch operand']
  #allocation4 [shape = 'f32[1,1]{1,0:T(1,128)S(1)}', space=vmem, size = 0x200, scoped, tag = 'scoped memory for imdb_forward.1']
  %s0 = inlined_call_operand.vmem [shape: f32[2,16,256], index: 0, kind: input, shape index: {}]
  %s1 = inlined_call_operand.vmem [shape: bf16[9,16,16], index: 1, kind: input, shape index: {}]
  %s2 = inlined_call_operand.vmem [shape: f32[16,1], index: 2, kind: input, shape index: {}]
  %s3 = inlined_call_operand.vmem [shape: bf16[9,16,12], index: 3, kind: input, shape index: {}]
  %s4 = inlined_call_operand.vmem [shape: f32[16,1], index: 4, kind: input, shape index: {}]
  %s5 = inlined_call_operand.vmem [shape: bf16[9,16,12], index: 5, kind: input, shape index: {}]
  %s6 = inlined_call_operand.vmem [shape: f32[16,1], index: 6, kind: input, shape index: {}]
  %s7 = inlined_call_operand.vmem [shape: bf16[9,4,12], index: 7, kind: input, shape index: {}]
  %s8 = inlined_call_operand.vmem [shape: f32[4,1], index: 8, kind: input, shape index: {}]
  %s9 = inlined_call_operand.vmem [shape: f32[16,1], index: 9, kind: input, shape index: {}]
  %s10 = inlined_call_operand.<no memory space> [shape: f32[1,1], index: 10, kind: input, shape index: {}]
  %s11 = inlined_call_operand.vmem [shape: f32[16,1], index: 11, kind: input, shape index: {}]
  %s12 = inlined_call_operand.vmem [shape: f32[16,1], index: 12, kind: input, shape index: {}]
  %s13 = inlined_call_operand.vmem [shape: bf16[16,16], index: 13, kind: input, shape index: {}]
  %s14 = inlined_call_operand.vmem [shape: f32[16,1], index: 14, kind: input, shape index: {}]
  %s15 = inlined_call_operand.vmem [shape: f32[2,16,256], index: 15, kind: output, shape index: {}]
  %s16 = sld [smem:[#allocation0]]
  $region93: #{imdb_forward.1} parent=0
    _
  %s18 = ssub.s32 1, %s16
  %s19 = scalar_select 0, %s18, %s16
  %v20 = vstv %s10
  %21 = vst [vmem:[#allocation4] sm:$0x1] %v20
  loop: start=0, step=1, limit=4
  $region2: #{imdb_forward.1} parent=0 // loop_pre_header
    _
  $region3: #{imdb_forward.1} parent=0 // loop_header
    %s23 = sphi 0, %s27
    %p24 = scmp.ge.s32.totalorder %s23, 4
    %s33 = sphi 0, %s35
    %s36 = sphi 0, %s33
    %s37 = sphi 0, %s36
    %s53 = sphi 0, %s37
    %s57 = sphi 0, %s57
    %s59 = sphi 0, %s57
    %s60 = sphi 0, %s59
    %s74 = sphi 0, %s60
    %s78 = sphi 0, %s78
    %s80 = sphi 0, %s78
    %s81 = sphi 0, %s80
    %s95 = sphi 0, %s81
    %s99 = sphi 0, %s99
    %s101 = sphi 0, %s99
    %s102 = sphi 0, %s101
    %s116 = sphi 0, %s102
    %s120 = sphi 0, %s120
    %s122 = sphi 0, %s120
    %s123 = sphi 0, %s122
    %s137 = sphi 0, %s123
    %s141 = sphi 0, %s141
    %s143 = sphi 0, %s141
    %s144 = sphi 0, %s143
    %s158 = sphi 0, %s144
    %s162 = sphi 0, %s162
    %s164 = sphi 0, %s162
    %s165 = sphi 0, %s164
    %s179 = sphi 0, %s165
    %s183 = sphi 0, %s183
    %s185 = sphi 0, %s183
    %s186 = sphi 0, %s185
    %s200 = sphi 0, %s186
    %s204 = sphi 0, %s204
    %s206 = sphi 0, %s204
    %s207 = sphi 0, %s206
    %s221 = sphi 0, %s207
    %s225 = sphi 0, %s225
    %s227 = sphi 0, %s225
    %s228 = sphi 0, %s227
    %s242 = sphi 0, %s228
    %s246 = sphi 0, %s246
    %s248 = sphi 0, %s246
    %s249 = sphi 0, %s248
    %s263 = sphi 0, %s249
    %s267 = sphi 0, %s267
    %s269 = sphi 0, %s267
    %s270 = sphi 0, %s269
    %s284 = sphi 0, %s270
    %s288 = sphi 0, %s288
    %s290 = sphi 0, %s288
    %s291 = sphi 0, %s290
    %s305 = sphi 0, %s291
    %s309 = sphi 0, %s309
    %s311 = sphi 0, %s309
    %s312 = sphi 0, %s311
    %s326 = sphi 0, %s312
    %s330 = sphi 0, %s330
    %s332 = sphi 0, %s330
    %s333 = sphi 0, %s332
    %s347 = sphi 0, %s333
    %s353 = sphi 0, %s355
    %s356 = sphi 0, %s353
    %s357 = sphi 0, %s356
    %s373 = sphi 0, %s357
  $region4: #{imdb_forward.1} parent=0 // loop_header_branch
    %26 = sbr.rel (%p24) target = $region8
  $region5: #{imdb_forward.1} parent=0 // loop_body
    %s28 = ssub.s32 %s23, 1
    %s29 = ssub.s32 %s23, 2
    %s30 = sadd.s32 %s23, 1
    %s31 = ssub.s32 %s23, %s30
    %p32 = scmp.eq.s32.totalorder %s31, 0
    %s34 = sadd.s32 %s33, 1
    %s35 = scalar_select %p32, %s33, %s34
    %p38 = pneg %p32
    %p39 = scmp.eq.s32.totalorder %s23, 1
    %p40 = por %p38, %p39
    %p41 = scmp.ne.s32.totalorder %s33, %s36
    %p42 = scmp.eq.s32.totalorder %s23, 0
    %p43 = por %p41, %p42
    %p44 = scmp.ne.s32.totalorder %s33, %s36
    %p45 = scmp.eq.s32.totalorder %s28, 1
    %p46 = por %p44, %p45
    %p47 = scmp.ne.s32.totalorder %s36, %s37
    %p48 = scmp.eq.s32.totalorder %s28, 0
    %p49 = por %p47, %p48
    %p50 = scmp.ne.s32.totalorder %s36, %s37
    %p51 = scmp.eq.s32.totalorder %s29, 1
    %p52 = por %p50, %p51
    %p54 = scmp.ne.s32.totalorder %s37, %s53
    %p55 = scmp.eq.s32.totalorder %s29, 0
    %p56 = por %p54, %p55
    %s58 = sadd.s32 %s57, 1
    %p61 = scmp.eq.s32.totalorder %s23, 1
    %p62 = scmp.ne.s32.totalorder %s57, %s59
    %p63 = scmp.eq.s32.totalorder %s23, 0
    %p64 = por %p62, %p63
    %p65 = scmp.ne.s32.totalorder %s57, %s59
    %p66 = scmp.eq.s32.totalorder %s28, 1
    %p67 = por %p65, %p66
    %p68 = scmp.ne.s32.totalorder %s59, %s60
    %p69 = scmp.eq.s32.totalorder %s28, 0
    %p70 = por %p68, %p69
    %p71 = scmp.ne.s32.totalorder %s59, %s60
    %p72 = scmp.eq.s32.totalorder %s29, 1
    %p73 = por %p71, %p72
    %p75 = scmp.ne.s32.totalorder %s60, %s74
    %p76 = scmp.eq.s32.totalorder %s29, 0
    %p77 = por %p75, %p76
    %s79 = sadd.s32 %s78, 1
    %p82 = scmp.eq.s32.totalorder %s23, 1
    %p83 = scmp.ne.s32.totalorder %s78, %s80
    %p84 = scmp.eq.s32.totalorder %s23, 0
    %p85 = por %p83, %p84
    %p86 = scmp.ne.s32.totalorder %s78, %s80
    %p87 = scmp.eq.s32.totalorder %s28, 1
    %p88 = por %p86, %p87
    %p89 = scmp.ne.s32.totalorder %s80, %s81
    %p90 = scmp.eq.s32.totalorder %s28, 0
    %p91 = por %p89, %p90
    %p92 = scmp.ne.s32.totalorder %s80, %s81
    %p93 = scmp.eq.s32.totalorder %s29, 1
    %p94 = por %p92, %p93
    %p96 = scmp.ne.s32.totalorder %s81, %s95
    %p97 = scmp.eq.s32.totalorder %s29, 0
    %p98 = por %p96, %p97
    %s100 = sadd.s32 %s99, 1
    %p103 = scmp.eq.s32.totalorder %s23, 1
    %p104 = scmp.ne.s32.totalorder %s99, %s101
    %p105 = scmp.eq.s32.totalorder %s23, 0
    %p106 = por %p104, %p105
    %p107 = scmp.ne.s32.totalorder %s99, %s101
    %p108 = scmp.eq.s32.totalorder %s28, 1
    %p109 = por %p107, %p108
    %p110 = scmp.ne.s32.totalorder %s101, %s102
    %p111 = scmp.eq.s32.totalorder %s28, 0
    %p112 = por %p110, %p111
    %p113 = scmp.ne.s32.totalorder %s101, %s102
    %p114 = scmp.eq.s32.totalorder %s29, 1
    %p115 = por %p113, %p114
    %p117 = scmp.ne.s32.totalorder %s102, %s116
    %p118 = scmp.eq.s32.totalorder %s29, 0
    %p119 = por %p117, %p118
    %s121 = sadd.s32 %s120, 1
    %p124 = scmp.eq.s32.totalorder %s23, 1
    %p125 = scmp.ne.s32.totalorder %s120, %s122
    %p126 = scmp.eq.s32.totalorder %s23, 0
    %p127 = por %p125, %p126
    %p128 = scmp.ne.s32.totalorder %s120, %s122
    %p129 = scmp.eq.s32.totalorder %s28, 1
    %p130 = por %p128, %p129
    %p131 = scmp.ne.s32.totalorder %s122, %s123
    %p132 = scmp.eq.s32.totalorder %s28, 0
    %p133 = por %p131, %p132
    %p134 = scmp.ne.s32.totalorder %s122, %s123
    %p135 = scmp.eq.s32.totalorder %s29, 1
    %p136 = por %p134, %p135
    %p138 = scmp.ne.s32.totalorder %s123, %s137
    %p139 = scmp.eq.s32.totalorder %s29, 0
    %p140 = por %p138, %p139
    %s142 = sadd.s32 %s141, 1
    %p145 = scmp.eq.s32.totalorder %s23, 1
    %p146 = scmp.ne.s32.totalorder %s141, %s143
    %p147 = scmp.eq.s32.totalorder %s23, 0
    %p148 = por %p146, %p147
    %p149 = scmp.ne.s32.totalorder %s141, %s143
    %p150 = scmp.eq.s32.totalorder %s28, 1
    %p151 = por %p149, %p150
    %p152 = scmp.ne.s32.totalorder %s143, %s144
    %p153 = scmp.eq.s32.totalorder %s28, 0
    %p154 = por %p152, %p153
    %p155 = scmp.ne.s32.totalorder %s143, %s144
    %p156 = scmp.eq.s32.totalorder %s29, 1
    %p157 = por %p155, %p156
    %p159 = scmp.ne.s32.totalorder %s144, %s158
    %p160 = scmp.eq.s32.totalorder %s29, 0
    %p161 = por %p159, %p160
    %s163 = sadd.s32 %s162, 1
    %p166 = scmp.eq.s32.totalorder %s23, 1
    %p167 = scmp.ne.s32.totalorder %s162, %s164
    %p168 = scmp.eq.s32.totalorder %s23, 0
    %p169 = por %p167, %p168
    %p170 = scmp.ne.s32.totalorder %s162, %s164
    %p171 = scmp.eq.s32.totalorder %s28, 1
    %p172 = por %p170, %p171
    %p173 = scmp.ne.s32.totalorder %s164, %s165
    %p174 = scmp.eq.s32.totalorder %s28, 0
    %p175 = por %p173, %p174
    %p176 = scmp.ne.s32.totalorder %s164, %s165
    %p177 = scmp.eq.s32.totalorder %s29, 1
    %p178 = por %p176, %p177
    %p180 = scmp.ne.s32.totalorder %s165, %s179
    %p181 = scmp.eq.s32.totalorder %s29, 0
    %p182 = por %p180, %p181
    %s184 = sadd.s32 %s183, 1
    %p187 = scmp.eq.s32.totalorder %s23, 1
    %p188 = scmp.ne.s32.totalorder %s183, %s185
    %p189 = scmp.eq.s32.totalorder %s23, 0
    %p190 = por %p188, %p189
    %p191 = scmp.ne.s32.totalorder %s183, %s185
    %p192 = scmp.eq.s32.totalorder %s28, 1
    %p193 = por %p191, %p192
    %p194 = scmp.ne.s32.totalorder %s185, %s186
    %p195 = scmp.eq.s32.totalorder %s28, 0
    %p196 = por %p194, %p195
    %p197 = scmp.ne.s32.totalorder %s185, %s186
    %p198 = scmp.eq.s32.totalorder %s29, 1
    %p199 = por %p197, %p198
    %p201 = scmp.ne.s32.totalorder %s186, %s200
    %p202 = scmp.eq.s32.totalorder %s29, 0
    %p203 = por %p201, %p202
    %s205 = sadd.s32 %s204, 1
    %p208 = scmp.eq.s32.totalorder %s23, 1
    %p209 = scmp.ne.s32.totalorder %s204, %s206
    %p210 = scmp.eq.s32.totalorder %s23, 0
    %p211 = por %p209, %p210
    %p212 = scmp.ne.s32.totalorder %s204, %s206
    %p213 = scmp.eq.s32.totalorder %s28, 1
    %p214 = por %p212, %p213
    %p215 = scmp.ne.s32.totalorder %s206, %s207
    %p216 = scmp.eq.s32.totalorder %s28, 0
    %p217 = por %p215, %p216
    %p218 = scmp.ne.s32.totalorder %s206, %s207
    %p219 = scmp.eq.s32.totalorder %s29, 1
    %p220 = por %p218, %p219
    %p222 = scmp.ne.s32.totalorder %s207, %s221
    %p223 = scmp.eq.s32.totalorder %s29, 0
    %p224 = por %p222, %p223
    %s226 = sadd.s32 %s225, 1
    %p229 = scmp.eq.s32.totalorder %s23, 1
    %p230 = scmp.ne.s32.totalorder %s225, %s227
    %p231 = scmp.eq.s32.totalorder %s23, 0
    %p232 = por %p230, %p231
    %p233 = scmp.ne.s32.totalorder %s225, %s227
    %p234 = scmp.eq.s32.totalorder %s28, 1
    %p235 = por %p233, %p234
    %p236 = scmp.ne.s32.totalorder %s227, %s228
    %p237 = scmp.eq.s32.totalorder %s28, 0
    %p238 = por %p236, %p237
    %p239 = scmp.ne.s32.totalorder %s227, %s228
    %p240 = scmp.eq.s32.totalorder %s29, 1
    %p241 = por %p239, %p240
    %p243 = scmp.ne.s32.totalorder %s228, %s242
    %p244 = scmp.eq.s32.totalorder %s29, 0
    %p245 = por %p243, %p244
    %s247 = sadd.s32 %s246, 1
    %p250 = scmp.eq.s32.totalorder %s23, 1
    %p251 = scmp.ne.s32.totalorder %s246, %s248
    %p252 = scmp.eq.s32.totalorder %s23, 0
    %p253 = por %p251, %p252
    %p254 = scmp.ne.s32.totalorder %s246, %s248
    %p255 = scmp.eq.s32.totalorder %s28, 1
    %p256 = por %p254, %p255
    %p257 = scmp.ne.s32.totalorder %s248, %s249
    %p258 = scmp.eq.s32.totalorder %s28, 0
    %p259 = por %p257, %p258
    %p260 = scmp.ne.s32.totalorder %s248, %s249
    %p261 = scmp.eq.s32.totalorder %s29, 1
    %p262 = por %p260, %p261
    %p264 = scmp.ne.s32.totalorder %s249, %s263
    %p265 = scmp.eq.s32.totalorder %s29, 0
    %p266 = por %p264, %p265
    %s268 = sadd.s32 %s267, 1
    %p271 = scmp.eq.s32.totalorder %s23, 1
    %p272 = scmp.ne.s32.totalorder %s267, %s269
    %p273 = scmp.eq.s32.totalorder %s23, 0
    %p274 = por %p272, %p273
    %p275 = scmp.ne.s32.totalorder %s267, %s269
    %p276 = scmp.eq.s32.totalorder %s28, 1
    %p277 = por %p275, %p276
    %p278 = scmp.ne.s32.totalorder %s269, %s270
    %p279 = scmp.eq.s32.totalorder %s28, 0
    %p280 = por %p278, %p279
    %p281 = scmp.ne.s32.totalorder %s269, %s270
    %p282 = scmp.eq.s32.totalorder %s29, 1
    %p283 = por %p281, %p282
    %p285 = scmp.ne.s32.totalorder %s270, %s284
    %p286 = scmp.eq.s32.totalorder %s29, 0
    %p287 = por %p285, %p286
    %s289 = sadd.s32 %s288, 1
    %p292 = scmp.eq.s32.totalorder %s23, 1
    %p293 = scmp.ne.s32.totalorder %s288, %s290
    %p294 = scmp.eq.s32.totalorder %s23, 0
    %p295 = por %p293, %p294
    %p296 = scmp.ne.s32.totalorder %s288, %s290
    %p297 = scmp.eq.s32.totalorder %s28, 1
    %p298 = por %p296, %p297
    %p299 = scmp.ne.s32.totalorder %s290, %s291
    %p300 = scmp.eq.s32.totalorder %s28, 0
    %p301 = por %p299, %p300
    %p302 = scmp.ne.s32.totalorder %s290, %s291
    %p303 = scmp.eq.s32.totalorder %s29, 1
    %p304 = por %p302, %p303
    %p306 = scmp.ne.s32.totalorder %s291, %s305
    %p307 = scmp.eq.s32.totalorder %s29, 0
    %p308 = por %p306, %p307
    %s310 = sadd.s32 %s309, 1
    %p313 = scmp.eq.s32.totalorder %s23, 1
    %p314 = scmp.ne.s32.totalorder %s309, %s311
    %p315 = scmp.eq.s32.totalorder %s23, 0
    %p316 = por %p314, %p315
    %p317 = scmp.ne.s32.totalorder %s309, %s311
    %p318 = scmp.eq.s32.totalorder %s28, 1
    %p319 = por %p317, %p318
    %p320 = scmp.ne.s32.totalorder %s311, %s312
    %p321 = scmp.eq.s32.totalorder %s28, 0
    %p322 = por %p320, %p321
    %p323 = scmp.ne.s32.totalorder %s311, %s312
    %p324 = scmp.eq.s32.totalorder %s29, 1
    %p325 = por %p323, %p324
    %p327 = scmp.ne.s32.totalorder %s312, %s326
    %p328 = scmp.eq.s32.totalorder %s29, 0
    %p329 = por %p327, %p328
    %s331 = sadd.s32 %s330, 1
    %p334 = scmp.eq.s32.totalorder %s23, 1
    %p335 = scmp.ne.s32.totalorder %s330, %s332
    %p336 = scmp.eq.s32.totalorder %s23, 0
    %p337 = por %p335, %p336
    %p338 = scmp.ne.s32.totalorder %s330, %s332
    %p339 = scmp.eq.s32.totalorder %s28, 1
    %p340 = por %p338, %p339
    %p341 = scmp.ne.s32.totalorder %s332, %s333
    %p342 = scmp.eq.s32.totalorder %s28, 0
    %p343 = por %p341, %p342
    %p344 = scmp.ne.s32.totalorder %s332, %s333
    %p345 = scmp.eq.s32.totalorder %s29, 1
    %p346 = por %p344, %p345
    %p348 = scmp.ne.s32.totalorder %s333, %s347
    %p349 = scmp.eq.s32.totalorder %s29, 0
    %p350 = por %p348, %p349
    %s351 = ssub.s32 %s23, %s30
    %p352 = scmp.eq.s32.totalorder %s351, 0
    %s354 = sadd.s32 %s353, 1
    %s355 = scalar_select %p352, %s353, %s354
    %p358 = pneg %p352
    %p359 = scmp.eq.s32.totalorder %s23, 1
    %p360 = por %p358, %p359
    %p361 = scmp.ne.s32.totalorder %s353, %s356
    %p362 = scmp.eq.s32.totalorder %s23, 0
    %p363 = por %p361, %p362
    %p364 = scmp.ne.s32.totalorder %s353, %s356
    %p365 = scmp.eq.s32.totalorder %s28, 1
    %p366 = por %p364, %p365
    %p367 = scmp.ne.s32.totalorder %s356, %s357
    %p368 = scmp.eq.s32.totalorder %s28, 0
    %p369 = por %p367, %p368
    %p370 = scmp.ne.s32.totalorder %s356, %s357
    %p371 = scmp.eq.s32.totalorder %s29, 1
    %p372 = por %p370, %p371
    %p374 = scmp.ne.s32.totalorder %s357, %s373
    %p375 = scmp.eq.s32.totalorder %s29, 0
    %p376 = por %p374, %p375
    %p377 = scmp.le.s32.totalorder 1, %s23
    %p378 = scmp.lt.s32.totalorder %s23, 3
    %p379 = pnand %p377, %p378
    %p380 = pneg %p379
    // Predicated region
    $region9: #{imdb_forward.1} parent=5 // pred_check
      _
    $region10: #{imdb_forward.1} parent=5 // pred_check_branch
      %382 = sbr.rel (%p379) target = $region12
    $region11: #{imdb_forward.1} parent=5 // pred_region
      %s383 = ssub.s32 %s23, 1
      // Predicated region
      $region13: #{imdb_forward.1} parent=11 // pred_check
        %p384 = pneg %p70
      $region14: #{imdb_forward.1} parent=11 // pred_check_branch
        %386 = sbr.rel (%p384) target = $region16
      $region15: #{imdb_forward.1} parent=11 // pred_region
        _
      $region16: #{imdb_forward.1} parent=11 // pred_fallthru
        _
      // Predicated region
      $region17: #{imdb_forward.1} parent=11 // pred_check
        %p387 = pneg %p91
      $region18: #{imdb_forward.1} parent=11 // pred_check_branch
        %389 = sbr.rel (%p387) target = $region20
      $region19: #{imdb_forward.1} parent=11 // pred_region
        _
      $region20: #{imdb_forward.1} parent=11 // pred_fallthru
        _
      // Predicated region
      $region21: #{imdb_forward.1} parent=11 // pred_check
        %p390 = pneg %p112
      $region22: #{imdb_forward.1} parent=11 // pred_check_branch
        %392 = sbr.rel (%p390) target = $region24
      $region23: #{imdb_forward.1} parent=11 // pred_region
        _
      $region24: #{imdb_forward.1} parent=11 // pred_fallthru
        _
      // Predicated region
      $region25: #{imdb_forward.1} parent=11 // pred_check
        %p393 = pneg %p133
      $region26: #{imdb_forward.1} parent=11 // pred_check_branch
        %395 = sbr.rel (%p393) target = $region28
      $region27: #{imdb_forward.1} parent=11 // pred_region
        _
      $region28: #{imdb_forward.1} parent=11 // pred_fallthru
        _
      // Predicated region
      $region29: #{imdb_forward.1} parent=11 // pred_check
        %p396 = pneg %p154
      $region30: #{imdb_forward.1} parent=11 // pred_check_branch
        %398 = sbr.rel (%p396) target = $region32
      $region31: #{imdb_forward.1} parent=11 // pred_region
        _
      $region32: #{imdb_forward.1} parent=11 // pred_fallthru
        _
      // Predicated region
      $region33: #{imdb_forward.1} parent=11 // pred_check
        %p399 = pneg %p175
      $region34: #{imdb_forward.1} parent=11 // pred_check_branch
        %401 = sbr.rel (%p399) target = $region36
      $region35: #{imdb_forward.1} parent=11 // pred_region
        _
      $region36: #{imdb_forward.1} parent=11 // pred_fallthru
        _
      // Predicated region
      $region37: #{imdb_forward.1} parent=11 // pred_check
        %p402 = pneg %p196
      $region38: #{imdb_forward.1} parent=11 // pred_check_branch
        %404 = sbr.rel (%p402) target = $region40
      $region39: #{imdb_forward.1} parent=11 // pred_region
        _
      $region40: #{imdb_forward.1} parent=11 // pred_fallthru
        _
      // Predicated region
      $region41: #{imdb_forward.1} parent=11 // pred_check
        %p405 = pneg %p217
      $region42: #{imdb_forward.1} parent=11 // pred_check_branch
        %407 = sbr.rel (%p405) target = $region44
      $region43: #{imdb_forward.1} parent=11 // pred_region
        _
      $region44: #{imdb_forward.1} parent=11 // pred_fallthru
        _
      // Predicated region
      $region45: #{imdb_forward.1} parent=11 // pred_check
        %p408 = pneg %p238
      $region46: #{imdb_forward.1} parent=11 // pred_check_branch
        %410 = sbr.rel (%p408) target = $region48
      $region47: #{imdb_forward.1} parent=11 // pred_region
        _
      $region48: #{imdb_forward.1} parent=11 // pred_fallthru
        _
      // Predicated region
      $region49: #{imdb_forward.1} parent=11 // pred_check
        %p411 = pneg %p259
      $region50: #{imdb_forward.1} parent=11 // pred_check_branch
        %413 = sbr.rel (%p411) target = $region52
      $region51: #{imdb_forward.1} parent=11 // pred_region
        _
      $region52: #{imdb_forward.1} parent=11 // pred_fallthru
        _
      // Predicated region
      $region53: #{imdb_forward.1} parent=11 // pred_check
        %p414 = pneg %p280
      $region54: #{imdb_forward.1} parent=11 // pred_check_branch
        %416 = sbr.rel (%p414) target = $region56
      $region55: #{imdb_forward.1} parent=11 // pred_region
        _
      $region56: #{imdb_forward.1} parent=11 // pred_fallthru
        _
      // Predicated region
      $region57: #{imdb_forward.1} parent=11 // pred_check
        %p417 = pneg %p301
      $region58: #{imdb_forward.1} parent=11 // pred_check_branch
        %419 = sbr.rel (%p417) target = $region60
      $region59: #{imdb_forward.1} parent=11 // pred_region
        _
      $region60: #{imdb_forward.1} parent=11 // pred_fallthru
        _
      // Predicated region
      $region61: #{imdb_forward.1} parent=11 // pred_check
        %p420 = pneg %p322
      $region62: #{imdb_forward.1} parent=11 // pred_check_branch
        %422 = sbr.rel (%p420) target = $region64
      $region63: #{imdb_forward.1} parent=11 // pred_region
        _
      $region64: #{imdb_forward.1} parent=11 // pred_fallthru
        _
      // Predicated region
      $region65: #{imdb_forward.1} parent=11 // pred_check
        %p423 = pneg %p343
      $region66: #{imdb_forward.1} parent=11 // pred_check_branch
        %425 = sbr.rel (%p423) target = $region68
      $region67: #{imdb_forward.1} parent=11 // pred_region
        _
      $region68: #{imdb_forward.1} parent=11 // pred_fallthru
        _
    $region12: #{imdb_forward.1} parent=5 // pred_fallthru
      _
    %p426 = scmp.lt.s32.totalorder %s23, 2
    // Predicated region
    $region69: #{imdb_forward.1} parent=5 // pred_check
      %p427 = pneg %p426
    $region70: #{imdb_forward.1} parent=5 // pred_check_branch
      %429 = sbr.rel (%p427) target = $region72
    $region71: #{imdb_forward.1} parent=5 // pred_region
      // Predicated region
      $region73: #{imdb_forward.1} parent=71 // pred_check
        %p430 = pneg %p43
      $region74: #{imdb_forward.1} parent=71 // pred_check_branch
        %432 = sbr.rel (%p430) target = $region76
      $region75: #{imdb_forward.1} parent=71 // pred_region
        %p433 = scmp.lt.s32.totalorder %s23, 1
        %s434 = scalar_select %p433, %s23, 1
        %s435 = smul.addr %s434, 4
        %s436 = smul.addr %s435, 8
        %s437 = scalar_lea.vmem %s0, %s436
      $region76: #{imdb_forward.1} parent=71 // pred_fallthru
        _
    $region72: #{imdb_forward.1} parent=5 // pred_fallthru
      _
    %p438 = scmp.le.s32.totalorder 1, %s23
    %p439 = scmp.lt.s32.totalorder %s23, 3
    %p440 = pnand %p438, %p439
    %p441 = pneg %p440
    // Predicated region
    $region77: #{imdb_forward.1} parent=5 // pred_check
      _
    $region78: #{imdb_forward.1} parent=5 // pred_check_branch
      %443 = sbr.rel (%p440) target = $region80
    $region79: #{imdb_forward.1} parent=5 // pred_region
      %s444 = ssub.s32 %s23, 1
      %p445 = scmp.lt.s32.totalorder %s28, 1
      %s446 = scalar_select %p445, %s28, 1
      %s447 = smul.addr %s446, 4
      %s448 = smul.addr %s447, 8
      %s449 = scalar_lea.vmem %s0, %s448
      %p450 = pneg %p49
      %p451 = pneg %p46
      %p452 = pneg %p70
      %p453 = pneg %p67
      %p454 = pneg %p91
      %p455 = pneg %p88
      %p456 = pneg %p112
      %p457 = pneg %p109
      %p458 = pneg %p133
      %p459 = pneg %p130
      %p460 = pneg %p154
      %p461 = pneg %p151
      %p462 = pneg %p175
      %p463 = pneg %p172
      %p464 = pneg %p196
      %p465 = pneg %p193
      %p466 = pneg %p217
      %p467 = pneg %p214
      %p468 = pneg %p238
      %p469 = pneg %p235
      %p470 = pneg %p259
      %p471 = pneg %p256
      %p472 = pneg %p280
      %p473 = pneg %p277
      %p474 = pneg %p301
      %p475 = pneg %p298
      %p476 = pneg %p322
      %p477 = pneg %p319
      %p478 = pneg %p343
      %p479 = pneg %p340
      %p480 = pneg %p369
      %p481 = pneg %p366
      %p482 = scmp.lt.s32.totalorder %s28, 1
      %s483 = scalar_select %p482, %s28, 1
      %s484 = smul.addr %s483, 4
      %s485 = smul.addr %s484, 8
      %s486 = scalar_lea.vmem %s15, %s485
      %p487 = scmp.lt.s32.totalorder %s28, 1
      %s488 = scalar_select %p487, %s28, 1
      %s489 = smul.addr %s488, 4
      %s490 = smul.addr %s489, 8
      %s491 = scalar_lea.vmem %s0, %s490
      %p492 = scmp.lt.s32.totalorder %s28, 1
      %s493 = scalar_select %p492, %s28, 1
      %s494 = smul.addr %s493, 4
      %s495 = smul.addr %s494, 8
      %s496 = scalar_lea.vmem %s15, %s495
      %500 = vst [vmem:[#allocation2] sm:$0xff] 0
      %501 = vst [vmem:[#allocation2 + $0x18] sm:$0xff] 0
      %v502 = vlaneseq
      %v503 = vand.u32 %v502, 127
      %v504 = vadd.s32 %v503, 128
      %vm505 = vcmp.lt.s32.totalorder %v503, 0
      %v506 = vsub.s32 0, %v503
      %v507 = vsel %vm505, %v506, %v503
      %v508 = vshrl.u32 %v507, 4
      %v509 = vand.u32 %v507, 15
      %v510 = vsub.s32 0, %v509
      %v511 = vsel %vm505, %v510, %v509
      %vm512 = vcmp.lt.s32.totalorder %v504, 0
      %v513 = vsub.s32 0, %v504
      %v514 = vsel %vm512, %v513, %v504
      %v515 = vshrl.u32 %v514, 4
      %v516 = vand.u32 %v514, 15
      %v517 = vsub.s32 0, %v516
      %v518 = vsel %vm512, %v517, %v516
      %vm519 = vcmp.ne.s32.totalorder %v511, 0
      %vm520 = vcmp.ne.s32.totalorder %v518, 0
      %vm521 = vcmp.lt.s32.totalorder %v511, 0
      %vm522 = vcmp.lt.s32.totalorder %v518, 0
      %vm523 = vmand %vm521, %vm519
      %vm524 = vmand %vm522, %vm520
      %v525 = vadd.s32 %v511, 16
      %v526 = vadd.s32 %v518, 16
      %v527 = vsel %vm523, %v525, %v511
      %v528 = vsel %vm524, %v526, %v518
      %vm529 = vcmp.ne.s32.totalorder %v527, 0
      %vm530 = vcmp.ne.s32.totalorder %v528, 0
      %vm531 = vcmp.ne.s32.totalorder %v527, 15
      %vm532 = vcmp.ne.s32.totalorder %v528, 15
      %v533 = vld [vmem:[%s491] sm:$0xff]
      %v534 = vld [vmem:[%s491 + $0x8] sm:$0xff]
      %v535 = vld [vmem:[%s491 + $0x10] sm:$0xff]
      %v536 = vld [vmem:[%s491 + $0x18] sm:$0xff]
      %v537 = vpack.c.bf16 %v535, %v533
      %v538 = vpack.c.bf16 %v536, %v534
      %539 = vst [vmem:[#allocation2 + $0x8] sm:$0xff] %v537
      %540 = vst [vmem:[#allocation2 + $0x10] sm:$0xff] %v538
      %v541 = vld [vmem:[#allocation2] sm:$0xff]
      %v542 = vld [vmem:[#allocation2 + $0x8] sm:$0xff]
      %v543 = vld [vmem:[#allocation2 + $0x10] sm:$0xff]
      %v544 = vsel %vm529, 1, 0
      %v545 = vsel %vm530, 1, 0
      %vm546 = vcmp.eq.s32.totalorder %v544, 1
      %vm547 = vcmp.eq.s32.totalorder %v545, 1
      %vm548 = vmpackc.low %vm547, %vm546
      %v549 = vsel %vm548, 65537, 0
      %v550 = vlaneseq
      %v551 = vshrl.u32 %v550, 7
      %v552 = vsub.s32 0, %v551
      %v553 = vrot.slane %v549, %v552
      %v554 = vlaneseq
      %v555 = vshrl.u32 %v554, 7
      %v556 = vsub.s32 4, %v555
      %v557 = vrot.slane %v549, %v556
      %558 = vrot.lane.b32.xlu0 %v553, 111
      %v559 = vpop.permute.xlu0 %558
      %560 = vrot.lane.b32.xlu0 %v557, 111
      %v561 = vpop.permute.xlu0 %560
      %vm562 = vcmask 908288
      %v563 = vsel %vm562, %v559, %v561
      %vm564 = vcmp.ne.s16.totalorder %v559, 0
      %vm565 = vcmp.ne.s16.totalorder %v563, 0
      %vm566 = vcmp.ne.s16.totalorder %v561, 0
      %v567 = vsel %vm564, %v541, 0
      %v568 = vsel %vm565, %v542, 0
      %v569 = vsel %vm566, %v543, 0
      %v570 = vld [vmem:[%s1] sm:$0xf]
      %v571 = vld [vmem:[%s1 + $0x4] sm:$0xf]
      %s572 = scalar_lea.vmem %s1, 8
      %v573 = vld [vmem:[%s572] sm:$0xf]
      %v574 = vld [vmem:[%s572 + $0x4] sm:$0xf]
      %v577 = vunpack.c.l.b16 %v573
      %v578 = vunpack.c.l.b16 %v574
      %v579 = vpack.c.b16 %v578, %v577
      %583 = vrot.lane.b32.xlu0 %v541, 16
      %v584 = vpop.permute.xlu0 %583
      %585 = vrot.lane.b32.xlu0 %v542, 16
      %v586 = vpop.permute.xlu0 %585
      %587 = vrot.lane.b32.xlu0 %v543, 16
      %v588 = vpop.permute.xlu0 %587
      %vm589 = vcmask 130048
      %v590 = vsel %vm589, %v584, %v586
      %v591 = vsel %vm589, %v586, %v588
      %vm594 = vcmask 130048
      %v596 = vsel %vm594, %v579, 0
      %598 = vmatprep.subr.bf16.mxu0 %v591
      %599 = vmatpush1.bf16.msra.mxu0 %v590
      %600 = vmatprep.subr.bf16.mxu0 0
      %601 = vmatpush1.bf16.msra.mxu0 0
      %602 = vmatprep.subr.bf16.mxu0 0
      %603 = vmatpush1.bf16.msra.mxu0 0
      %604 = vmatprep.subr.bf16.mxu0 0
      %605 = vmatpush1.bf16.msra.mxu0 0
      %606 = vmatprep.subr.bf16.mxu0 0
      %607 = vmatpush1.bf16.msra.mxu0 0
      %608 = vmatprep.subr.bf16.mxu0 0
      %609 = vmatpush1.bf16.msra.mxu0 0
      %610 = vmatprep.subr.bf16.mxu0 0
      %611 = vmatpush1.bf16.msra.mxu0 0
      %612 = vmatprep.subr.bf16.mxu0 0
      %613 = vmatpush1.bf16.msra.mxu0 0
      %614 = vmatprep.subr.bf16.mxu0 0
      %615 = vmatpush1.bf16.msra.mxu0 0
      %616 = vmatprep.subr.bf16.mxu0 0
      %617 = vmatpush1.bf16.msra.mxu0 0
      %618 = vmatprep.subr.bf16.mxu0 0
      %619 = vmatpush1.bf16.msra.mxu0 0
      %620 = vmatprep.subr.bf16.mxu0 0
      %621 = vmatpush1.bf16.msra.mxu0 0
      %622 = vmatprep.subr.bf16.mxu0 0
      %623 = vmatpush1.bf16.msra.mxu0 0
      %624 = vmatprep.subr.bf16.mxu0 0
      %625 = vmatpush1.bf16.msra.mxu0 0
      %626 = vmatprep.subr.bf16.mxu0 0
      %627 = vmatpush1.bf16.msra.mxu0 0
      %628 = vmatprep.subr.bf16.mxu0 0
      %629 = vmatpush1.bf16.msra.mxu0 0
      %630 = vmatprep.mubr.bf16.mxu0 0
      %631 = vmatmul.mubr.bf16.gmra.mrb[0].mxu0 %v596
      %v632 = vpop.f32.mrb[0].mxu0
      %v633 = vadd.f32 0.0, %v632
      %v634 = vpop.f32.mrb[0].mxu0
      %v635 = vadd.f32 0.0, %v634
      %v636 = vpop.f32.mrb[0].mxu0
      %v637 = vadd.f32 0.0, %v636
      %v638 = vpop.f32.mrb[0].mxu0
      %v639 = vadd.f32 0.0, %v638
      %640 = vdwg.mxu0
      %v643 = vunpack.c.l.b16 %v570
      %v644 = vunpack.c.l.b16 %v571
      %v645 = vpack.c.b16 %v644, %v643
      %649 = vrot.lane.b32.xlu0 %v567, 17
      %v650 = vpop.permute.xlu0 %649
      %651 = vrot.lane.b32.xlu0 %v568, 17
      %v652 = vpop.permute.xlu0 %651
      %653 = vrot.lane.b32.xlu0 %v569, 17
      %v654 = vpop.permute.xlu0 %653
      %vm655 = vcmask 138240
      %v656 = vsel %vm655, %v650, %v652
      %v657 = vsel %vm655, %v652, %v654
      %v661 = vsel %vm594, %v645, 0
      %663 = vmatprep.subr.bf16.mxu0 %v657
      %664 = vmatpush1.bf16.msra.mxu0 %v656
      %665 = vmatprep.subr.bf16.mxu0 0
      %666 = vmatpush1.bf16.msra.mxu0 0
      %667 = vmatprep.subr.bf16.mxu0 0
      %668 = vmatpush1.bf16.msra.mxu0 0
      %669 = vmatprep.subr.bf16.mxu0 0
      %670 = vmatpush1.bf16.msra.mxu0 0
      %671 = vmatprep.subr.bf16.mxu0 0
      %672 = vmatpush1.bf16.msra.mxu0 0
      %673 = vmatprep.subr.bf16.mxu0 0
      %674 = vmatpush1.bf16.msra.mxu0 0
      %675 = vmatprep.subr.bf16.mxu0 0
      %676 = vmatpush1.bf16.msra.mxu0 0
      %677 = vmatprep.subr.bf16.mxu0 0
      %678 = vmatpush1.bf16.msra.mxu0 0
      %679 = vmatprep.subr.bf16.mxu0 0
      %680 = vmatpush1.bf16.msra.mxu0 0
      %681 = vmatprep.subr.bf16.mxu0 0
      %682 = vmatpush1.bf16.msra.mxu0 0
      %683 = vmatprep.subr.bf16.mxu0 0
      %684 = vmatpush1.bf16.msra.mxu0 0
      %685 = vmatprep.subr.bf16.mxu0 0
      %686 = vmatpush1.bf16.msra.mxu0 0
      %687 = vmatprep.subr.bf16.mxu0 0
      %688 = vmatpush1.bf16.msra.mxu0 0
      %689 = vmatprep.subr.bf16.mxu0 0
      %690 = vmatpush1.bf16.msra.mxu0 0
      %691 = vmatprep.subr.bf16.mxu0 0
      %692 = vmatpush1.bf16.msra.mxu0 0
      %693 = vmatprep.subr.bf16.mxu0 0
      %694 = vmatpush1.bf16.msra.mxu0 0
      %695 = vmatprep.mubr.bf16.mxu0 0
      %696 = vmatmul.mubr.bf16.gmra.mrb[0].mxu0 %v661
      %v697 = vpop.f32.mrb[0].mxu0
      %v698 = vadd.f32 %v633, %v697
      %v699 = vpop.f32.mrb[0].mxu0
      %v700 = vadd.f32 %v635, %v699
      %v701 = vpop.f32.mrb[0].mxu0
      %v702 = vadd.f32 %v637, %v701
      %v703 = vpop.f32.mrb[0].mxu0
      %v704 = vadd.f32 %v639, %v703
      %705 = vdwg.mxu0
      %v706 = vsel %vm531, 1, 0
      %v707 = vsel %vm532, 1, 0
      %vm708 = vcmp.eq.s32.totalorder %v706, 1
      %vm709 = vcmp.eq.s32.totalorder %v707, 1
      %vm710 = vmpackc.low %vm709, %vm708
      %v711 = vsel %vm710, 65537, 0
      %v712 = vlaneseq
      %v713 = vshrl.u32 %v712, 7
      %v714 = vsub.s32 0, %v713
      %v715 = vrot.slane %v711, %v714
      %v716 = vlaneseq
      %v717 = vshrl.u32 %v716, 7
      %v718 = vsub.s32 4, %v717
      %v719 = vrot.slane %v711, %v718
      %720 = vrot.lane.b32.xlu0 %v715, 113
      %v721 = vpop.permute.xlu0 %720
      %722 = vrot.lane.b32.xlu0 %v719, 113
      %v723 = vpop.permute.xlu0 %722
      %vm724 = vcmask 924672
      %v725 = vsel %vm724, %v721, %v723
      %vm726 = vcmp.ne.s16.totalorder %v721, 0
      %vm727 = vcmp.ne.s16.totalorder %v725, 0
      %vm728 = vcmp.ne.s16.totalorder %v723, 0
      %v729 = vsel %vm726, %v541, 0
      %v730 = vsel %vm727, %v542, 0
      %v731 = vsel %vm728, %v543, 0
      %s732 = scalar_lea.vmem %s1, 16
      %v733 = vld [vmem:[%s732] sm:$0xf]
      %v734 = vld [vmem:[%s732 + $0x4] sm:$0xf]
      %v737 = vunpack.c.l.b16 %v733
      %v738 = vunpack.c.l.b16 %v734
      %v739 = vpack.c.b16 %v738, %v737
      %743 = vrot.lane.b32.xlu0 %v729, 15
      %v744 = vpop.permute.xlu0 %743
      %745 = vrot.lane.b32.xlu0 %v730, 15
      %v746 = vpop.permute.xlu0 %745
      %747 = vrot.lane.b32.xlu0 %v731, 15
      %v748 = vpop.permute.xlu0 %747
      %vm749 = vcmask 121856
      %v750 = vsel %vm749, %v744, %v746
      %v751 = vsel %vm749, %v746, %v748
      %v755 = vsel %vm594, %v739, 0
      %757 = vmatprep.subr.bf16.mxu0 %v751
      %758 = vmatpush1.bf16.msra.mxu0 %v750
      %759 = vmatprep.subr.bf16.mxu0 0
      %760 = vmatpush1.bf16.msra.mxu0 0
      %761 = vmatprep.subr.bf16.mxu0 0
      %762 = vmatpush1.bf16.msra.mxu0 0
      %763 = vmatprep.subr.bf16.mxu0 0
      %764 = vmatpush1.bf16.msra.mxu0 0
      %765 = vmatprep.subr.bf16.mxu0 0
      %766 = vmatpush1.bf16.msra.mxu0 0
      %767 = vmatprep.subr.bf16.mxu0 0
      %768 = vmatpush1.bf16.msra.mxu0 0
      %769 = vmatprep.subr.bf16.mxu0 0
      %770 = vmatpush1.bf16.msra.mxu0 0
      %771 = vmatprep.subr.bf16.mxu0 0
      %772 = vmatpush1.bf16.msra.mxu0 0
      %773 = vmatprep.subr.bf16.mxu0 0
      %774 = vmatpush1.bf16.msra.mxu0 0
      %775 = vmatprep.subr.bf16.mxu0 0
      %776 = vmatpush1.bf16.msra.mxu0 0
      %777 = vmatprep.subr.bf16.mxu0 0
      %778 = vmatpush1.bf16.msra.mxu0 0
      %779 = vmatprep.subr.bf16.mxu0 0
      %780 = vmatpush1.bf16.msra.mxu0 0
      %781 = vmatprep.subr.bf16.mxu0 0
      %782 = vmatpush1.bf16.msra.mxu0 0
      %783 = vmatprep.subr.bf16.mxu0 0
      %784 = vmatpush1.bf16.msra.mxu0 0
      %785 = vmatprep.subr.bf16.mxu0 0
      %786 = vmatpush1.bf16.msra.mxu0 0
      %787 = vmatprep.subr.bf16.mxu0 0
      %788 = vmatpush1.bf16.msra.mxu0 0
      %789 = vmatprep.mubr.bf16.mxu0 0
      %790 = vmatmul.mubr.bf16.gmra.mrb[0].mxu0 %v755
      %v791 = vpop.f32.mrb[0].mxu0
      %v792 = vadd.f32 0.0, %v791
      %v793 = vpop.f32.mrb[0].mxu0
      %v794 = vadd.f32 0.0, %v793
      %v795 = vpop.f32.mrb[0].mxu0
      %v796 = vadd.f32 0.0, %v795
      %v797 = vpop.f32.mrb[0].mxu0
      %v798 = vadd.f32 0.0, %v797
      %799 = vdwg.mxu0
      %v800 = vadd.f32 %v698, %v792
      %v801 = vadd.f32 %v700, %v794
      %v802 = vadd.f32 %v702, %v796
      %v803 = vadd.f32 %v704, %v798
      %804 = vrot.lane.b32.xlu0 %v553, 127
      %v805 = vpop.permute.xlu0 %804
      %806 = vrot.lane.b32.xlu0 %v557, 127
      %v807 = vpop.permute.xlu0 %806
      %vm808 = vcmask 1039360
      %v809 = vsel %vm808, %v805, %v807
      %vm810 = vcmp.ne.s16.totalorder %v805, 0
      %vm811 = vcmp.ne.s16.totalorder %v809, 0
      %vm812 = vcmp.ne.s16.totalorder %v807, 0
      %v813 = vsel %vm810, %v541, 0
      %v814 = vsel %vm811, %v542, 0
      %v815 = vsel %vm812, %v543, 0
      %s816 = scalar_lea.vmem %s1, 24
      %v817 = vld [vmem:[%s816] sm:$0xf]
      %v818 = vld [vmem:[%s816 + $0x4] sm:$0xf]
      %v821 = vunpack.c.l.b16 %v817
      %v822 = vunpack.c.l.b16 %v818
      %v823 = vpack.c.b16 %v822, %v821
      %827 = vrot.lane.b32.xlu0 %v813, 1
      %v828 = vpop.permute.xlu0 %827
      %829 = vrot.lane.b32.xlu0 %v814, 1
      %v830 = vpop.permute.xlu0 %829
      %831 = vrot.lane.b32.xlu0 %v815, 1
      %v832 = vpop.permute.xlu0 %831
      %vm833 = vcmask 7168
      %v834 = vsel %vm833, %v828, %v830
      %v835 = vsel %vm833, %v830, %v832
      %v839 = vsel %vm594, %v823, 0
      %841 = vmatprep.subr.bf16.mxu0 %v835
      %842 = vmatpush1.bf16.msra.mxu0 %v834
      %843 = vmatprep.subr.bf16.mxu0 0
      %844 = vmatpush1.bf16.msra.mxu0 0
      %845 = vmatprep.subr.bf16.mxu0 0
      %846 = vmatpush1.bf16.msra.mxu0 0
      %847 = vmatprep.subr.bf16.mxu0 0
      %848 = vmatpush1.bf16.msra.mxu0 0
      %849 = vmatprep.subr.bf16.mxu0 0
      %850 = vmatpush1.bf16.msra.mxu0 0
      %851 = vmatprep.subr.bf16.mxu0 0
      %852 = vmatpush1.bf16.msra.mxu0 0
      %853 = vmatprep.subr.bf16.mxu0 0
      %854 = vmatpush1.bf16.msra.mxu0 0
      %855 = vmatprep.subr.bf16.mxu0 0
      %856 = vmatpush1.bf16.msra.mxu0 0
      %857 = vmatprep.subr.bf16.mxu0 0
      %858 = vmatpush1.bf16.msra.mxu0 0
      %859 = vmatprep.subr.bf16.mxu0 0
      %860 = vmatpush1.bf16.msra.mxu0 0
      %861 = vmatprep.subr.bf16.mxu0 0
      %862 = vmatpush1.bf16.msra.mxu0 0
      %863 = vmatprep.subr.bf16.mxu0 0
      %864 = vmatpush1.bf16.msra.mxu0 0
      %865 = vmatprep.subr.bf16.mxu0 0
      %866 = vmatpush1.bf16.msra.mxu0 0
      %867 = vmatprep.subr.bf16.mxu0 0
      %868 = vmatpush1.bf16.msra.mxu0 0
      %869 = vmatprep.subr.bf16.mxu0 0
      %870 = vmatpush1.bf16.msra.mxu0 0
      %871 = vmatprep.subr.bf16.mxu0 0
      %872 = vmatpush1.bf16.msra.mxu0 0
      %873 = vmatprep.mubr.bf16.mxu0 0
      %874 = vmatmul.mubr.bf16.gmra.mrb[0].mxu0 %v839
      %v875 = vpop.f32.mrb[0].mxu0
      %v876 = vadd.f32 0.0, %v875
      %v877 = vpop.f32.mrb[0].mxu0
      %v878 = vadd.f32 0.0, %v877
      %v879 = vpop.f32.mrb[0].mxu0
      %v880 = vadd.f32 0.0, %v879
      %v881 = vpop.f32.mrb[0].mxu0
      %v882 = vadd.f32 0.0, %v881
      %883 = vdwg.mxu0
      %v884 = vadd.f32 %v800, %v876
      %v885 = vadd.f32 %v801, %v878
      %v886 = vadd.f32 %v802, %v880
      %v887 = vadd.f32 %v803, %v882
      %s888 = scalar_lea.vmem %s1, 32
      %v889 = vld [vmem:[%s888] sm:$0xf]
      %v890 = vld [vmem:[%s888 + $0x4] sm:$0xf]
      %v893 = vunpack.c.l.b16 %v889
      %v894 = vunpack.c.l.b16 %v890
      %v895 = vpack.c.b16 %v894, %v893
      %v897 = vsel %vm594, %v895, 0
      %899 = vmatprep.subr.bf16.mxu0 %v543
      %900 = vmatpush1.bf16.msra.mxu0 %v542
      %901 = vmatprep.subr.bf16.mxu0 0
      %902 = vmatpush1.bf16.msra.mxu0 0
      %903 = vmatprep.subr.bf16.mxu0 0
      %904 = vmatpush1.bf16.msra.mxu0 0
      %905 = vmatprep.subr.bf16.mxu0 0
      %906 = vmatpush1.bf16.msra.mxu0 0
      %907 = vmatprep.subr.bf16.mxu0 0
      %908 = vmatpush1.bf16.msra.mxu0 0
      %909 = vmatprep.subr.bf16.mxu0 0
      %910 = vmatpush1.bf16.msra.mxu0 0
      %911 = vmatprep.subr.bf16.mxu0 0
      %912 = vmatpush1.bf16.msra.mxu0 0
      %913 = vmatprep.subr.bf16.mxu0 0
      %914 = vmatpush1.bf16.msra.mxu0 0
      %915 = vmatprep.subr.bf16.mxu0 0
      %916 = vmatpush1.bf16.msra.mxu0 0
      %917 = vmatprep.subr.bf16.mxu0 0
      %918 = vmatpush1.bf16.msra.mxu0 0
      %919 = vmatprep.subr.bf16.mxu0 0
      %920 = vmatpush1.bf16.msra.mxu0 0
      %921 = vmatprep.subr.bf16.mxu0 0
      %922 = vmatpush1.bf16.msra.mxu0 0
      %923 = vmatprep.subr.bf16.mxu0 0
      %924 = vmatpush1.bf16.msra.mxu0 0
      %925 = vmatprep.subr.bf16.mxu0 0
      %926 = vmatpush1.bf16.msra.mxu0 0
      %927 = vmatprep.subr.bf16.mxu0 0
      %928 = vmatpush1.bf16.msra.mxu0 0
      %929 = vmatprep.subr.bf16.mxu0 0
      %930 = vmatpush1.bf16.msra.mxu0 0
      %931 = vmatprep.mubr.bf16.mxu0 0
      %932 = vmatmul.mubr.bf16.gmra.mrb[0].mxu0 %v897
      %v933 = vpop.f32.mrb[0].mxu0
      %v934 = vadd.f32 0.0, %v933
      %v935 = vpop.f32.mrb[0].mxu0
      %v936 = vadd.f32 0.0, %v935
      %v937 = vpop.f32.mrb[0].mxu0
      %v938 = vadd.f32 0.0, %v937
      %v939 = vpop.f32.mrb[0].mxu0
      %v940 = vadd.f32 0.0, %v939
      %941 = vdwg.mxu0
      %v942 = vadd.f32 %v884, %v934
      %v943 = vadd.f32 %v885, %v936
      %v944 = vadd.f32 %v886, %v938
      %v945 = vadd.f32 %v887, %v940
      %v946 = vld [vmem:[#allocation2 + $0x8] sm:$0xff]
      %v947 = vld [vmem:[#allocation2 + $0x10] sm:$0xff]
      %v948 = vld [vmem:[#allocation2 + $0x18] sm:$0xff]
      %949 = vrot.lane.b32.xlu0 %v715, 1
      %v950 = vpop.permute.xlu0 %949
      %951 = vrot.lane.b32.xlu0 %v719, 1
      %v952 = vpop.permute.xlu0 %951
      %v953 = vsel %vm833, %v950, %v952
      %vm954 = vcmp.ne.s16.totalorder %v950, 0
      %vm955 = vcmp.ne.s16.totalorder %v953, 0
      %vm956 = vcmp.ne.s16.totalorder %v952, 0
      %v957 = vsel %vm954, %v946, 0
      %v958 = vsel %vm955, %v947, 0
      %v959 = vsel %vm956, %v948, 0
      %s960 = scalar_lea.vmem %s1, 40
      %v961 = vld [vmem:[%s960] sm:$0xf]
      %v962 = vld [vmem:[%s960 + $0x4] sm:$0xf]
      %v965 = vunpack.c.l.b16 %v961
      %v966 = vunpack.c.l.b16 %v962
      %v967 = vpack.c.b16 %v966, %v965
      %971 = vrot.lane.b32.xlu0 %v957, 127
      %v972 = vpop.permute.xlu0 %971
      %973 = vrot.lane.b32.xlu0 %v958, 127
      %v974 = vpop.permute.xlu0 %973
      %975 = vrot.lane.b32.xlu0 %v959, 127
      %v976 = vpop.permute.xlu0 %975
      %v977 = vsel %vm808, %v972, %v974
      %v978 = vsel %vm808, %v974, %v976
      %v982 = vsel %vm594, %v967, 0
      %984 = vmatprep.subr.bf16.mxu0 %v978
      %985 = vmatpush1.bf16.msra.mxu0 %v977
      %986 = vmatprep.subr.bf16.mxu0 0
      %987 = vmatpush1.bf16.msra.mxu0 0
      %988 = vmatprep.subr.bf16.mxu0 0
      %989 = vmatpush1.bf16.msra.mxu0 0
      %990 = vmatprep.subr.bf16.mxu0 0
      %991 = vmatpush1.bf16.msra.mxu0 0
      %992 = vmatprep.subr.bf16.mxu0 0
      %993 = vmatpush1.bf16.msra.mxu0 0
      %994 = vmatprep.subr.bf16.mxu0 0
      %995 = vmatpush1.bf16.msra.mxu0 0
      %996 = vmatprep.subr.bf16.mxu0 0
      %997 = vmatpush1.bf16.msra.mxu0 0
      %998 = vmatprep.subr.bf16.mxu0 0
      %999 = vmatpush1.bf16.msra.mxu0 0
      %1000 = vmatprep.subr.bf16.mxu0 0
      %1001 = vmatpush1.bf16.msra.mxu0 0
      %1002 = vmatprep.subr.bf16.mxu0 0
      %1003 = vmatpush1.bf16.msra.mxu0 0
      %1004 = vmatprep.subr.bf16.mxu0 0
      %1005 = vmatpush1.bf16.msra.mxu0 0
      %1006 = vmatprep.subr.bf16.mxu0 0
      %1007 = vmatpush1.bf16.msra.mxu0 0
      %1008 = vmatprep.subr.bf16.mxu0 0
      %1009 = vmatpush1.bf16.msra.mxu0 0
      %1010 = vmatprep.subr.bf16.mxu0 0
      %1011 = vmatpush1.bf16.msra.mxu0 0
      %1012 = vmatprep.subr.bf16.mxu0 0
      %1013 = vmatpush1.bf16.msra.mxu0 0
      %1014 = vmatprep.subr.bf16.mxu0 0
      %1015 = vmatpush1.bf16.msra.mxu0 0
      %1016 = vmatprep.mubr.bf16.mxu0 0
      %1017 = vmatmul.mubr.bf16.gmra.mrb[0].mxu0 %v982
      %v1018 = vpop.f32.mrb[0].mxu0
      %v1019 = vadd.f32 0.0, %v1018
      %v1020 = vpop.f32.mrb[0].mxu0
      %v1021 = vadd.f32 0.0, %v1020
      %v1022 = vpop.f32.mrb[0].mxu0
      %v1023 = vadd.f32 0.0, %v1022
      %v1024 = vpop.f32.mrb[0].mxu0
      %v1025 = vadd.f32 0.0, %v1024
      %1026 = vdwg.mxu0
      %v1027 = vadd.f32 %v942, %v1019
      %v1028 = vadd.f32 %v943, %v1021
      %v1029 = vadd.f32 %v944, %v1023
      %v1030 = vadd.f32 %v945, %v1025
      %1031 = vrot.lane.b32.xlu0 %v553, 15
      %v1032 = vpop.permute.xlu0 %1031
      %1033 = vrot.lane.b32.xlu0 %v557, 15
      %v1034 = vpop.permute.xlu0 %1033
      %v1035 = vsel %vm749, %v1032, %v1034
      %vm1036 = vcmp.ne.s16.totalorder %v1032, 0
      %vm1037 = vcmp.ne.s16.totalorder %v1035, 0
      %vm1038 = vcmp.ne.s16.totalorder %v1034, 0
      %v1039 = vsel %vm1036, %v946, 0
      %v1040 = vsel %vm1037, %v947, 0
      %v1041 = vsel %vm1038, %v948, 0
      %s1042 = scalar_lea.vmem %s1, 48
      %v1043 = vld [vmem:[%s1042] sm:$0xf]
      %v1044 = vld [vmem:[%s1042 + $0x4] sm:$0xf]
      %v1047 = vunpack.c.l.b16 %v1043
      %v1048 = vunpack.c.l.b16 %v1044
      %v1049 = vpack.c.b16 %v1048, %v1047
      %1053 = vrot.lane.b32.xlu0 %v1039, 113
      %v1054 = vpop.permute.xlu0 %1053
      %1055 = vrot.lane.b32.xlu0 %v1040, 113
      %v1056 = vpop.permute.xlu0 %1055
      %1057 = vrot.lane.b32.xlu0 %v1041, 113
      %v1058 = vpop.permute.xlu0 %1057
      %v1059 = vsel %vm724, %v1054, %v1056
      %v1060 = vsel %vm724, %v1056, %v1058
      %v1064 = vsel %vm594, %v1049, 0
      %1066 = vmatprep.subr.bf16.mxu0 %v1060
      %1067 = vmatpush1.bf16.msra.mxu0 %v1059
      %1068 = vmatprep.subr.bf16.mxu0 0
      %1069 = vmatpush1.bf16.msra.mxu0 0
      %1070 = vmatprep.subr.bf16.mxu0 0
      %1071 = vmatpush1.bf16.msra.mxu0 0
      %1072 = vmatprep.subr.bf16.mxu0 0
      %1073 = vmatpush1.bf16.msra.mxu0 0
      %1074 = vmatprep.subr.bf16.mxu0 0
      %1075 = vmatpush1.bf16.msra.mxu0 0
      %1076 = vmatprep.subr.bf16.mxu0 0
      %1077 = vmatpush1.bf16.msra.mxu0 0
      %1078 = vmatprep.subr.bf16.mxu0 0
      %1079 = vmatpush1.bf16.msra.mxu0 0
      %1080 = vmatprep.subr.bf16.mxu0 0
      %1081 = vmatpush1.bf16.msra.mxu0 0
      %1082 = vmatprep.subr.bf16.mxu0 0
      %1083 = vmatpush1.bf16.msra.mxu0 0
      %1084 = vmatprep.subr.bf16.mxu0 0
      %1085 = vmatpush1.bf16.msra.mxu0 0
      %1086 = vmatprep.subr.bf16.mxu0 0
      %1087 = vmatpush1.bf16.msra.mxu0 0
      %1088 = vmatprep.subr.bf16.mxu0 0
      %1089 = vmatpush1.bf16.msra.mxu0 0
      %1090 = vmatprep.subr.bf16.mxu0 0
      %1091 = vmatpush1.bf16.msra.mxu0 0
      %1092 = vmatprep.subr.bf16.mxu0 0
      %1093 = vmatpush1.bf16.msra.mxu0 0
      %1094 = vmatprep.subr.bf16.mxu0 0
      %1095 = vmatpush1.bf16.msra.mxu0 0
      %1096 = vmatprep.subr.bf16.mxu0 0
      %1097 = vmatpush1.bf16.msra.mxu0 0
      %1098 = vmatprep.mubr.bf16.mxu0 0
      %1099 = vmatmul.mubr.bf16.gmra.mrb[0].mxu0 %v1064
      %v1100 = vpop.f32.mrb[0].mxu0
      %v1101 = vadd.f32 0.0, %v1100
      %v1102 = vpop.f32.mrb[0].mxu0
      %v1103 = vadd.f32 0.0, %v1102
      %v1104 = vpop.f32.mrb[0].mxu0
      %v1105 = vadd.f32 0.0, %v1104
      %v1106 = vpop.f32.mrb[0].mxu0
      %v1107 = vadd.f32 0.0, %v1106
      %1108 = vdwg.mxu0
      %v1109 = vadd.f32 %v1027, %v1101
      %v1110 = vadd.f32 %v1028, %v1103
      %v1111 = vadd.f32 %v1029, %v1105
      %v1112 = vadd.f32 %v1030, %v1107
      %s1113 = scalar_lea.vmem %s1, 56
      %v1114 = vld [vmem:[%s1113] sm:$0xf]
      %v1115 = vld [vmem:[%s1113 + $0x4] sm:$0xf]
      %v1118 = vunpack.c.l.b16 %v1114
      %v1119 = vunpack.c.l.b16 %v1115
      %v1120 = vpack.c.b16 %v1119, %v1118
      %1124 = vrot.lane.b32.xlu0 %v946, 112
      %v1125 = vpop.permute.xlu0 %1124
      %1126 = vrot.lane.b32.xlu0 %v947, 112
      %v1127 = vpop.permute.xlu0 %1126
      %1128 = vrot.lane.b32.xlu0 %v948, 112
      %v1129 = vpop.permute.xlu0 %1128
      %vm1130 = vcmask 916480
      %v1131 = vsel %vm1130, %v1125, %v1127
      %v1132 = vsel %vm1130, %v1127, %v1129
      %v1136 = vsel %vm594, %v1120, 0
      %1138 = vmatprep.subr.bf16.mxu0 %v1132
      %1139 = vmatpush1.bf16.msra.mxu0 %v1131
      %1140 = vmatprep.subr.bf16.mxu0 0
      %1141 = vmatpush1.bf16.msra.mxu0 0
      %1142 = vmatprep.subr.bf16.mxu0 0
      %1143 = vmatpush1.bf16.msra.mxu0 0
      %1144 = vmatprep.subr.bf16.mxu0 0
      %1145 = vmatpush1.bf16.msra.mxu0 0
      %1146 = vmatprep.subr.bf16.mxu0 0
      %1147 = vmatpush1.bf16.msra.mxu0 0
      %1148 = vmatprep.subr.bf16.mxu0 0
      %1149 = vmatpush1.bf16.msra.mxu0 0
      %1150 = vmatprep.subr.bf16.mxu0 0
      %1151 = vmatpush1.bf16.msra.mxu0 0
      %1152 = vmatprep.subr.bf16.mxu0 0
      %1153 = vmatpush1.bf16.msra.mxu0 0
      %1154 = vmatprep.subr.bf16.mxu0 0
      %1155 = vmatpush1.bf16.msra.mxu0 0
      %1156 = vmatprep.subr.bf16.mxu0 0
      %1157 = vmatpush1.bf16.msra.mxu0 0
      %1158 = vmatprep.subr.bf16.mxu0 0
      %1159 = vmatpush1.bf16.msra.mxu0 0
      %1160 = vmatprep.subr.bf16.mxu0 0
      %1161 = vmatpush1.bf16.msra.mxu0 0
      %1162 = vmatprep.subr.bf16.mxu0 0
      %1163 = vmatpush1.bf16.msra.mxu0 0
      %1164 = vmatprep.subr.bf16.mxu0 0
      %1165 = vmatpush1.bf16.msra.mxu0 0
      %1166 = vmatprep.subr.bf16.mxu0 0
      %1167 = vmatpush1.bf16.msra.mxu0 0
      %1168 = vmatprep.subr.bf16.mxu0 0
      %1169 = vmatpush1.bf16.msra.mxu0 0
      %1170 = vmatprep.mubr.bf16.mxu0 0
      %1171 = vmatmul.mubr.bf16.gmra.mrb[0].mxu0 %v1136
      %v1172 = vpop.f32.mrb[0].mxu0
      %v1173 = vadd.f32 0.0, %v1172
      %v1174 = vpop.f32.mrb[0].mxu0
      %v1175 = vadd.f32 0.0, %v1174
      %v1176 = vpop.f32.mrb[0].mxu0
      %v1177 = vadd.f32 0.0, %v1176
      %v1178 = vpop.f32.mrb[0].mxu0
      %v1179 = vadd.f32 0.0, %v1178
      %1180 = vdwg.mxu0
      %v1181 = vadd.f32 %v1109, %v1173
      %v1182 = vadd.f32 %v1110, %v1175
      %v1183 = vadd.f32 %v1111, %v1177
      %v1184 = vadd.f32 %v1112, %v1179
      %1185 = vrot.lane.b32.xlu0 %v715, 17
      %v1186 = vpop.permute.xlu0 %1185
      %1187 = vrot.lane.b32.xlu0 %v719, 17
      %v1188 = vpop.permute.xlu0 %1187
      %v1189 = vsel %vm655, %v1186, %v1188
      %vm1190 = vcmp.ne.s16.totalorder %v1186, 0
      %vm1191 = vcmp.ne.s16.totalorder %v1189, 0
      %vm1192 = vcmp.ne.s16.totalorder %v1188, 0
      %v1193 = vsel %vm1190, %v946, 0
      %v1194 = vsel %vm1191, %v947, 0
      %v1195 = vsel %vm1192, %v948, 0
      %s1196 = scalar_lea.vmem %s1, 64
      %v1197 = vld [vmem:[%s1196] sm:$0xf]
      %v1198 = vld [vmem:[%s1196 + $0x4] sm:$0xf]
      %v1201 = vunpack.c.l.b16 %v1197
      %v1202 = vunpack.c.l.b16 %v1198
      %v1203 = vpack.c.b16 %v1202, %v1201
      %1207 = vrot.lane.b32.xlu0 %v1193, 111
      %v1208 = vpop.permute.xlu0 %1207
      %1209 = vrot.lane.b32.xlu0 %v1194, 111
      %v1210 = vpop.permute.xlu0 %1209
      %1211 = vrot.lane.b32.xlu0 %v1195, 111
      %v1212 = vpop.permute.xlu0 %1211
      %v1213 = vsel %vm562, %v1208, %v1210
      %v1214 = vsel %vm562, %v1210, %v1212
      %v1218 = vsel %vm594, %v1203, 0
      %1220 = vmatprep.subr.bf16.mxu0 %v1214
      %1221 = vmatpush1.bf16.msra.mxu0 %v1213
      %1222 = vmatprep.subr.bf16.mxu0 0
      %1223 = vmatpush1.bf16.msra.mxu0 0
      %1224 = vmatprep.subr.bf16.mxu0 0
      %1225 = vmatpush1.bf16.msra.mxu0 0
      %1226 = vmatprep.subr.bf16.mxu0 0
      %1227 = vmatpush1.bf16.msra.mxu0 0
      %1228 = vmatprep.subr.bf16.mxu0 0
      %1229 = vmatpush1.bf16.msra.mxu0 0
      %1230 = vmatprep.subr.bf16.mxu0 0
      %1231 = vmatpush1.bf16.msra.mxu0 0
      %1232 = vmatprep.subr.bf16.mxu0 0
      %1233 = vmatpush1.bf16.msra.mxu0 0
      %1234 = vmatprep.subr.bf16.mxu0 0
      %1235 = vmatpush1.bf16.msra.mxu0 0
      %1236 = vmatprep.subr.bf16.mxu0 0
      %1237 = vmatpush1.bf16.msra.mxu0 0
      %1238 = vmatprep.subr.bf16.mxu0 0
      %1239 = vmatpush1.bf16.msra.mxu0 0
      %1240 = vmatprep.subr.bf16.mxu0 0
      %1241 = vmatpush1.bf16.msra.mxu0 0
      %1242 = vmatprep.subr.bf16.mxu0 0
      %1243 = vmatpush1.bf16.msra.mxu0 0
      %1244 = vmatprep.subr.bf16.mxu0 0
      %1245 = vmatpush1.bf16.msra.mxu0 0
      %1246 = vmatprep.subr.bf16.mxu0 0
      %1247 = vmatpush1.bf16.msra.mxu0 0
      %1248 = vmatprep.subr.bf16.mxu0 0
      %1249 = vmatpush1.bf16.msra.mxu0 0
      %1250 = vmatprep.subr.bf16.mxu0 0
      %1251 = vmatpush1.bf16.msra.mxu0 0
      %1252 = vmatprep.mubr.bf16.mxu0 0
      %1253 = vmatmul.mubr.bf16.gmra.mrb[0].mxu0 %v1218
      %v1254 = vpop.f32.mrb[0].mxu0
      %v1255 = vadd.f32 0.0, %v1254
      %v1256 = vpop.f32.mrb[0].mxu0
      %v1257 = vadd.f32 0.0, %v1256
      %v1258 = vpop.f32.mrb[0].mxu0
      %v1259 = vadd.f32 0.0, %v1258
      %v1260 = vpop.f32.mrb[0].mxu0
      %v1261 = vadd.f32 0.0, %v1260
      %1262 = vdwg.mxu0
      %v1263 = vadd.f32 %v1181, %v1255
      %v1264 = vadd.f32 %v1182, %v1257
      %v1265 = vadd.f32 %v1183, %v1259
      %v1266 = vadd.f32 %v1184, %v1261
      %v1267 = vld [vmem:[%s2] sm:$0xff]
      %v1268 = vld [vmem:[%s2 + $0x8] sm:$0xff]
      %1270 = vset.pattern.permute.xlu0 0
      %1271 = vperm.xlu0 %1270, %v1267
      %v1272 = vpop.permute.xlu0 %1271
      %1275 = vset.pattern.permute.xlu0 0
      %1276 = vperm.xlu0 %1275, %v1268
      %v1277 = vpop.permute.xlu0 %1276
      %v1279 = vadd.f32 %v1263, %v1272
      %v1280 = vadd.f32 %v1264, %v1272
      %v1281 = vadd.f32 %v1265, %v1277
      %v1282 = vadd.f32 %v1266, %v1277
      %1283 = vst [vmem:[#allocation3] sm:$0xf] %v1279
      %1284 = vst [vmem:[#allocation3 + $0x8] sm:$0xf] %v1280
      %v1285 = vpack.c.bf16 %v1281, %v1279
      %v1286 = vpack.c.bf16 %v1282, %v1280
      %v1289 = vrot.slane %v1285, 2
      %v1290 = vrot.slane %v1286, 2
      %1293 = vst [vmem:[#allocation2 + $0x8] sm:$0x3f] %v1289
      %1294 = vst [vmem:[#allocation2 + $0x10] sm:$0x3f] %v1290
      %v1295 = vld [vmem:[#allocation2] sm:$0x3f]
      %v1296 = vld [vmem:[#allocation2 + $0x8] sm:$0x3f]
      %v1297 = vld [vmem:[#allocation2 + $0x10] sm:$0x3f]
      %v1298 = vsel %vm564, %v1295, 0
      %v1299 = vsel %vm565, %v1296, 0
      %v1300 = vsel %vm566, %v1297, 0
      %v1301 = vld [vmem:[%s3] sm:$0xf]
      %v1302 = vld [vmem:[%s3 + $0x4] sm:$0xf]
      %s1303 = scalar_lea.vmem %s3, 8
      %v1304 = vld [vmem:[%s1303] sm:$0xf]
      %v1305 = vld [vmem:[%s1303 + $0x4] sm:$0xf]
      %v1308 = vunpack.c.l.b16 %v1304
      %v1309 = vunpack.c.l.b16 %v1305
      %v1310 = vpack.c.b16 %v1309, %v1308
      %1314 = vrot.lane.b32.xlu0 %v1295, 16
      %v1315 = vpop.permute.xlu0 %1314
      %1316 = vrot.lane.b32.xlu0 %v1296, 16
      %v1317 = vpop.permute.xlu0 %1316
      %1318 = vrot.lane.b32.xlu0 %v1297, 16
      %v1319 = vpop.permute.xlu0 %1318
      %v1320 = vsel %vm589, %v1315, %v1317
      %v1321 = vsel %vm589, %v1317, %v1319
      %vm1322 = vcmask 97280
      %v1324 = vsel %vm1322, %v1310, 0
      %vm1326 = vcmask 1045504
      %v1328 = vsel %vm1326, %v1320, 0
      %v1331 = vsel %vm1326, %v1321, 0
      %1333 = vmatprep.subr.bf16.mxu0 %v1331
      %1334 = vmatpush1.bf16.msra.mxu0 %v1328
      %1335 = vmatprep.subr.bf16.mxu0 0
      %1336 = vmatpush1.bf16.msra.mxu0 0
      %1337 = vmatprep.subr.bf16.mxu0 0
      %1338 = vmatpush1.bf16.msra.mxu0 0
      %1339 = vmatprep.subr.bf16.mxu0 0
      %1340 = vmatpush1.bf16.msra.mxu0 0
      %1341 = vmatprep.subr.bf16.mxu0 0
      %1342 = vmatpush1.bf16.msra.mxu0 0
      %1343 = vmatprep.subr.bf16.mxu0 0
      %1344 = vmatpush1.bf16.msra.mxu0 0
      %1345 = vmatprep.subr.bf16.mxu0 0
      %1346 = vmatpush1.bf16.msra.mxu0 0
      %1347 = vmatprep.subr.bf16.mxu0 0
      %1348 = vmatpush1.bf16.msra.mxu0 0
      %1349 = vmatprep.subr.bf16.mxu0 0
      %1350 = vmatpush1.bf16.msra.mxu0 0
      %1351 = vmatprep.subr.bf16.mxu0 0
      %1352 = vmatpush1.bf16.msra.mxu0 0
      %1353 = vmatprep.subr.bf16.mxu0 0
      %1354 = vmatpush1.bf16.msra.mxu0 0
      %1355 = vmatprep.subr.bf16.mxu0 0
      %1356 = vmatpush1.bf16.msra.mxu0 0
      %1357 = vmatprep.subr.bf16.mxu0 0
      %1358 = vmatpush1.bf16.msra.mxu0 0
      %1359 = vmatprep.subr.bf16.mxu0 0
      %1360 = vmatpush1.bf16.msra.mxu0 0
      %1361 = vmatprep.subr.bf16.mxu0 0
      %1362 = vmatpush1.bf16.msra.mxu0 0
      %1363 = vmatprep.subr.bf16.mxu0 0
      %1364 = vmatpush1.bf16.msra.mxu0 0
      %1365 = vmatprep.mubr.bf16.mxu0 0
      %1366 = vmatmul.mubr.bf16.gmra.mrb[0].mxu0 %v1324
      %v1367 = vpop.f32.mrb[0].mxu0
      %v1368 = vadd.f32 0.0, %v1367
      %v1369 = vpop.f32.mrb[0].mxu0
      %v1370 = vadd.f32 0.0, %v1369
      %v1371 = vpop.f32.mrb[0].mxu0
      %v1372 = vadd.f32 0.0, %v1371
      %v1373 = vpop.f32.mrb[0].mxu0
      %v1374 = vadd.f32 0.0, %v1373
      %1375 = vdwg.mxu0
      %v1378 = vunpack.c.l.b16 %v1301
      %v1379 = vunpack.c.l.b16 %v1302
      %v1380 = vpack.c.b16 %v1379, %v1378
      %1384 = vrot.lane.b32.xlu0 %v1298, 17
      %v1385 = vpop.permute.xlu0 %1384
      %1386 = vrot.lane.b32.xlu0 %v1299, 17
      %v1387 = vpop.permute.xlu0 %1386
      %1388 = vrot.lane.b32.xlu0 %v1300, 17
      %v1389 = vpop.permute.xlu0 %1388
      %v1390 = vsel %vm655, %v1385, %v1387
      %v1391 = vsel %vm655, %v1387, %v1389
      %v1393 = vsel %vm1322, %v1380, 0
      %v1396 = vsel %vm1326, %v1390, 0
      %v1399 = vsel %vm1326, %v1391, 0
      %1401 = vmatprep.subr.bf16.mxu0 %v1399
      %1402 = vmatpush1.bf16.msra.mxu0 %v1396
      %1403 = vmatprep.subr.bf16.mxu0 0
      %1404 = vmatpush1.bf16.msra.mxu0 0
      %1405 = vmatprep.subr.bf16.mxu0 0
      %1406 = vmatpush1.bf16.msra.mxu0 0
      %1407 = vmatprep.subr.bf16.mxu0 0
      %1408 = vmatpush1.bf16.msra.mxu0 0
      %1409 = vmatprep.subr.bf16.mxu0 0
      %1410 = vmatpush1.bf16.msra.mxu0 0
      %1411 = vmatprep.subr.bf16.mxu0 0
      %1412 = vmatpush1.bf16.msra.mxu0 0
      %1413 = vmatprep.subr.bf16.mxu0 0
      %1414 = vmatpush1.bf16.msra.mxu0 0
      %1415 = vmatprep.subr.bf16.mxu0 0
      %1416 = vmatpush1.bf16.msra.mxu0 0
      %1417 = vmatprep.subr.bf16.mxu0 0
      %1418 = vmatpush1.bf16.msra.mxu0 0
      %1419 = vmatprep.subr.bf16.mxu0 0
      %1420 = vmatpush1.bf16.msra.mxu0 0
      %1421 = vmatprep.subr.bf16.mxu0 0
      %1422 = vmatpush1.bf16.msra.mxu0 0
      %1423 = vmatprep.subr.bf16.mxu0 0
      %1424 = vmatpush1.bf16.msra.mxu0 0
      %1425 = vmatprep.subr.bf16.mxu0 0
      %1426 = vmatpush1.bf16.msra.mxu0 0
      %1427 = vmatprep.subr.bf16.mxu0 0
      %1428 = vmatpush1.bf16.msra.mxu0 0
      %1429 = vmatprep.subr.bf16.mxu0 0
      %1430 = vmatpush1.bf16.msra.mxu0 0
      %1431 = vmatprep.subr.bf16.mxu0 0
      %1432 = vmatpush1.bf16.msra.mxu0 0
      %1433 = vmatprep.mubr.bf16.mxu0 0
      %1434 = vmatmul.mubr.bf16.gmra.mrb[0].mxu0 %v1393
      %v1435 = vpop.f32.mrb[0].mxu0
      %v1436 = vadd.f32 %v1368, %v1435
      %v1437 = vpop.f32.mrb[0].mxu0
      %v1438 = vadd.f32 %v1370, %v1437
      %v1439 = vpop.f32.mrb[0].mxu0
      %v1440 = vadd.f32 %v1372, %v1439
      %v1441 = vpop.f32.mrb[0].mxu0
      %v1442 = vadd.f32 %v1374, %v1441
      %1443 = vdwg.mxu0
      %v1444 = vsel %vm726, %v1295, 0
      %v1445 = vsel %vm727, %v1296, 0
      %v1446 = vsel %vm728, %v1297, 0
      %s1447 = scalar_lea.vmem %s3, 16
      %v1448 = vld [vmem:[%s1447] sm:$0xf]
      %v1449 = vld [vmem:[%s1447 + $0x4] sm:$0xf]
      %v1452 = vunpack.c.l.b16 %v1448
      %v1453 = vunpack.c.l.b16 %v1449
      %v1454 = vpack.c.b16 %v1453, %v1452
      %1458 = vrot.lane.b32.xlu0 %v1444, 15
      %v1459 = vpop.permute.xlu0 %1458
      %1460 = vrot.lane.b32.xlu0 %v1445, 15
      %v1461 = vpop.permute.xlu0 %1460
      %1462 = vrot.lane.b32.xlu0 %v1446, 15
      %v1463 = vpop.permute.xlu0 %1462
      %v1464 = vsel %vm749, %v1459, %v1461
      %v1465 = vsel %vm749, %v1461, %v1463
      %v1467 = vsel %vm1322, %v1454, 0
      %v1470 = vsel %vm1326, %v1464, 0
      %v1473 = vsel %vm1326, %v1465, 0
      %1475 = vmatprep.subr.bf16.mxu0 %v1473
      %1476 = vmatpush1.bf16.msra.mxu0 %v1470
      %1477 = vmatprep.subr.bf16.mxu0 0
      %1478 = vmatpush1.bf16.msra.mxu0 0
      %1479 = vmatprep.subr.bf16.mxu0 0
      %1480 = vmatpush1.bf16.msra.mxu0 0
      %1481 = vmatprep.subr.bf16.mxu0 0
      %1482 = vmatpush1.bf16.msra.mxu0 0
      %1483 = vmatprep.subr.bf16.mxu0 0
      %1484 = vmatpush1.bf16.msra.mxu0 0
      %1485 = vmatprep.subr.bf16.mxu0 0
      %1486 = vmatpush1.bf16.msra.mxu0 0
      %1487 = vmatprep.subr.bf16.mxu0 0
      %1488 = vmatpush1.bf16.msra.mxu0 0
      %1489 = vmatprep.subr.bf16.mxu0 0
      %1490 = vmatpush1.bf16.msra.mxu0 0
      %1491 = vmatprep.subr.bf16.mxu0 0
      %1492 = vmatpush1.bf16.msra.mxu0 0
      %1493 = vmatprep.subr.bf16.mxu0 0
      %1494 = vmatpush1.bf16.msra.mxu0 0
      %1495 = vmatprep.subr.bf16.mxu0 0
      %1496 = vmatpush1.bf16.msra.mxu0 0
      %1497 = vmatprep.subr.bf16.mxu0 0
      %1498 = vmatpush1.bf16.msra.mxu0 0
      %1499 = vmatprep.subr.bf16.mxu0 0
      %1500 = vmatpush1.bf16.msra.mxu0 0
      %1501 = vmatprep.subr.bf16.mxu0 0
      %1502 = vmatpush1.bf16.msra.mxu0 0
      %1503 = vmatprep.subr.bf16.mxu0 0
      %1504 = vmatpush1.bf16.msra.mxu0 0
      %1505 = vmatprep.subr.bf16.mxu0 0
      %1506 = vmatpush1.bf16.msra.mxu0 0
      %1507 = vmatprep.mubr.bf16.mxu0 0
      %1508 = vmatmul.mubr.bf16.gmra.mrb[0].mxu0 %v1467
      %v1509 = vpop.f32.mrb[0].mxu0
      %v1510 = vadd.f32 0.0, %v1509
      %v1511 = vpop.f32.mrb[0].mxu0
      %v1512 = vadd.f32 0.0, %v1511
      %v1513 = vpop.f32.mrb[0].mxu0
      %v1514 = vadd.f32 0.0, %v1513
      %v1515 = vpop.f32.mrb[0].mxu0
      %v1516 = vadd.f32 0.0, %v1515
      %1517 = vdwg.mxu0
      %v1518 = vadd.f32 %v1436, %v1510
      %v1519 = vadd.f32 %v1438, %v1512
      %v1520 = vadd.f32 %v1440, %v1514
      %v1521 = vadd.f32 %v1442, %v1516
      %v1522 = vsel %vm810, %v1295, 0
      %v1523 = vsel %vm811, %v1296, 0
      %v1524 = vsel %vm812, %v1297, 0
      %s1525 = scalar_lea.vmem %s3, 24
      %v1526 = vld [vmem:[%s1525] sm:$0xf]
      %v1527 = vld [vmem:[%s1525 + $0x4] sm:$0xf]
      %v1530 = vunpack.c.l.b16 %v1526
      %v1531 = vunpack.c.l.b16 %v1527
      %v1532 = vpack.c.b16 %v1531, %v1530
      %1536 = vrot.lane.b32.xlu0 %v1522, 1
      %v1537 = vpop.permute.xlu0 %1536
      %1538 = vrot.lane.b32.xlu0 %v1523, 1
      %v1539 = vpop.permute.xlu0 %1538
      %1540 = vrot.lane.b32.xlu0 %v1524, 1
      %v1541 = vpop.permute.xlu0 %1540
      %v1542 = vsel %vm833, %v1537, %v1539
      %v1543 = vsel %vm833, %v1539, %v1541
      %v1545 = vsel %vm1322, %v1532, 0
      %v1548 = vsel %vm1326, %v1542, 0
      %v1551 = vsel %vm1326, %v1543, 0
      %1553 = vmatprep.subr.bf16.mxu0 %v1551
      %1554 = vmatpush1.bf16.msra.mxu0 %v1548
      %1555 = vmatprep.subr.bf16.mxu0 0
      %1556 = vmatpush1.bf16.msra.mxu0 0
      %1557 = vmatprep.subr.bf16.mxu0 0
      %1558 = vmatpush1.bf16.msra.mxu0 0
      %1559 = vmatprep.subr.bf16.mxu0 0
      %1560 = vmatpush1.bf16.msra.mxu0 0
      %1561 = vmatprep.subr.bf16.mxu0 0
      %1562 = vmatpush1.bf16.msra.mxu0 0
      %1563 = vmatprep.subr.bf16.mxu0 0
      %1564 = vmatpush1.bf16.msra.mxu0 0
      %1565 = vmatprep.subr.bf16.mxu0 0
      %1566 = vmatpush1.bf16.msra.mxu0 0
      %1567 = vmatprep.subr.bf16.mxu0 0
      %1568 = vmatpush1.bf16.msra.mxu0 0
      %1569 = vmatprep.subr.bf16.mxu0 0
      %1570 = vmatpush1.bf16.msra.mxu0 0
      %1571 = vmatprep.subr.bf16.mxu0 0
      %1572 = vmatpush1.bf16.msra.mxu0 0
      %1573 = vmatprep.subr.bf16.mxu0 0
      %1574 = vmatpush1.bf16.msra.mxu0 0
      %1575 = vmatprep.subr.bf16.mxu0 0
      %1576 = vmatpush1.bf16.msra.mxu0 0
      %1577 = vmatprep.subr.bf16.mxu0 0
      %1578 = vmatpush1.bf16.msra.mxu0 0
      %1579 = vmatprep.subr.bf16.mxu0 0
      %1580 = vmatpush1.bf16.msra.mxu0 0
      %1581 = vmatprep.subr.bf16.mxu0 0
      %1582 = vmatpush1.bf16.msra.mxu0 0
      %1583 = vmatprep.subr.bf16.mxu0 0
      %1584 = vmatpush1.bf16.msra.mxu0 0
      %1585 = vmatprep.mubr.bf16.mxu0 0
      %1586 = vmatmul.mubr.bf16.gmra.mrb[0].mxu0 %v1545
      %v1587 = vpop.f32.mrb[0].mxu0
      %v1588 = vadd.f32 0.0, %v1587
      %v1589 = vpop.f32.mrb[0].mxu0
      %v1590 = vadd.f32 0.0, %v1589
      %v1591 = vpop.f32.mrb[0].mxu0
      %v1592 = vadd.f32 0.0, %v1591
      %v1593 = vpop.f32.mrb[0].mxu0
      %v1594 = vadd.f32 0.0, %v1593
      %1595 = vdwg.mxu0
      %v1596 = vadd.f32 %v1518, %v1588
      %v1597 = vadd.f32 %v1519, %v1590
      %v1598 = vadd.f32 %v1520, %v1592
      %v1599 = vadd.f32 %v1521, %v1594
      %s1600 = scalar_lea.vmem %s3, 32
      %v1601 = vld [vmem:[%s1600] sm:$0xf]
      %v1602 = vld [vmem:[%s1600 + $0x4] sm:$0xf]
      %v1605 = vunpack.c.l.b16 %v1601
      %v1606 = vunpack.c.l.b16 %v1602
      %v1607 = vpack.c.b16 %v1606, %v1605
      %v1609 = vsel %vm1322, %v1607, 0
      %v1612 = vsel %vm1326, %v1296, 0
      %v1615 = vsel %vm1326, %v1297, 0
      %1617 = vmatprep.subr.bf16.mxu0 %v1615
      %1618 = vmatpush1.bf16.msra.mxu0 %v1612
      %1619 = vmatprep.subr.bf16.mxu0 0
      %1620 = vmatpush1.bf16.msra.mxu0 0
      %1621 = vmatprep.subr.bf16.mxu0 0
      %1622 = vmatpush1.bf16.msra.mxu0 0
      %1623 = vmatprep.subr.bf16.mxu0 0
      %1624 = vmatpush1.bf16.msra.mxu0 0
      %1625 = vmatprep.subr.bf16.mxu0 0
      %1626 = vmatpush1.bf16.msra.mxu0 0
      %1627 = vmatprep.subr.bf16.mxu0 0
      %1628 = vmatpush1.bf16.msra.mxu0 0
      %1629 = vmatprep.subr.bf16.mxu0 0
      %1630 = vmatpush1.bf16.msra.mxu0 0
      %1631 = vmatprep.subr.bf16.mxu0 0
      %1632 = vmatpush1.bf16.msra.mxu0 0
      %1633 = vmatprep.subr.bf16.mxu0 0
      %1634 = vmatpush1.bf16.msra.mxu0 0
      %1635 = vmatprep.subr.bf16.mxu0 0
      %1636 = vmatpush1.bf16.msra.mxu0 0
      %1637 = vmatprep.subr.bf16.mxu0 0
      %1638 = vmatpush1.bf16.msra.mxu0 0
      %1639 = vmatprep.subr.bf16.mxu0 0
      %1640 = vmatpush1.bf16.msra.mxu0 0
      %1641 = vmatprep.subr.bf16.mxu0 0
      %1642 = vmatpush1.bf16.msra.mxu0 0
      %1643 = vmatprep.subr.bf16.mxu0 0
      %1644 = vmatpush1.bf16.msra.mxu0 0
      %1645 = vmatprep.subr.bf16.mxu0 0
      %1646 = vmatpush1.bf16.msra.mxu0 0
      %1647 = vmatprep.subr.bf16.mxu0 0
      %1648 = vmatpush1.bf16.msra.mxu0 0
      %1649 = vmatprep.mubr.bf16.mxu0 0
      %1650 = vmatmul.mubr.bf16.gmra.mrb[0].mxu0 %v1609
      %v1651 = vpop.f32.mrb[0].mxu0
      %v1652 = vadd.f32 0.0, %v1651
      %v1653 = vpop.f32.mrb[0].mxu0
      %v1654 = vadd.f32 0.0, %v1653
      %v1655 = vpop.f32.mrb[0].mxu0
      %v1656 = vadd.f32 0.0, %v1655
      %v1657 = vpop.f32.mrb[0].mxu0
      %v1658 = vadd.f32 0.0, %v1657
      %1659 = vdwg.mxu0
      %v1660 = vadd.f32 %v1596, %v1652
      %v1661 = vadd.f32 %v1597, %v1654
      %v1662 = vadd.f32 %v1598, %v1656
      %v1663 = vadd.f32 %v1599, %v1658
      %v1664 = vld [vmem:[#allocation2 + $0x8] sm:$0x3f]
      %v1665 = vld [vmem:[#allocation2 + $0x10] sm:$0x3f]
      %v1666 = vld [vmem:[#allocation2 + $0x18] sm:$0x3f]
      %v1667 = vsel %vm954, %v1664, 0
      %v1668 = vsel %vm955, %v1665, 0
      %v1669 = vsel %vm956, %v1666, 0
      %s1670 = scalar_lea.vmem %s3, 40
      %v1671 = vld [vmem:[%s1670] sm:$0xf]
      %v1672 = vld [vmem:[%s1670 + $0x4] sm:$0xf]
      %v1675 = vunpack.c.l.b16 %v1671
      %v1676 = vunpack.c.l.b16 %v1672
      %v1677 = vpack.c.b16 %v1676, %v1675
      %1681 = vrot.lane.b32.xlu0 %v1667, 127
      %v1682 = vpop.permute.xlu0 %1681
      %1683 = vrot.lane.b32.xlu0 %v1668, 127
      %v1684 = vpop.permute.xlu0 %1683
      %1685 = vrot.lane.b32.xlu0 %v1669, 127
      %v1686 = vpop.permute.xlu0 %1685
      %v1687 = vsel %vm808, %v1682, %v1684
      %v1688 = vsel %vm808, %v1684, %v1686
      %v1690 = vsel %vm1322, %v1677, 0
      %v1693 = vsel %vm1326, %v1687, 0
      %v1696 = vsel %vm1326, %v1688, 0
      %1698 = vmatprep.subr.bf16.mxu0 %v1696
      %1699 = vmatpush1.bf16.msra.mxu0 %v1693
      %1700 = vmatprep.subr.bf16.mxu0 0
      %1701 = vmatpush1.bf16.msra.mxu0 0
      %1702 = vmatprep.subr.bf16.mxu0 0
      %1703 = vmatpush1.bf16.msra.mxu0 0
      %1704 = vmatprep.subr.bf16.mxu0 0
      %1705 = vmatpush1.bf16.msra.mxu0 0
      %1706 = vmatprep.subr.bf16.mxu0 0
      %1707 = vmatpush1.bf16.msra.mxu0 0
      %1708 = vmatprep.subr.bf16.mxu0 0
      %1709 = vmatpush1.bf16.msra.mxu0 0
      %1710 = vmatprep.subr.bf16.mxu0 0
      %1711 = vmatpush1.bf16.msra.mxu0 0
      %1712 = vmatprep.subr.bf16.mxu0 0
      %1713 = vmatpush1.bf16.msra.mxu0 0
      %1714 = vmatprep.subr.bf16.mxu0 0
      %1715 = vmatpush1.bf16.msra.mxu0 0
      %1716 = vmatprep.subr.bf16.mxu0 0
      %1717 = vmatpush1.bf16.msra.mxu0 0
      %1718 = vmatprep.subr.bf16.mxu0 0
      %1719 = vmatpush1.bf16.msra.mxu0 0
      %1720 = vmatprep.subr.bf16.mxu0 0
      %1721 = vmatpush1.bf16.msra.mxu0 0
      %1722 = vmatprep.subr.bf16.mxu0 0
      %1723 = vmatpush1.bf16.msra.mxu0 0
      %1724 = vmatprep.subr.bf16.mxu0 0
      %1725 = vmatpush1.bf16.msra.mxu0 0
      %1726 = vmatprep.subr.bf16.mxu0 0
      %1727 = vmatpush1.bf16.msra.mxu0 0
      %1728 = vmatprep.subr.bf16.mxu0 0
      %1729 = vmatpush1.bf16.msra.mxu0 0
      %1730 = vmatprep.mubr.bf16.mxu0 0
      %1731 = vmatmul.mubr.bf16.gmra.mrb[0].mxu0 %v1690
      %v1732 = vpop.f32.mrb[0].mxu0
      %v1733 = vadd.f32 0.0, %v1732
      %v1734 = vpop.f32.mrb[0].mxu0
      %v1735 = vadd.f32 0.0, %v1734
      %v1736 = vpop.f32.mrb[0].mxu0
      %v1737 = vadd.f32 0.0, %v1736
      %v1738 = vpop.f32.mrb[0].mxu0
      %v1739 = vadd.f32 0.0, %v1738
      %1740 = vdwg.mxu0
      %v1741 = vadd.f32 %v1660, %v1733
      %v1742 = vadd.f32 %v1661, %v1735
      %v1743 = vadd.f32 %v1662, %v1737
      %v1744 = vadd.f32 %v1663, %v1739
      %v1745 = vsel %vm1036, %v1664, 0
      %v1746 = vsel %vm1037, %v1665, 0
      %v1747 = vsel %vm1038, %v1666, 0
      %s1748 = scalar_lea.vmem %s3, 48
      %v1749 = vld [vmem:[%s1748] sm:$0xf]
      %v1750 = vld [vmem:[%s1748 + $0x4] sm:$0xf]
      %v1753 = vunpack.c.l.b16 %v1749
      %v1754 = vunpack.c.l.b16 %v1750
      %v1755 = vpack.c.b16 %v1754, %v1753
      %1759 = vrot.lane.b32.xlu0 %v1745, 113
      %v1760 = vpop.permute.xlu0 %1759
      %1761 = vrot.lane.b32.xlu0 %v1746, 113
      %v1762 = vpop.permute.xlu0 %1761
      %1763 = vrot.lane.b32.xlu0 %v1747, 113
      %v1764 = vpop.permute.xlu0 %1763
      %v1765 = vsel %vm724, %v1760, %v1762
      %v1766 = vsel %vm724, %v1762, %v1764
      %v1768 = vsel %vm1322, %v1755, 0
      %v1771 = vsel %vm1326, %v1765, 0
      %v1774 = vsel %vm1326, %v1766, 0
      %1776 = vmatprep.subr.bf16.mxu0 %v1774
      %1777 = vmatpush1.bf16.msra.mxu0 %v1771
      %1778 = vmatprep.subr.bf16.mxu0 0
      %1779 = vmatpush1.bf16.msra.mxu0 0
      %1780 = vmatprep.subr.bf16.mxu0 0
      %1781 = vmatpush1.bf16.msra.mxu0 0
      %1782 = vmatprep.subr.bf16.mxu0 0
      %1783 = vmatpush1.bf16.msra.mxu0 0
      %1784 = vmatprep.subr.bf16.mxu0 0
      %1785 = vmatpush1.bf16.msra.mxu0 0
      %1786 = vmatprep.subr.bf16.mxu0 0
      %1787 = vmatpush1.bf16.msra.mxu0 0
      %1788 = vmatprep.subr.bf16.mxu0 0
      %1789 = vmatpush1.bf16.msra.mxu0 0
      %1790 = vmatprep.subr.bf16.mxu0 0
      %1791 = vmatpush1.bf16.msra.mxu0 0
      %1792 = vmatprep.subr.bf16.mxu0 0
      %1793 = vmatpush1.bf16.msra.mxu0 0
      %1794 = vmatprep.subr.bf16.mxu0 0
      %1795 = vmatpush1.bf16.msra.mxu0 0
      %1796 = vmatprep.subr.bf16.mxu0 0
      %1797 = vmatpush1.bf16.msra.mxu0 0
      %1798 = vmatprep.subr.bf16.mxu0 0
      %1799 = vmatpush1.bf16.msra.mxu0 0
      %1800 = vmatprep.subr.bf16.mxu0 0
      %1801 = vmatpush1.bf16.msra.mxu0 0
      %1802 = vmatprep.subr.bf16.mxu0 0
      %1803 = vmatpush1.bf16.msra.mxu0 0
      %1804 = vmatprep.subr.bf16.mxu0 0
      %1805 = vmatpush1.bf16.msra.mxu0 0
      %1806 = vmatprep.subr.bf16.mxu0 0
      %1807 = vmatpush1.bf16.msra.mxu0 0
      %1808 = vmatprep.mubr.bf16.mxu0 0
      %1809 = vmatmul.mubr.bf16.gmra.mrb[0].mxu0 %v1768
      %v1810 = vpop.f32.mrb[0].mxu0
      %v1811 = vadd.f32 0.0, %v1810
      %v1812 = vpop.f32.mrb[0].mxu0
      %v1813 = vadd.f32 0.0, %v1812
      %v1814 = vpop.f32.mrb[0].mxu0
      %v1815 = vadd.f32 0.0, %v1814
      %v1816 = vpop.f32.mrb[0].mxu0
      %v1817 = vadd.f32 0.0, %v1816
      %1818 = vdwg.mxu0
      %v1819 = vadd.f32 %v1741, %v1811
      %v1820 = vadd.f32 %v1742, %v1813
      %v1821 = vadd.f32 %v1743, %v1815
      %v1822 = vadd.f32 %v1744, %v1817
      %s1823 = scalar_lea.vmem %s3, 56
      %v1824 = vld [vmem:[%s1823] sm:$0xf]
      %v1825 = vld [vmem:[%s1823 + $0x4] sm:$0xf]
      %v1828 = vunpack.c.l.b16 %v1824
      %v1829 = vunpack.c.l.b16 %v1825
      %v1830 = vpack.c.b16 %v1829, %v1828
      %1834 = vrot.lane.b32.xlu0 %v1664, 112
      %v1835 = vpop.permute.xlu0 %1834
      %1836 = vrot.lane.b32.xlu0 %v1665, 112
      %v1837 = vpop.permute.xlu0 %1836
      %1838 = vrot.lane.b32.xlu0 %v1666, 112
      %v1839 = vpop.permute.xlu0 %1838
      %v1840 = vsel %vm1130, %v1835, %v1837
      %v1841 = vsel %vm1130, %v1837, %v1839
      %v1843 = vsel %vm1322, %v1830, 0
      %v1846 = vsel %vm1326, %v1840, 0
      %v1849 = vsel %vm1326, %v1841, 0
      %1851 = vmatprep.subr.bf16.mxu0 %v1849
      %1852 = vmatpush1.bf16.msra.mxu0 %v1846
      %1853 = vmatprep.subr.bf16.mxu0 0
      %1854 = vmatpush1.bf16.msra.mxu0 0
      %1855 = vmatprep.subr.bf16.mxu0 0
      %1856 = vmatpush1.bf16.msra.mxu0 0
      %1857 = vmatprep.subr.bf16.mxu0 0
      %1858 = vmatpush1.bf16.msra.mxu0 0
      %1859 = vmatprep.subr.bf16.mxu0 0
      %1860 = vmatpush1.bf16.msra.mxu0 0
      %1861 = vmatprep.subr.bf16.mxu0 0
      %1862 = vmatpush1.bf16.msra.mxu0 0
      %1863 = vmatprep.subr.bf16.mxu0 0
      %1864 = vmatpush1.bf16.msra.mxu0 0
      %1865 = vmatprep.subr.bf16.mxu0 0
      %1866 = vmatpush1.bf16.msra.mxu0 0
      %1867 = vmatprep.subr.bf16.mxu0 0
      %1868 = vmatpush1.bf16.msra.mxu0 0
      %1869 = vmatprep.subr.bf16.mxu0 0
      %1870 = vmatpush1.bf16.msra.mxu0 0
      %1871 = vmatprep.subr.bf16.mxu0 0
      %1872 = vmatpush1.bf16.msra.mxu0 0
      %1873 = vmatprep.subr.bf16.mxu0 0
      %1874 = vmatpush1.bf16.msra.mxu0 0
      %1875 = vmatprep.subr.bf16.mxu0 0
      %1876 = vmatpush1.bf16.msra.mxu0 0
      %1877 = vmatprep.subr.bf16.mxu0 0
      %1878 = vmatpush1.bf16.msra.mxu0 0
      %1879 = vmatprep.subr.bf16.mxu0 0
      %1880 = vmatpush1.bf16.msra.mxu0 0
      %1881 = vmatprep.subr.bf16.mxu0 0
      %1882 = vmatpush1.bf16.msra.mxu0 0
      %1883 = vmatprep.mubr.bf16.mxu0 0
      %1884 = vmatmul.mubr.bf16.gmra.mrb[0].mxu0 %v1843
      %v1885 = vpop.f32.mrb[0].mxu0
      %v1886 = vadd.f32 0.0, %v1885
      %v1887 = vpop.f32.mrb[0].mxu0
      %v1888 = vadd.f32 0.0, %v1887
      %v1889 = vpop.f32.mrb[0].mxu0
      %v1890 = vadd.f32 0.0, %v1889
      %v1891 = vpop.f32.mrb[0].mxu0
      %v1892 = vadd.f32 0.0, %v1891
      %1893 = vdwg.mxu0
      %v1894 = vadd.f32 %v1819, %v1886
      %v1895 = vadd.f32 %v1820, %v1888
      %v1896 = vadd.f32 %v1821, %v1890
      %v1897 = vadd.f32 %v1822, %v1892
      %v1898 = vsel %vm1190, %v1664, 0
      %v1899 = vsel %vm1191, %v1665, 0
      %v1900 = vsel %vm1192, %v1666, 0
      %s1901 = scalar_lea.vmem %s3, 64
      %v1902 = vld [vmem:[%s1901] sm:$0xf]
      %v1903 = vld [vmem:[%s1901 + $0x4] sm:$0xf]
      %v1906 = vunpack.c.l.b16 %v1902
      %v1907 = vunpack.c.l.b16 %v1903
      %v1908 = vpack.c.b16 %v1907, %v1906
      %1912 = vrot.lane.b32.xlu0 %v1898, 111
      %v1913 = vpop.permute.xlu0 %1912
      %1914 = vrot.lane.b32.xlu0 %v1899, 111
      %v1915 = vpop.permute.xlu0 %1914
      %1916 = vrot.lane.b32.xlu0 %v1900, 111
      %v1917 = vpop.permute.xlu0 %1916
      %v1918 = vsel %vm562, %v1913, %v1915
      %v1919 = vsel %vm562, %v1915, %v1917
      %v1921 = vsel %vm1322, %v1908, 0
      %v1924 = vsel %vm1326, %v1918, 0
      %v1927 = vsel %vm1326, %v1919, 0
      %1929 = vmatprep.subr.bf16.mxu0 %v1927
      %1930 = vmatpush1.bf16.msra.mxu0 %v1924
      %1931 = vmatprep.subr.bf16.mxu0 0
      %1932 = vmatpush1.bf16.msra.mxu0 0
      %1933 = vmatprep.subr.bf16.mxu0 0
      %1934 = vmatpush1.bf16.msra.mxu0 0
      %1935 = vmatprep.subr.bf16.mxu0 0
      %1936 = vmatpush1.bf16.msra.mxu0 0
      %1937 = vmatprep.subr.bf16.mxu0 0
      %1938 = vmatpush1.bf16.msra.mxu0 0
      %1939 = vmatprep.subr.bf16.mxu0 0
      %1940 = vmatpush1.bf16.msra.mxu0 0
      %1941 = vmatprep.subr.bf16.mxu0 0
      %1942 = vmatpush1.bf16.msra.mxu0 0
      %1943 = vmatprep.subr.bf16.mxu0 0
      %1944 = vmatpush1.bf16.msra.mxu0 0
      %1945 = vmatprep.subr.bf16.mxu0 0
      %1946 = vmatpush1.bf16.msra.mxu0 0
      %1947 = vmatprep.subr.bf16.mxu0 0
      %1948 = vmatpush1.bf16.msra.mxu0 0
      %1949 = vmatprep.subr.bf16.mxu0 0
      %1950 = vmatpush1.bf16.msra.mxu0 0
      %1951 = vmatprep.subr.bf16.mxu0 0
      %1952 = vmatpush1.bf16.msra.mxu0 0
      %1953 = vmatprep.subr.bf16.mxu0 0
      %1954 = vmatpush1.bf16.msra.mxu0 0
      %1955 = vmatprep.subr.bf16.mxu0 0
      %1956 = vmatpush1.bf16.msra.mxu0 0
      %1957 = vmatprep.subr.bf16.mxu0 0
      %1958 = vmatpush1.bf16.msra.mxu0 0
      %1959 = vmatprep.subr.bf16.mxu0 0
      %1960 = vmatpush1.bf16.msra.mxu0 0
      %1961 = vmatprep.mubr.bf16.mxu0 0
      %1962 = vmatmul.mubr.bf16.gmra.mrb[0].mxu0 %v1921
      %v1963 = vpop.f32.mrb[0].mxu0
      %v1964 = vadd.f32 0.0, %v1963
      %v1965 = vpop.f32.mrb[0].mxu0
      %v1966 = vadd.f32 0.0, %v1965
      %v1967 = vpop.f32.mrb[0].mxu0
      %v1968 = vadd.f32 0.0, %v1967
      %v1969 = vpop.f32.mrb[0].mxu0
      %v1970 = vadd.f32 0.0, %v1969
      %1971 = vdwg.mxu0
      %v1972 = vadd.f32 %v1894, %v1964
      %v1973 = vadd.f32 %v1895, %v1966
      %v1974 = vadd.f32 %v1896, %v1968
      %v1975 = vadd.f32 %v1897, %v1970
      %v1976 = vld [vmem:[%s4] sm:$0xff]
      %v1977 = vld [vmem:[%s4 + $0x8] sm:$0xff]
      %1979 = vset.pattern.permute.xlu0 0
      %1980 = vperm.xlu0 %1979, %v1976
      %v1981 = vpop.permute.xlu0 %1980
      %1984 = vset.pattern.permute.xlu0 0
      %1985 = vperm.xlu0 %1984, %v1977
      %v1986 = vpop.permute.xlu0 %1985
      %v1988 = vadd.f32 %v1972, %v1981
      %v1989 = vadd.f32 %v1973, %v1981
      %v1990 = vadd.f32 %v1974, %v1986
      %v1991 = vadd.f32 %v1975, %v1986
      %vm1992 = vcmp.ge.f32.partialorder %v1988, 0.0
      %vm1993 = vcmp.ge.f32.partialorder %v1989, 0.0
      %vm1994 = vcmp.ge.f32.partialorder %v1990, 0.0
      %vm1995 = vcmp.ge.f32.partialorder %v1991, 0.0
      %v1996 = vmul.f32 %v1988, 0.01
      %v1997 = vmul.f32 %v1989, 0.01
      %v1998 = vmul.f32 %v1990, 0.01
      %v1999 = vmul.f32 %v1991, 0.01
      %v2000 = vsel %vm1992, %v1988, %v1996
      %v2001 = vsel %vm1993, %v1989, %v1997
      %v2002 = vsel %vm1994, %v1990, %v1998
      %v2003 = vsel %vm1995, %v1991, %v1999
      %v2006 = vrot.slane %v2000, 4
      %v2007 = vrot.slane %v2001, 4
      %2010 = vst [vmem:[#allocation3] sm:$0xf0] %v2006
      %2011 = vst [vmem:[#allocation3 + $0x8] sm:$0xf0] %v2007
      %v2012 = vpack.c.bf16 %v2002, %v2000
      %v2013 = vpack.c.bf16 %v2003, %v2001
      %v2016 = vrot.slane %v2012, 2
      %v2017 = vrot.slane %v2013, 2
      %2020 = vst [vmem:[#allocation2 + $0x8] sm:$0x3f] %v2016
      %2021 = vst [vmem:[#allocation2 + $0x10] sm:$0x3f] %v2017
      %v2022 = vld [vmem:[#allocation2] sm:$0x3f]
      %v2023 = vld [vmem:[#allocation2 + $0x8] sm:$0x3f]
      %v2024 = vld [vmem:[#allocation2 + $0x10] sm:$0x3f]
      %v2025 = vsel %vm564, %v2022, 0
      %v2026 = vsel %vm565, %v2023, 0
      %v2027 = vsel %vm566, %v2024, 0
      %v2028 = vld [vmem:[%s5] sm:$0xf]
      %v2029 = vld [vmem:[%s5 + $0x4] sm:$0xf]
      %s2030 = scalar_lea.vmem %s5, 8
      %v2031 = vld [vmem:[%s2030] sm:$0xf]
      %v2032 = vld [vmem:[%s2030 + $0x4] sm:$0xf]
      %v2035 = vunpack.c.l.b16 %v2031
      %v2036 = vunpack.c.l.b16 %v2032
      %v2037 = vpack.c.b16 %v2036, %v2035
      %2041 = vrot.lane.b32.xlu0 %v2022, 16
      %v2042 = vpop.permute.xlu0 %2041
      %2043 = vrot.lane.b32.xlu0 %v2023, 16
      %v2044 = vpop.permute.xlu0 %2043
      %2045 = vrot.lane.b32.xlu0 %v2024, 16
      %v2046 = vpop.permute.xlu0 %2045
      %v2047 = vsel %vm589, %v2042, %v2044
      %v2048 = vsel %vm589, %v2044, %v2046
      %v2050 = vsel %vm1322, %v2037, 0
      %v2053 = vsel %vm1326, %v2047, 0
      %v2056 = vsel %vm1326, %v2048, 0
      %2058 = vmatprep.subr.bf16.mxu0 %v2056
      %2059 = vmatpush1.bf16.msra.mxu0 %v2053
      %2060 = vmatprep.subr.bf16.mxu0 0
      %2061 = vmatpush1.bf16.msra.mxu0 0
      %2062 = vmatprep.subr.bf16.mxu0 0
      %2063 = vmatpush1.bf16.msra.mxu0 0
      %2064 = vmatprep.subr.bf16.mxu0 0
      %2065 = vmatpush1.bf16.msra.mxu0 0
      %2066 = vmatprep.subr.bf16.mxu0 0
      %2067 = vmatpush1.bf16.msra.mxu0 0
      %2068 = vmatprep.subr.bf16.mxu0 0
      %2069 = vmatpush1.bf16.msra.mxu0 0
      %2070 = vmatprep.subr.bf16.mxu0 0
      %2071 = vmatpush1.bf16.msra.mxu0 0
      %2072 = vmatprep.subr.bf16.mxu0 0
      %2073 = vmatpush1.bf16.msra.mxu0 0
      %2074 = vmatprep.subr.bf16.mxu0 0
      %2075 = vmatpush1.bf16.msra.mxu0 0
      %2076 = vmatprep.subr.bf16.mxu0 0
      %2077 = vmatpush1.bf16.msra.mxu0 0
      %2078 = vmatprep.subr.bf16.mxu0 0
      %2079 = vmatpush1.bf16.msra.mxu0 0
      %2080 = vmatprep.subr.bf16.mxu0 0
      %2081 = vmatpush1.bf16.msra.mxu0 0
      %2082 = vmatprep.subr.bf16.mxu0 0
      %2083 = vmatpush1.bf16.msra.mxu0 0
      %2084 = vmatprep.subr.bf16.mxu0 0
      %2085 = vmatpush1.bf16.msra.mxu0 0
      %2086 = vmatprep.subr.bf16.mxu0 0
      %2087 = vmatpush1.bf16.msra.mxu0 0
      %2088 = vmatprep.subr.bf16.mxu0 0
      %2089 = vmatpush1.bf16.msra.mxu0 0
      %2090 = vmatprep.mubr.bf16.mxu0 0
      %2091 = vmatmul.mubr.bf16.gmra.mrb[0].mxu0 %v2050
      %v2092 = vpop.f32.mrb[0].mxu0
      %v2093 = vadd.f32 0.0, %v2092
      %v2094 = vpop.f32.mrb[0].mxu0
      %v2095 = vadd.f32 0.0, %v2094
      %v2096 = vpop.f32.mrb[0].mxu0
      %v2097 = vadd.f32 0.0, %v2096
      %v2098 = vpop.f32.mrb[0].mxu0
      %v2099 = vadd.f32 0.0, %v2098
      %2100 = vdwg.mxu0
      %v2103 = vunpack.c.l.b16 %v2028
      %v2104 = vunpack.c.l.b16 %v2029
      %v2105 = vpack.c.b16 %v2104, %v2103
      %2109 = vrot.lane.b32.xlu0 %v2025, 17
      %v2110 = vpop.permute.xlu0 %2109
      %2111 = vrot.lane.b32.xlu0 %v2026, 17
      %v2112 = vpop.permute.xlu0 %2111
      %2113 = vrot.lane.b32.xlu0 %v2027, 17
      %v2114 = vpop.permute.xlu0 %2113
      %v2115 = vsel %vm655, %v2110, %v2112
      %v2116 = vsel %vm655, %v2112, %v2114
      %v2118 = vsel %vm1322, %v2105, 0
      %v2121 = vsel %vm1326, %v2115, 0
      %v2124 = vsel %vm1326, %v2116, 0
      %2126 = vmatprep.subr.bf16.mxu0 %v2124
      %2127 = vmatpush1.bf16.msra.mxu0 %v2121
      %2128 = vmatprep.subr.bf16.mxu0 0
      %2129 = vmatpush1.bf16.msra.mxu0 0
      %2130 = vmatprep.subr.bf16.mxu0 0
      %2131 = vmatpush1.bf16.msra.mxu0 0
      %2132 = vmatprep.subr.bf16.mxu0 0
      %2133 = vmatpush1.bf16.msra.mxu0 0
      %2134 = vmatprep.subr.bf16.mxu0 0
      %2135 = vmatpush1.bf16.msra.mxu0 0
      %2136 = vmatprep.subr.bf16.mxu0 0
      %2137 = vmatpush1.bf16.msra.mxu0 0
      %2138 = vmatprep.subr.bf16.mxu0 0
      %2139 = vmatpush1.bf16.msra.mxu0 0
      %2140 = vmatprep.subr.bf16.mxu0 0
      %2141 = vmatpush1.bf16.msra.mxu0 0
      %2142 = vmatprep.subr.bf16.mxu0 0
      %2143 = vmatpush1.bf16.msra.mxu0 0
      %2144 = vmatprep.subr.bf16.mxu0 0
      %2145 = vmatpush1.bf16.msra.mxu0 0
      %2146 = vmatprep.subr.bf16.mxu0 0
      %2147 = vmatpush1.bf16.msra.mxu0 0
      %2148 = vmatprep.subr.bf16.mxu0 0
      %2149 = vmatpush1.bf16.msra.mxu0 0
      %2150 = vmatprep.subr.bf16.mxu0 0
      %2151 = vmatpush1.bf16.msra.mxu0 0
      %2152 = vmatprep.subr.bf16.mxu0 0
      %2153 = vmatpush1.bf16.msra.mxu0 0
      %2154 = vmatprep.subr.bf16.mxu0 0
      %2155 = vmatpush1.bf16.msra.mxu0 0
      %2156 = vmatprep.subr.bf16.mxu0 0
      %2157 = vmatpush1.bf16.msra.mxu0 0
      %2158 = vmatprep.mubr.bf16.mxu0 0
      %2159 = vmatmul.mubr.bf16.gmra.mrb[0].mxu0 %v2118
      %v2160 = vpop.f32.mrb[0].mxu0
      %v2161 = vadd.f32 %v2093, %v2160
      %v2162 = vpop.f32.mrb[0].mxu0
      %v2163 = vadd.f32 %v2095, %v2162
      %v2164 = vpop.f32.mrb[0].mxu0
      %v2165 = vadd.f32 %v2097, %v2164
      %v2166 = vpop.f32.mrb[0].mxu0
      %v2167 = vadd.f32 %v2099, %v2166
      %2168 = vdwg.mxu0
      %v2169 = vsel %vm726, %v2022, 0
      %v2170 = vsel %vm727, %v2023, 0
      %v2171 = vsel %vm728, %v2024, 0
      %s2172 = scalar_lea.vmem %s5, 16
      %v2173 = vld [vmem:[%s2172] sm:$0xf]
      %v2174 = vld [vmem:[%s2172 + $0x4] sm:$0xf]
      %v2177 = vunpack.c.l.b16 %v2173
      %v2178 = vunpack.c.l.b16 %v2174
      %v2179 = vpack.c.b16 %v2178, %v2177
      %2183 = vrot.lane.b32.xlu0 %v2169, 15
      %v2184 = vpop.permute.xlu0 %2183
      %2185 = vrot.lane.b32.xlu0 %v2170, 15
      %v2186 = vpop.permute.xlu0 %2185
      %2187 = vrot.lane.b32.xlu0 %v2171, 15
      %v2188 = vpop.permute.xlu0 %2187
      %v2189 = vsel %vm749, %v2184, %v2186
      %v2190 = vsel %vm749, %v2186, %v2188
      %v2192 = vsel %vm1322, %v2179, 0
      %v2195 = vsel %vm1326, %v2189, 0
      %v2198 = vsel %vm1326, %v2190, 0
      %2200 = vmatprep.subr.bf16.mxu0 %v2198
      %2201 = vmatpush1.bf16.msra.mxu0 %v2195
      %2202 = vmatprep.subr.bf16.mxu0 0
      %2203 = vmatpush1.bf16.msra.mxu0 0
      %2204 = vmatprep.subr.bf16.mxu0 0
      %2205 = vmatpush1.bf16.msra.mxu0 0
      %2206 = vmatprep.subr.bf16.mxu0 0
      %2207 = vmatpush1.bf16.msra.mxu0 0
      %2208 = vmatprep.subr.bf16.mxu0 0
      %2209 = vmatpush1.bf16.msra.mxu0 0
      %2210 = vmatprep.subr.bf16.mxu0 0
      %2211 = vmatpush1.bf16.msra.mxu0 0
      %2212 = vmatprep.subr.bf16.mxu0 0
      %2213 = vmatpush1.bf16.msra.mxu0 0
      %2214 = vmatprep.subr.bf16.mxu0 0
      %2215 = vmatpush1.bf16.msra.mxu0 0
      %2216 = vmatprep.subr.bf16.mxu0 0
      %2217 = vmatpush1.bf16.msra.mxu0 0
      %2218 = vmatprep.subr.bf16.mxu0 0
      %2219 = vmatpush1.bf16.msra.mxu0 0
      %2220 = vmatprep.subr.bf16.mxu0 0
      %2221 = vmatpush1.bf16.msra.mxu0 0
      %2222 = vmatprep.subr.bf16.mxu0 0
      %2223 = vmatpush1.bf16.msra.mxu0 0
      %2224 = vmatprep.subr.bf16.mxu0 0
      %2225 = vmatpush1.bf16.msra.mxu0 0
      %2226 = vmatprep.subr.bf16.mxu0 0
      %2227 = vmatpush1.bf16.msra.mxu0 0
      %2228 = vmatprep.subr.bf16.mxu0 0
      %2229 = vmatpush1.bf16.msra.mxu0 0
      %2230 = vmatprep.subr.bf16.mxu0 0
      %2231 = vmatpush1.bf16.msra.mxu0 0
      %2232 = vmatprep.mubr.bf16.mxu0 0
      %2233 = vmatmul.mubr.bf16.gmra.mrb[0].mxu0 %v2192
      %v2234 = vpop.f32.mrb[0].mxu0
      %v2235 = vadd.f32 0.0, %v2234
      %v2236 = vpop.f32.mrb[0].mxu0
      %v2237 = vadd.f32 0.0, %v2236
      %v2238 = vpop.f32.mrb[0].mxu0
      %v2239 = vadd.f32 0.0, %v2238
      %v2240 = vpop.f32.mrb[0].mxu0
      %v2241 = vadd.f32 0.0, %v2240
      %2242 = vdwg.mxu0
      %v2243 = vadd.f32 %v2161, %v2235
      %v2244 = vadd.f32 %v2163, %v2237
      %v2245 = vadd.f32 %v2165, %v2239
      %v2246 = vadd.f32 %v2167, %v2241
      %v2247 = vsel %vm810, %v2022, 0
      %v2248 = vsel %vm811, %v2023, 0
      %v2249 = vsel %vm812, %v2024, 0
      %s2250 = scalar_lea.vmem %s5, 24
      %v2251 = vld [vmem:[%s2250] sm:$0xf]
      %v2252 = vld [vmem:[%s2250 + $0x4] sm:$0xf]
      %v2255 = vunpack.c.l.b16 %v2251
      %v2256 = vunpack.c.l.b16 %v2252
      %v2257 = vpack.c.b16 %v2256, %v2255
      %2261 = vrot.lane.b32.xlu0 %v2247, 1
      %v2262 = vpop.permute.xlu0 %2261
      %2263 = vrot.lane.b32.xlu0 %v2248, 1
      %v2264 = vpop.permute.xlu0 %2263
      %2265 = vrot.lane.b32.xlu0 %v2249, 1
      %v2266 = vpop.permute.xlu0 %2265
      %v2267 = vsel %vm833, %v2262, %v2264
      %v2268 = vsel %vm833, %v2264, %v2266
      %v2270 = vsel %vm1322, %v2257, 0
      %v2273 = vsel %vm1326, %v2267, 0
      %v2276 = vsel %vm1326, %v2268, 0
      %2278 = vmatprep.subr.bf16.mxu0 %v2276
      %2279 = vmatpush1.bf16.msra.mxu0 %v2273
      %2280 = vmatprep.subr.bf16.mxu0 0
      %2281 = vmatpush1.bf16.msra.mxu0 0
      %2282 = vmatprep.subr.bf16.mxu0 0
      %2283 = vmatpush1.bf16.msra.mxu0 0
      %2284 = vmatprep.subr.bf16.mxu0 0
      %2285 = vmatpush1.bf16.msra.mxu0 0
      %2286 = vmatprep.subr.bf16.mxu0 0
      %2287 = vmatpush1.bf16.msra.mxu0 0
      %2288 = vmatprep.subr.bf16.mxu0 0
      %2289 = vmatpush1.bf16.msra.mxu0 0
      %2290 = vmatprep.subr.bf16.mxu0 0
      %2291 = vmatpush1.bf16.msra.mxu0 0
      %2292 = vmatprep.subr.bf16.mxu0 0
      %2293 = vmatpush1.bf16.msra.mxu0 0
      %2294 = vmatprep.subr.bf16.mxu0 0
      %2295 = vmatpush1.bf16.msra.mxu0 0
      %2296 = vmatprep.subr.bf16.mxu0 0
      %2297 = vmatpush1.bf16.msra.mxu0 0
      %2298 = vmatprep.subr.bf16.mxu0 0
      %2299 = vmatpush1.bf16.msra.mxu0 0
      %2300 = vmatprep.subr.bf16.mxu0 0
      %2301 = vmatpush1.bf16.msra.mxu0 0
      %2302 = vmatprep.subr.bf16.mxu0 0
      %2303 = vmatpush1.bf16.msra.mxu0 0
      %2304 = vmatprep.subr.bf16.mxu0 0
      %2305 = vmatpush1.bf16.msra.mxu0 0
      %2306 = vmatprep.subr.bf16.mxu0 0
      %2307 = vmatpush1.bf16.msra.mxu0 0
      %2308 = vmatprep.subr.bf16.mxu0 0
      %2309 = vmatpush1.bf16.msra.mxu0 0
      %2310 = vmatprep.mubr.bf16.mxu0 0
      %2311 = vmatmul.mubr.bf16.gmra.mrb[0].mxu0 %v2270
      %v2312 = vpop.f32.mrb[0].mxu0
      %v2313 = vadd.f32 0.0, %v2312
      %v2314 = vpop.f32.mrb[0].mxu0
      %v2315 = vadd.f32 0.0, %v2314
      %v2316 = vpop.f32.mrb[0].mxu0
      %v2317 = vadd.f32 0.0, %v2316
      %v2318 = vpop.f32.mrb[0].mxu0
      %v2319 = vadd.f32 0.0, %v2318
      %2320 = vdwg.mxu0
      %v2321 = vadd.f32 %v2243, %v2313
      %v2322 = vadd.f32 %v2244, %v2315
      %v2323 = vadd.f32 %v2245, %v2317
      %v2324 = vadd.f32 %v2246, %v2319
      %s2325 = scalar_lea.vmem %s5, 32
      %v2326 = vld [vmem:[%s2325] sm:$0xf]
      %v2327 = vld [vmem:[%s2325 + $0x4] sm:$0xf]
      %v2330 = vunpack.c.l.b16 %v2326
      %v2331 = vunpack.c.l.b16 %v2327
      %v2332 = vpack.c.b16 %v2331, %v2330
      %v2334 = vsel %vm1322, %v2332, 0
      %v2337 = vsel %vm1326, %v2023, 0
      %v2340 = vsel %vm1326, %v2024, 0
      %2342 = vmatprep.subr.bf16.mxu0 %v2340
      %2343 = vmatpush1.bf16.msra.mxu0 %v2337
      %2344 = vmatprep.subr.bf16.mxu0 0
      %2345 = vmatpush1.bf16.msra.mxu0 0
      %2346 = vmatprep.subr.bf16.mxu0 0
      %2347 = vmatpush1.bf16.msra.mxu0 0
      %2348 = vmatprep.subr.bf16.mxu0 0
      %2349 = vmatpush1.bf16.msra.mxu0 0
      %2350 = vmatprep.subr.bf16.mxu0 0
      %2351 = vmatpush1.bf16.msra.mxu0 0
      %2352 = vmatprep.subr.bf16.mxu0 0
      %2353 = vmatpush1.bf16.msra.mxu0 0
      %2354 = vmatprep.subr.bf16.mxu0 0
      %2355 = vmatpush1.bf16.msra.mxu0 0
      %2356 = vmatprep.subr.bf16.mxu0 0
      %2357 = vmatpush1.bf16.msra.mxu0 0
      %2358 = vmatprep.subr.bf16.mxu0 0
      %2359 = vmatpush1.bf16.msra.mxu0 0
      %2360 = vmatprep.subr.bf16.mxu0 0
      %2361 = vmatpush1.bf16.msra.mxu0 0
      %2362 = vmatprep.subr.bf16.mxu0 0
      %2363 = vmatpush1.bf16.msra.mxu0 0
      %2364 = vmatprep.subr.bf16.mxu0 0
      %2365 = vmatpush1.bf16.msra.mxu0 0
      %2366 = vmatprep.subr.bf16.mxu0 0
      %2367 = vmatpush1.bf16.msra.mxu0 0
      %2368 = vmatprep.subr.bf16.mxu0 0
      %2369 = vmatpush1.bf16.msra.mxu0 0
      %2370 = vmatprep.subr.bf16.mxu0 0
      %2371 = vmatpush1.bf16.msra.mxu0 0
      %2372 = vmatprep.subr.bf16.mxu0 0
      %2373 = vmatpush1.bf16.msra.mxu0 0
      %2374 = vmatprep.mubr.bf16.mxu0 0
      %2375 = vmatmul.mubr.bf16.gmra.mrb[0].mxu0 %v2334
      %v2376 = vpop.f32.mrb[0].mxu0
      %v2377 = vadd.f32 0.0, %v2376
      %v2378 = vpop.f32.mrb[0].mxu0
      %v2379 = vadd.f32 0.0, %v2378
      %v2380 = vpop.f32.mrb[0].mxu0
      %v2381 = vadd.f32 0.0, %v2380
      %v2382 = vpop.f32.mrb[0].mxu0
      %v2383 = vadd.f32 0.0, %v2382
      %2384 = vdwg.mxu0
      %v2385 = vadd.f32 %v2321, %v2377
      %v2386 = vadd.f32 %v2322, %v2379
      %v2387 = vadd.f32 %v2323, %v2381
      %v2388 = vadd.f32 %v2324, %v2383
      %v2389 = vld [vmem:[#allocation2 + $0x8] sm:$0x3f]
      %v2390 = vld [vmem:[#allocation2 + $0x10] sm:$0x3f]
      %v2391 = vld [vmem:[#allocation2 + $0x18] sm:$0x3f]
      %v2392 = vsel %vm954, %v2389, 0
      %v2393 = vsel %vm955, %v2390, 0
      %v2394 = vsel %vm956, %v2391, 0
      %s2395 = scalar_lea.vmem %s5, 40
      %v2396 = vld [vmem:[%s2395] sm:$0xf]
      %v2397 = vld [vmem:[%s2395 + $0x4] sm:$0xf]
      %v2400 = vunpack.c.l.b16 %v2396
      %v2401 = vunpack.c.l.b16 %v2397
      %v2402 = vpack.c.b16 %v2401, %v2400
      %2406 = vrot.lane.b32.xlu0 %v2392, 127
      %v2407 = vpop.permute.xlu0 %2406
      %2408 = vrot.lane.b32.xlu0 %v2393, 127
      %v2409 = vpop.permute.xlu0 %2408
      %2410 = vrot.lane.b32.xlu0 %v2394, 127
      %v2411 = vpop.permute.xlu0 %2410
      %v2412 = vsel %vm808, %v2407, %v2409
      %v2413 = vsel %vm808, %v2409, %v2411
      %v2415 = vsel %vm1322, %v2402, 0
      %v2418 = vsel %vm1326, %v2412, 0
      %v2421 = vsel %vm1326, %v2413, 0
      %2423 = vmatprep.subr.bf16.mxu0 %v2421
      %2424 = vmatpush1.bf16.msra.mxu0 %v2418
      %2425 = vmatprep.subr.bf16.mxu0 0
      %2426 = vmatpush1.bf16.msra.mxu0 0
      %2427 = vmatprep.subr.bf16.mxu0 0
      %2428 = vmatpush1.bf16.msra.mxu0 0
      %2429 = vmatprep.subr.bf16.mxu0 0
      %2430 = vmatpush1.bf16.msra.mxu0 0
      %2431 = vmatprep.subr.bf16.mxu0 0
      %2432 = vmatpush1.bf16.msra.mxu0 0
      %2433 = vmatprep.subr.bf16.mxu0 0
      %2434 = vmatpush1.bf16.msra.mxu0 0
      %2435 = vmatprep.subr.bf16.mxu0 0
      %2436 = vmatpush1.bf16.msra.mxu0 0
      %2437 = vmatprep.subr.bf16.mxu0 0
      %2438 = vmatpush1.bf16.msra.mxu0 0
      %2439 = vmatprep.subr.bf16.mxu0 0
      %2440 = vmatpush1.bf16.msra.mxu0 0
      %2441 = vmatprep.subr.bf16.mxu0 0
      %2442 = vmatpush1.bf16.msra.mxu0 0
      %2443 = vmatprep.subr.bf16.mxu0 0
      %2444 = vmatpush1.bf16.msra.mxu0 0
      %2445 = vmatprep.subr.bf16.mxu0 0
      %2446 = vmatpush1.bf16.msra.mxu0 0
      %2447 = vmatprep.subr.bf16.mxu0 0
      %2448 = vmatpush1.bf16.msra.mxu0 0
      %2449 = vmatprep.subr.bf16.mxu0 0
      %2450 = vmatpush1.bf16.msra.mxu0 0
      %2451 = vmatprep.subr.bf16.mxu0 0
      %2452 = vmatpush1.bf16.msra.mxu0 0
      %2453 = vmatprep.subr.bf16.mxu0 0
      %2454 = vmatpush1.bf16.msra.mxu0 0
      %2455 = vmatprep.mubr.bf16.mxu0 0
      %2456 = vmatmul.mubr.bf16.gmra.mrb[0].mxu0 %v2415
      %v2457 = vpop.f32.mrb[0].mxu0
      %v2458 = vadd.f32 0.0, %v2457
      %v2459 = vpop.f32.mrb[0].mxu0
      %v2460 = vadd.f32 0.0, %v2459
      %v2461 = vpop.f32.mrb[0].mxu0
      %v2462 = vadd.f32 0.0, %v2461
      %v2463 = vpop.f32.mrb[0].mxu0
      %v2464 = vadd.f32 0.0, %v2463
      %2465 = vdwg.mxu0
      %v2466 = vadd.f32 %v2385, %v2458
      %v2467 = vadd.f32 %v2386, %v2460
      %v2468 = vadd.f32 %v2387, %v2462
      %v2469 = vadd.f32 %v2388, %v2464
      %v2470 = vsel %vm1036, %v2389, 0
      %v2471 = vsel %vm1037, %v2390, 0
      %v2472 = vsel %vm1038, %v2391, 0
      %s2473 = scalar_lea.vmem %s5, 48
      %v2474 = vld [vmem:[%s2473] sm:$0xf]
      %v2475 = vld [vmem:[%s2473 + $0x4] sm:$0xf]
      %v2478 = vunpack.c.l.b16 %v2474
      %v2479 = vunpack.c.l.b16 %v2475
      %v2480 = vpack.c.b16 %v2479, %v2478
      %2484 = vrot.lane.b32.xlu0 %v2470, 113
      %v2485 = vpop.permute.xlu0 %2484
      %2486 = vrot.lane.b32.xlu0 %v2471, 113
      %v2487 = vpop.permute.xlu0 %2486
      %2488 = vrot.lane.b32.xlu0 %v2472, 113
      %v2489 = vpop.permute.xlu0 %2488
      %v2490 = vsel %vm724, %v2485, %v2487
      %v2491 = vsel %vm724, %v2487, %v2489
      %v2493 = vsel %vm1322, %v2480, 0
      %v2496 = vsel %vm1326, %v2490, 0
      %v2499 = vsel %vm1326, %v2491, 0
      %2501 = vmatprep.subr.bf16.mxu0 %v2499
      %2502 = vmatpush1.bf16.msra.mxu0 %v2496
      %2503 = vmatprep.subr.bf16.mxu0 0
      %2504 = vmatpush1.bf16.msra.mxu0 0
      %2505 = vmatprep.subr.bf16.mxu0 0
      %2506 = vmatpush1.bf16.msra.mxu0 0
      %2507 = vmatprep.subr.bf16.mxu0 0
      %2508 = vmatpush1.bf16.msra.mxu0 0
      %2509 = vmatprep.subr.bf16.mxu0 0
      %2510 = vmatpush1.bf16.msra.mxu0 0
      %2511 = vmatprep.subr.bf16.mxu0 0
      %2512 = vmatpush1.bf16.msra.mxu0 0
      %2513 = vmatprep.subr.bf16.mxu0 0
      %2514 = vmatpush1.bf16.msra.mxu0 0
      %2515 = vmatprep.subr.bf16.mxu0 0
      %2516 = vmatpush1.bf16.msra.mxu0 0
      %2517 = vmatprep.subr.bf16.mxu0 0
      %2518 = vmatpush1.bf16.msra.mxu0 0
      %2519 = vmatprep.subr.bf16.mxu0 0
      %2520 = vmatpush1.bf16.msra.mxu0 0
      %2521 = vmatprep.subr.bf16.mxu0 0
      %2522 = vmatpush1.bf16.msra.mxu0 0
      %2523 = vmatprep.subr.bf16.mxu0 0
      %2524 = vmatpush1.bf16.msra.mxu0 0
      %2525 = vmatprep.subr.bf16.mxu0 0
      %2526 = vmatpush1.bf16.msra.mxu0 0
      %2527 = vmatprep.subr.bf16.mxu0 0
      %2528 = vmatpush1.bf16.msra.mxu0 0
      %2529 = vmatprep.subr.bf16.mxu0 0
      %2530 = vmatpush1.bf16.msra.mxu0 0
      %2531 = vmatprep.subr.bf16.mxu0 0
      %2532 = vmatpush1.bf16.msra.mxu0 0
      %2533 = vmatprep.mubr.bf16.mxu0 0
      %2534 = vmatmul.mubr.bf16.gmra.mrb[0].mxu0 %v2493
      %v2535 = vpop.f32.mrb[0].mxu0
      %v2536 = vadd.f32 0.0, %v2535
      %v2537 = vpop.f32.mrb[0].mxu0
      %v2538 = vadd.f32 0.0, %v2537
      %v2539 = vpop.f32.mrb[0].mxu0
      %v2540 = vadd.f32 0.0, %v2539
      %v2541 = vpop.f32.mrb[0].mxu0
      %v2542 = vadd.f32 0.0, %v2541
      %2543 = vdwg.mxu0
      %v2544 = vadd.f32 %v2466, %v2536
      %v2545 = vadd.f32 %v2467, %v2538
      %v2546 = vadd.f32 %v2468, %v2540
      %v2547 = vadd.f32 %v2469, %v2542
      %s2548 = scalar_lea.vmem %s5, 56
      %v2549 = vld [vmem:[%s2548] sm:$0xf]
      %v2550 = vld [vmem:[%s2548 + $0x4] sm:$0xf]
      %v2553 = vunpack.c.l.b16 %v2549
      %v2554 = vunpack.c.l.b16 %v2550
      %v2555 = vpack.c.b16 %v2554, %v2553
      %2559 = vrot.lane.b32.xlu0 %v2389, 112
      %v2560 = vpop.permute.xlu0 %2559
      %2561 = vrot.lane.b32.xlu0 %v2390, 112
      %v2562 = vpop.permute.xlu0 %2561
      %2563 = vrot.lane.b32.xlu0 %v2391, 112
      %v2564 = vpop.permute.xlu0 %2563
      %v2565 = vsel %vm1130, %v2560, %v2562
      %v2566 = vsel %vm1130, %v2562, %v2564
      %v2568 = vsel %vm1322, %v2555, 0
      %v2571 = vsel %vm1326, %v2565, 0
      %v2574 = vsel %vm1326, %v2566, 0
      %2576 = vmatprep.subr.bf16.mxu0 %v2574
      %2577 = vmatpush1.bf16.msra.mxu0 %v2571
      %2578 = vmatprep.subr.bf16.mxu0 0
      %2579 = vmatpush1.bf16.msra.mxu0 0
      %2580 = vmatprep.subr.bf16.mxu0 0
      %2581 = vmatpush1.bf16.msra.mxu0 0
      %2582 = vmatprep.subr.bf16.mxu0 0
      %2583 = vmatpush1.bf16.msra.mxu0 0
      %2584 = vmatprep.subr.bf16.mxu0 0
      %2585 = vmatpush1.bf16.msra.mxu0 0
      %2586 = vmatprep.subr.bf16.mxu0 0
      %2587 = vmatpush1.bf16.msra.mxu0 0
      %2588 = vmatprep.subr.bf16.mxu0 0
      %2589 = vmatpush1.bf16.msra.mxu0 0
      %2590 = vmatprep.subr.bf16.mxu0 0
      %2591 = vmatpush1.bf16.msra.mxu0 0
      %2592 = vmatprep.subr.bf16.mxu0 0
      %2593 = vmatpush1.bf16.msra.mxu0 0
      %2594 = vmatprep.subr.bf16.mxu0 0
      %2595 = vmatpush1.bf16.msra.mxu0 0
      %2596 = vmatprep.subr.bf16.mxu0 0
      %2597 = vmatpush1.bf16.msra.mxu0 0
      %2598 = vmatprep.subr.bf16.mxu0 0
      %2599 = vmatpush1.bf16.msra.mxu0 0
      %2600 = vmatprep.subr.bf16.mxu0 0
      %2601 = vmatpush1.bf16.msra.mxu0 0
      %2602 = vmatprep.subr.bf16.mxu0 0
      %2603 = vmatpush1.bf16.msra.mxu0 0
      %2604 = vmatprep.subr.bf16.mxu0 0
      %2605 = vmatpush1.bf16.msra.mxu0 0
      %2606 = vmatprep.subr.bf16.mxu0 0
      %2607 = vmatpush1.bf16.msra.mxu0 0
      %2608 = vmatprep.mubr.bf16.mxu0 0
      %2609 = vmatmul.mubr.bf16.gmra.mrb[0].mxu0 %v2568
      %v2610 = vpop.f32.mrb[0].mxu0
      %v2611 = vadd.f32 0.0, %v2610
      %v2612 = vpop.f32.mrb[0].mxu0
      %v2613 = vadd.f32 0.0, %v2612
      %v2614 = vpop.f32.mrb[0].mxu0
      %v2615 = vadd.f32 0.0, %v2614
      %v2616 = vpop.f32.mrb[0].mxu0
      %v2617 = vadd.f32 0.0, %v2616
      %2618 = vdwg.mxu0
      %v2619 = vadd.f32 %v2544, %v2611
      %v2620 = vadd.f32 %v2545, %v2613
      %v2621 = vadd.f32 %v2546, %v2615
      %v2622 = vadd.f32 %v2547, %v2617
      %v2623 = vsel %vm1190, %v2389, 0
      %v2624 = vsel %vm1191, %v2390, 0
      %v2625 = vsel %vm1192, %v2391, 0
      %s2626 = scalar_lea.vmem %s5, 64
      %v2627 = vld [vmem:[%s2626] sm:$0xf]
      %v2628 = vld [vmem:[%s2626 + $0x4] sm:$0xf]
      %v2631 = vunpack.c.l.b16 %v2627
      %v2632 = vunpack.c.l.b16 %v2628
      %v2633 = vpack.c.b16 %v2632, %v2631
      %2637 = vrot.lane.b32.xlu0 %v2623, 111
      %v2638 = vpop.permute.xlu0 %2637
      %2639 = vrot.lane.b32.xlu0 %v2624, 111
      %v2640 = vpop.permute.xlu0 %2639
      %2641 = vrot.lane.b32.xlu0 %v2625, 111
      %v2642 = vpop.permute.xlu0 %2641
      %v2643 = vsel %vm562, %v2638, %v2640
      %v2644 = vsel %vm562, %v2640, %v2642
      %v2646 = vsel %vm1322, %v2633, 0
      %v2649 = vsel %vm1326, %v2643, 0
      %v2652 = vsel %vm1326, %v2644, 0
      %2654 = vmatprep.subr.bf16.mxu0 %v2652
      %2655 = vmatpush1.bf16.msra.mxu0 %v2649
      %2656 = vmatprep.subr.bf16.mxu0 0
      %2657 = vmatpush1.bf16.msra.mxu0 0
      %2658 = vmatprep.subr.bf16.mxu0 0
      %2659 = vmatpush1.bf16.msra.mxu0 0
      %2660 = vmatprep.subr.bf16.mxu0 0
      %2661 = vmatpush1.bf16.msra.mxu0 0
      %2662 = vmatprep.subr.bf16.mxu0 0
      %2663 = vmatpush1.bf16.msra.mxu0 0
      %2664 = vmatprep.subr.bf16.mxu0 0
      %2665 = vmatpush1.bf16.msra.mxu0 0
      %2666 = vmatprep.subr.bf16.mxu0 0
      %2667 = vmatpush1.bf16.msra.mxu0 0
      %2668 = vmatprep.subr.bf16.mxu0 0
      %2669 = vmatpush1.bf16.msra.mxu0 0
      %2670 = vmatprep.subr.bf16.mxu0 0
      %2671 = vmatpush1.bf16.msra.mxu0 0
      %2672 = vmatprep.subr.bf16.mxu0 0
      %2673 = vmatpush1.bf16.msra.mxu0 0
      %2674 = vmatprep.subr.bf16.mxu0 0
      %2675 = vmatpush1.bf16.msra.mxu0 0
      %2676 = vmatprep.subr.bf16.mxu0 0
      %2677 = vmatpush1.bf16.msra.mxu0 0
      %2678 = vmatprep.subr.bf16.mxu0 0
      %2679 = vmatpush1.bf16.msra.mxu0 0
      %2680 = vmatprep.subr.bf16.mxu0 0
      %2681 = vmatpush1.bf16.msra.mxu0 0
      %2682 = vmatprep.subr.bf16.mxu0 0
      %2683 = vmatpush1.bf16.msra.mxu0 0
      %2684 = vmatprep.subr.bf16.mxu0 0
      %2685 = vmatpush1.bf16.msra.mxu0 0
      %2686 = vmatprep.mubr.bf16.mxu0 0
      %2687 = vmatmul.mubr.bf16.gmra.mrb[0].mxu0 %v2646
      %v2688 = vpop.f32.mrb[0].mxu0
      %v2689 = vadd.f32 0.0, %v2688
      %v2690 = vpop.f32.mrb[0].mxu0
      %v2691 = vadd.f32 0.0, %v2690
      %v2692 = vpop.f32.mrb[0].mxu0
      %v2693 = vadd.f32 0.0, %v2692
      %v2694 = vpop.f32.mrb[0].mxu0
      %v2695 = vadd.f32 0.0, %v2694
      %2696 = vdwg.mxu0
      %v2697 = vadd.f32 %v2619, %v2689
      %v2698 = vadd.f32 %v2620, %v2691
      %v2699 = vadd.f32 %v2621, %v2693
      %v2700 = vadd.f32 %v2622, %v2695
      %v2701 = vld [vmem:[%s6] sm:$0xff]
      %v2702 = vld [vmem:[%s6 + $0x8] sm:$0xff]
      %2704 = vset.pattern.permute.xlu0 0
      %2705 = vperm.xlu0 %2704, %v2701
      %v2706 = vpop.permute.xlu0 %2705
      %2709 = vset.pattern.permute.xlu0 0
      %2710 = vperm.xlu0 %2709, %v2702
      %v2711 = vpop.permute.xlu0 %2710
      %v2713 = vadd.f32 %v2697, %v2706
      %v2714 = vadd.f32 %v2698, %v2706
      %v2715 = vadd.f32 %v2699, %v2711
      %v2716 = vadd.f32 %v2700, %v2711
      %vm2717 = vcmp.ge.f32.partialorder %v2713, 0.0
      %vm2718 = vcmp.ge.f32.partialorder %v2714, 0.0
      %vm2719 = vcmp.ge.f32.partialorder %v2715, 0.0
      %vm2720 = vcmp.ge.f32.partialorder %v2716, 0.0
      %v2721 = vmul.f32 %v2713, 0.01
      %v2722 = vmul.f32 %v2714, 0.01
      %v2723 = vmul.f32 %v2715, 0.01
      %v2724 = vmul.f32 %v2716, 0.01
      %v2725 = vsel %vm2717, %v2713, %v2721
      %v2726 = vsel %vm2718, %v2714, %v2722
      %v2727 = vsel %vm2719, %v2715, %v2723
      %v2728 = vsel %vm2720, %v2716, %v2724
      %2729 = vst [vmem:[#allocation3 + $0x10] sm:$0xf] %v2725
      %2730 = vst [vmem:[#allocation3 + $0x18] sm:$0xf] %v2726
      %v2731 = vpack.c.bf16 %v2727, %v2725
      %v2732 = vpack.c.bf16 %v2728, %v2726
      %v2735 = vrot.slane %v2731, 2
      %v2736 = vrot.slane %v2732, 2
      %2739 = vst [vmem:[#allocation2 + $0x8] sm:$0x3f] %v2735
      %2740 = vst [vmem:[#allocation2 + $0x10] sm:$0x3f] %v2736
      %v2741 = vld [vmem:[#allocation2] sm:$0x3f]
      %v2742 = vld [vmem:[#allocation2 + $0x8] sm:$0x3f]
      %v2743 = vld [vmem:[#allocation2 + $0x10] sm:$0x3f]
      %v2744 = vsel %vm564, %v2741, 0
      %v2745 = vsel %vm565, %v2742, 0
      %v2746 = vsel %vm566, %v2743, 0
      %v2747 = vld [vmem:[%s7] sm:$0x3]
      %s2748 = scalar_lea.vmem %s7, 2
      %v2749 = vld [vmem:[%s2748] sm:$0x3]
      %2753 = vrot.lane.b32.xlu0 %v2741, 16
      %v2754 = vpop.permute.xlu0 %2753
      %2755 = vrot.lane.b32.xlu0 %v2742, 16
      %v2756 = vpop.permute.xlu0 %2755
      %2757 = vrot.lane.b32.xlu0 %v2743, 16
      %v2758 = vpop.permute.xlu0 %2757
      %v2759 = vsel %vm589, %v2754, %v2756
      %v2760 = vsel %vm589, %v2756, %v2758
      %v2762 = vsel %vm1322, %v2749, 0
      %v2765 = vsel %vm1326, %v2759, 0
      %v2768 = vsel %vm1326, %v2760, 0
      %2770 = vmatprep.subr.bf16.mxu0 %v2768
      %2771 = vmatpush1.bf16.msra.mxu0 %v2765
      %2772 = vmatprep.subr.bf16.mxu0 0
      %2773 = vmatpush1.bf16.msra.mxu0 0
      %2774 = vmatprep.subr.bf16.mxu0 0
      %2775 = vmatpush1.bf16.msra.mxu0 0
      %2776 = vmatprep.subr.bf16.mxu0 0
      %2777 = vmatpush1.bf16.msra.mxu0 0
      %2778 = vmatprep.subr.bf16.mxu0 0
      %2779 = vmatpush1.bf16.msra.mxu0 0
      %2780 = vmatprep.subr.bf16.mxu0 0
      %2781 = vmatpush1.bf16.msra.mxu0 0
      %2782 = vmatprep.subr.bf16.mxu0 0
      %2783 = vmatpush1.bf16.msra.mxu0 0
      %2784 = vmatprep.subr.bf16.mxu0 0
      %2785 = vmatpush1.bf16.msra.mxu0 0
      %2786 = vmatprep.subr.bf16.mxu0 0
      %2787 = vmatpush1.bf16.msra.mxu0 0
      %2788 = vmatprep.subr.bf16.mxu0 0
      %2789 = vmatpush1.bf16.msra.mxu0 0
      %2790 = vmatprep.subr.bf16.mxu0 0
      %2791 = vmatpush1.bf16.msra.mxu0 0
      %2792 = vmatprep.subr.bf16.mxu0 0
      %2793 = vmatpush1.bf16.msra.mxu0 0
      %2794 = vmatprep.subr.bf16.mxu0 0
      %2795 = vmatpush1.bf16.msra.mxu0 0
      %2796 = vmatprep.subr.bf16.mxu0 0
      %2797 = vmatpush1.bf16.msra.mxu0 0
      %2798 = vmatprep.subr.bf16.mxu0 0
      %2799 = vmatpush1.bf16.msra.mxu0 0
      %2800 = vmatprep.subr.bf16.mxu0 0
      %2801 = vmatpush1.bf16.msra.mxu0 0
      %2802 = vmatprep.mubr.bf16.mxu0 0
      %2803 = vmatmul.mubr.bf16.gmra.mrb[0].mxu0 %v2762
      %v2804 = vpop.f32.mrb[0].mxu0
      %v2805 = vadd.f32 0.0, %v2804
      %v2806 = vpop.f32.mrb[0].mxu0
      %v2807 = vadd.f32 0.0, %v2806
      %v2808 = vpop.f32.mrb[0].mxu0
      %v2809 = vpop.f32.mrb[0].mxu0
      %2810 = vdwg.mxu0
      %2814 = vrot.lane.b32.xlu0 %v2744, 17
      %v2815 = vpop.permute.xlu0 %2814
      %2816 = vrot.lane.b32.xlu0 %v2745, 17
      %v2817 = vpop.permute.xlu0 %2816
      %2818 = vrot.lane.b32.xlu0 %v2746, 17
      %v2819 = vpop.permute.xlu0 %2818
      %v2820 = vsel %vm655, %v2815, %v2817
      %v2821 = vsel %vm655, %v2817, %v2819
      %v2823 = vsel %vm1322, %v2747, 0
      %v2826 = vsel %vm1326, %v2820, 0
      %v2829 = vsel %vm1326, %v2821, 0
      %2831 = vmatprep.subr.bf16.mxu0 %v2829
      %2832 = vmatpush1.bf16.msra.mxu0 %v2826
      %2833 = vmatprep.subr.bf16.mxu0 0
      %2834 = vmatpush1.bf16.msra.mxu0 0
      %2835 = vmatprep.subr.bf16.mxu0 0
      %2836 = vmatpush1.bf16.msra.mxu0 0
      %2837 = vmatprep.subr.bf16.mxu0 0
      %2838 = vmatpush1.bf16.msra.mxu0 0
      %2839 = vmatprep.subr.bf16.mxu0 0
      %2840 = vmatpush1.bf16.msra.mxu0 0
      %2841 = vmatprep.subr.bf16.mxu0 0
      %2842 = vmatpush1.bf16.msra.mxu0 0
      %2843 = vmatprep.subr.bf16.mxu0 0
      %2844 = vmatpush1.bf16.msra.mxu0 0
      %2845 = vmatprep.subr.bf16.mxu0 0
      %2846 = vmatpush1.bf16.msra.mxu0 0
      %2847 = vmatprep.subr.bf16.mxu0 0
      %2848 = vmatpush1.bf16.msra.mxu0 0
      %2849 = vmatprep.subr.bf16.mxu0 0
      %2850 = vmatpush1.bf16.msra.mxu0 0
      %2851 = vmatprep.subr.bf16.mxu0 0
      %2852 = vmatpush1.bf16.msra.mxu0 0
      %2853 = vmatprep.subr.bf16.mxu0 0
      %2854 = vmatpush1.bf16.msra.mxu0 0
      %2855 = vmatprep.subr.bf16.mxu0 0
      %2856 = vmatpush1.bf16.msra.mxu0 0
      %2857 = vmatprep.subr.bf16.mxu0 0
      %2858 = vmatpush1.bf16.msra.mxu0 0
      %2859 = vmatprep.subr.bf16.mxu0 0
      %2860 = vmatpush1.bf16.msra.mxu0 0
      %2861 = vmatprep.subr.bf16.mxu0 0
      %2862 = vmatpush1.bf16.msra.mxu0 0
      %2863 = vmatprep.mubr.bf16.mxu0 0
      %2864 = vmatmul.mubr.bf16.gmra.mrb[0].mxu0 %v2823
      %v2865 = vpop.f32.mrb[0].mxu0
      %v2866 = vadd.f32 %v2805, %v2865
      %v2867 = vpop.f32.mrb[0].mxu0
      %v2868 = vadd.f32 %v2807, %v2867
      %v2869 = vpop.f32.mrb[0].mxu0
      %v2870 = vpop.f32.mrb[0].mxu0
      %2871 = vdwg.mxu0
      %v2872 = vsel %vm726, %v2741, 0
      %v2873 = vsel %vm727, %v2742, 0
      %v2874 = vsel %vm728, %v2743, 0
      %s2875 = scalar_lea.vmem %s7, 4
      %v2876 = vld [vmem:[%s2875] sm:$0x3]
      %2880 = vrot.lane.b32.xlu0 %v2872, 15
      %v2881 = vpop.permute.xlu0 %2880
      %2882 = vrot.lane.b32.xlu0 %v2873, 15
      %v2883 = vpop.permute.xlu0 %2882
      %2884 = vrot.lane.b32.xlu0 %v2874, 15
      %v2885 = vpop.permute.xlu0 %2884
      %v2886 = vsel %vm749, %v2881, %v2883
      %v2887 = vsel %vm749, %v2883, %v2885
      %v2889 = vsel %vm1322, %v2876, 0
      %v2892 = vsel %vm1326, %v2886, 0
      %v2895 = vsel %vm1326, %v2887, 0
      %2897 = vmatprep.subr.bf16.mxu0 %v2895
      %2898 = vmatpush1.bf16.msra.mxu0 %v2892
      %2899 = vmatprep.subr.bf16.mxu0 0
      %2900 = vmatpush1.bf16.msra.mxu0 0
      %2901 = vmatprep.subr.bf16.mxu0 0
      %2902 = vmatpush1.bf16.msra.mxu0 0
      %2903 = vmatprep.subr.bf16.mxu0 0
      %2904 = vmatpush1.bf16.msra.mxu0 0
      %2905 = vmatprep.subr.bf16.mxu0 0
      %2906 = vmatpush1.bf16.msra.mxu0 0
      %2907 = vmatprep.subr.bf16.mxu0 0
      %2908 = vmatpush1.bf16.msra.mxu0 0
      %2909 = vmatprep.subr.bf16.mxu0 0
      %2910 = vmatpush1.bf16.msra.mxu0 0
      %2911 = vmatprep.subr.bf16.mxu0 0
      %2912 = vmatpush1.bf16.msra.mxu0 0
      %2913 = vmatprep.subr.bf16.mxu0 0
      %2914 = vmatpush1.bf16.msra.mxu0 0
      %2915 = vmatprep.subr.bf16.mxu0 0
      %2916 = vmatpush1.bf16.msra.mxu0 0
      %2917 = vmatprep.subr.bf16.mxu0 0
      %2918 = vmatpush1.bf16.msra.mxu0 0
      %2919 = vmatprep.subr.bf16.mxu0 0
      %2920 = vmatpush1.bf16.msra.mxu0 0
      %2921 = vmatprep.subr.bf16.mxu0 0
      %2922 = vmatpush1.bf16.msra.mxu0 0
      %2923 = vmatprep.subr.bf16.mxu0 0
      %2924 = vmatpush1.bf16.msra.mxu0 0
      %2925 = vmatprep.subr.bf16.mxu0 0
      %2926 = vmatpush1.bf16.msra.mxu0 0
      %2927 = vmatprep.subr.bf16.mxu0 0
      %2928 = vmatpush1.bf16.msra.mxu0 0
      %2929 = vmatprep.mubr.bf16.mxu0 0
      %2930 = vmatmul.mubr.bf16.gmra.mrb[0].mxu0 %v2889
      %v2931 = vpop.f32.mrb[0].mxu0
      %v2932 = vadd.f32 0.0, %v2931
      %v2933 = vpop.f32.mrb[0].mxu0
      %v2934 = vadd.f32 0.0, %v2933
      %v2935 = vpop.f32.mrb[0].mxu0
      %v2936 = vpop.f32.mrb[0].mxu0
      %2937 = vdwg.mxu0
      %v2938 = vadd.f32 %v2866, %v2932
      %v2939 = vadd.f32 %v2868, %v2934
      %v2940 = vsel %vm810, %v2741, 0
      %v2941 = vsel %vm811, %v2742, 0
      %v2942 = vsel %vm812, %v2743, 0
      %s2943 = scalar_lea.vmem %s7, 6
      %v2944 = vld [vmem:[%s2943] sm:$0x3]
      %2948 = vrot.lane.b32.xlu0 %v2940, 1
      %v2949 = vpop.permute.xlu0 %2948
      %2950 = vrot.lane.b32.xlu0 %v2941, 1
      %v2951 = vpop.permute.xlu0 %2950
      %2952 = vrot.lane.b32.xlu0 %v2942, 1
      %v2953 = vpop.permute.xlu0 %2952
      %v2954 = vsel %vm833, %v2949, %v2951
      %v2955 = vsel %vm833, %v2951, %v2953
      %v2957 = vsel %vm1322, %v2944, 0
      %v2960 = vsel %vm1326, %v2954, 0
      %v2963 = vsel %vm1326, %v2955, 0
      %2965 = vmatprep.subr.bf16.mxu0 %v2963
      %2966 = vmatpush1.bf16.msra.mxu0 %v2960
      %2967 = vmatprep.subr.bf16.mxu0 0
      %2968 = vmatpush1.bf16.msra.mxu0 0
      %2969 = vmatprep.subr.bf16.mxu0 0
      %2970 = vmatpush1.bf16.msra.mxu0 0
      %2971 = vmatprep.subr.bf16.mxu0 0
      %2972 = vmatpush1.bf16.msra.mxu0 0
      %2973 = vmatprep.subr.bf16.mxu0 0
      %2974 = vmatpush1.bf16.msra.mxu0 0
      %2975 = vmatprep.subr.bf16.mxu0 0
      %2976 = vmatpush1.bf16.msra.mxu0 0
      %2977 = vmatprep.subr.bf16.mxu0 0
      %2978 = vmatpush1.bf16.msra.mxu0 0
      %2979 = vmatprep.subr.bf16.mxu0 0
      %2980 = vmatpush1.bf16.msra.mxu0 0
      %2981 = vmatprep.subr.bf16.mxu0 0
      %2982 = vmatpush1.bf16.msra.mxu0 0
      %2983 = vmatprep.subr.bf16.mxu0 0
      %2984 = vmatpush1.bf16.msra.mxu0 0
      %2985 = vmatprep.subr.bf16.mxu0 0
      %2986 = vmatpush1.bf16.msra.mxu0 0
      %2987 = vmatprep.subr.bf16.mxu0 0
      %2988 = vmatpush1.bf16.msra.mxu0 0
      %2989 = vmatprep.subr.bf16.mxu0 0
      %2990 = vmatpush1.bf16.msra.mxu0 0
      %2991 = vmatprep.subr.bf16.mxu0 0
      %2992 = vmatpush1.bf16.msra.mxu0 0
      %2993 = vmatprep.subr.bf16.mxu0 0
      %2994 = vmatpush1.bf16.msra.mxu0 0
      %2995 = vmatprep.subr.bf16.mxu0 0
      %2996 = vmatpush1.bf16.msra.mxu0 0
      %2997 = vmatprep.mubr.bf16.mxu0 0
      %2998 = vmatmul.mubr.bf16.gmra.mrb[0].mxu0 %v2957
      %v2999 = vpop.f32.mrb[0].mxu0
      %v3000 = vadd.f32 0.0, %v2999
      %v3001 = vpop.f32.mrb[0].mxu0
      %v3002 = vadd.f32 0.0, %v3001
      %v3003 = vpop.f32.mrb[0].mxu0
      %v3004 = vpop.f32.mrb[0].mxu0
      %3005 = vdwg.mxu0
      %v3006 = vadd.f32 %v2938, %v3000
      %v3007 = vadd.f32 %v2939, %v3002
      %s3008 = scalar_lea.vmem %s7, 8
      %v3009 = vld [vmem:[%s3008] sm:$0x3]
      %v3011 = vsel %vm1322, %v3009, 0
      %v3014 = vsel %vm1326, %v2742, 0
      %v3017 = vsel %vm1326, %v2743, 0
      %3019 = vmatprep.subr.bf16.mxu0 %v3017
      %3020 = vmatpush1.bf16.msra.mxu0 %v3014
      %3021 = vmatprep.subr.bf16.mxu0 0
      %3022 = vmatpush1.bf16.msra.mxu0 0
      %3023 = vmatprep.subr.bf16.mxu0 0
      %3024 = vmatpush1.bf16.msra.mxu0 0
      %3025 = vmatprep.subr.bf16.mxu0 0
      %3026 = vmatpush1.bf16.msra.mxu0 0
      %3027 = vmatprep.subr.bf16.mxu0 0
      %3028 = vmatpush1.bf16.msra.mxu0 0
      %3029 = vmatprep.subr.bf16.mxu0 0
      %3030 = vmatpush1.bf16.msra.mxu0 0
      %3031 = vmatprep.subr.bf16.mxu0 0
      %3032 = vmatpush1.bf16.msra.mxu0 0
      %3033 = vmatprep.subr.bf16.mxu0 0
      %3034 = vmatpush1.bf16.msra.mxu0 0
      %3035 = vmatprep.subr.bf16.mxu0 0
      %3036 = vmatpush1.bf16.msra.mxu0 0
      %3037 = vmatprep.subr.bf16.mxu0 0
      %3038 = vmatpush1.bf16.msra.mxu0 0
      %3039 = vmatprep.subr.bf16.mxu0 0
      %3040 = vmatpush1.bf16.msra.mxu0 0
      %3041 = vmatprep.subr.bf16.mxu0 0
      %3042 = vmatpush1.bf16.msra.mxu0 0
      %3043 = vmatprep.subr.bf16.mxu0 0
      %3044 = vmatpush1.bf16.msra.mxu0 0
      %3045 = vmatprep.subr.bf16.mxu0 0
      %3046 = vmatpush1.bf16.msra.mxu0 0
      %3047 = vmatprep.subr.bf16.mxu0 0
      %3048 = vmatpush1.bf16.msra.mxu0 0
      %3049 = vmatprep.subr.bf16.mxu0 0
      %3050 = vmatpush1.bf16.msra.mxu0 0
      %3051 = vmatprep.mubr.bf16.mxu0 0
      %3052 = vmatmul.mubr.bf16.gmra.mrb[0].mxu0 %v3011
      %v3053 = vpop.f32.mrb[0].mxu0
      %v3054 = vadd.f32 0.0, %v3053
      %v3055 = vpop.f32.mrb[0].mxu0
      %v3056 = vadd.f32 0.0, %v3055
      %v3057 = vpop.f32.mrb[0].mxu0
      %v3058 = vpop.f32.mrb[0].mxu0
      %3059 = vdwg.mxu0
      %v3060 = vadd.f32 %v3006, %v3054
      %v3061 = vadd.f32 %v3007, %v3056
      %v3062 = vld [vmem:[#allocation2 + $0x8] sm:$0x3f]
      %v3063 = vld [vmem:[#allocation2 + $0x10] sm:$0x3f]
      %v3064 = vld [vmem:[#allocation2 + $0x18] sm:$0x3f]
      %v3065 = vsel %vm954, %v3062, 0
      %v3066 = vsel %vm955, %v3063, 0
      %v3067 = vsel %vm956, %v3064, 0
      %s3068 = scalar_lea.vmem %s7, 10
      %v3069 = vld [vmem:[%s3068] sm:$0x3]
      %3073 = vrot.lane.b32.xlu0 %v3065, 127
      %v3074 = vpop.permute.xlu0 %3073
      %3075 = vrot.lane.b32.xlu0 %v3066, 127
      %v3076 = vpop.permute.xlu0 %3075
      %3077 = vrot.lane.b32.xlu0 %v3067, 127
      %v3078 = vpop.permute.xlu0 %3077
      %v3079 = vsel %vm808, %v3074, %v3076
      %v3080 = vsel %vm808, %v3076, %v3078
      %v3082 = vsel %vm1322, %v3069, 0
      %v3085 = vsel %vm1326, %v3079, 0
      %v3088 = vsel %vm1326, %v3080, 0
      %3090 = vmatprep.subr.bf16.mxu0 %v3088
      %3091 = vmatpush1.bf16.msra.mxu0 %v3085
      %3092 = vmatprep.subr.bf16.mxu0 0
      %3093 = vmatpush1.bf16.msra.mxu0 0
      %3094 = vmatprep.subr.bf16.mxu0 0
      %3095 = vmatpush1.bf16.msra.mxu0 0
      %3096 = vmatprep.subr.bf16.mxu0 0
      %3097 = vmatpush1.bf16.msra.mxu0 0
      %3098 = vmatprep.subr.bf16.mxu0 0
      %3099 = vmatpush1.bf16.msra.mxu0 0
      %3100 = vmatprep.subr.bf16.mxu0 0
      %3101 = vmatpush1.bf16.msra.mxu0 0
      %3102 = vmatprep.subr.bf16.mxu0 0
      %3103 = vmatpush1.bf16.msra.mxu0 0
      %3104 = vmatprep.subr.bf16.mxu0 0
      %3105 = vmatpush1.bf16.msra.mxu0 0
      %3106 = vmatprep.subr.bf16.mxu0 0
      %3107 = vmatpush1.bf16.msra.mxu0 0
      %3108 = vmatprep.subr.bf16.mxu0 0
      %3109 = vmatpush1.bf16.msra.mxu0 0
      %3110 = vmatprep.subr.bf16.mxu0 0
      %3111 = vmatpush1.bf16.msra.mxu0 0
      %3112 = vmatprep.subr.bf16.mxu0 0
      %3113 = vmatpush1.bf16.msra.mxu0 0
      %3114 = vmatprep.subr.bf16.mxu0 0
      %3115 = vmatpush1.bf16.msra.mxu0 0
      %3116 = vmatprep.subr.bf16.mxu0 0
      %3117 = vmatpush1.bf16.msra.mxu0 0
      %3118 = vmatprep.subr.bf16.mxu0 0
      %3119 = vmatpush1.bf16.msra.mxu0 0
      %3120 = vmatprep.subr.bf16.mxu0 0
      %3121 = vmatpush1.bf16.msra.mxu0 0
      %3122 = vmatprep.mubr.bf16.mxu0 0
      %3123 = vmatmul.mubr.bf16.gmra.mrb[0].mxu0 %v3082
      %v3124 = vpop.f32.mrb[0].mxu0
      %v3125 = vadd.f32 0.0, %v3124
      %v3126 = vpop.f32.mrb[0].mxu0
      %v3127 = vadd.f32 0.0, %v3126
      %v3128 = vpop.f32.mrb[0].mxu0
      %v3129 = vpop.f32.mrb[0].mxu0
      %3130 = vdwg.mxu0
      %v3131 = vadd.f32 %v3060, %v3125
      %v3132 = vadd.f32 %v3061, %v3127
      %v3133 = vsel %vm1036, %v3062, 0
      %v3134 = vsel %vm1037, %v3063, 0
      %v3135 = vsel %vm1038, %v3064, 0
      %s3136 = scalar_lea.vmem %s7, 12
      %v3137 = vld [vmem:[%s3136] sm:$0x3]
      %3141 = vrot.lane.b32.xlu0 %v3133, 113
      %v3142 = vpop.permute.xlu0 %3141
      %3143 = vrot.lane.b32.xlu0 %v3134, 113
      %v3144 = vpop.permute.xlu0 %3143
      %3145 = vrot.lane.b32.xlu0 %v3135, 113
      %v3146 = vpop.permute.xlu0 %3145
      %v3147 = vsel %vm724, %v3142, %v3144
      %v3148 = vsel %vm724, %v3144, %v3146
      %v3150 = vsel %vm1322, %v3137, 0
      %v3153 = vsel %vm1326, %v3147, 0
      %v3156 = vsel %vm1326, %v3148, 0
      %3158 = vmatprep.subr.bf16.mxu0 %v3156
      %3159 = vmatpush1.bf16.msra.mxu0 %v3153
      %3160 = vmatprep.subr.bf16.mxu0 0
      %3161 = vmatpush1.bf16.msra.mxu0 0
      %3162 = vmatprep.subr.bf16.mxu0 0
      %3163 = vmatpush1.bf16.msra.mxu0 0
      %3164 = vmatprep.subr.bf16.mxu0 0
      %3165 = vmatpush1.bf16.msra.mxu0 0
      %3166 = vmatprep.subr.bf16.mxu0 0
      %3167 = vmatpush1.bf16.msra.mxu0 0
      %3168 = vmatprep.subr.bf16.mxu0 0
      %3169 = vmatpush1.bf16.msra.mxu0 0
      %3170 = vmatprep.subr.bf16.mxu0 0
      %3171 = vmatpush1.bf16.msra.mxu0 0
      %3172 = vmatprep.subr.bf16.mxu0 0
      %3173 = vmatpush1.bf16.msra.mxu0 0
      %3174 = vmatprep.subr.bf16.mxu0 0
      %3175 = vmatpush1.bf16.msra.mxu0 0
      %3176 = vmatprep.subr.bf16.mxu0 0
      %3177 = vmatpush1.bf16.msra.mxu0 0
      %3178 = vmatprep.subr.bf16.mxu0 0
      %3179 = vmatpush1.bf16.msra.mxu0 0
      %3180 = vmatprep.subr.bf16.mxu0 0
      %3181 = vmatpush1.bf16.msra.mxu0 0
      %3182 = vmatprep.subr.bf16.mxu0 0
      %3183 = vmatpush1.bf16.msra.mxu0 0
      %3184 = vmatprep.subr.bf16.mxu0 0
      %3185 = vmatpush1.bf16.msra.mxu0 0
      %3186 = vmatprep.subr.bf16.mxu0 0
      %3187 = vmatpush1.bf16.msra.mxu0 0
      %3188 = vmatprep.subr.bf16.mxu0 0
      %3189 = vmatpush1.bf16.msra.mxu0 0
      %3190 = vmatprep.mubr.bf16.mxu0 0
      %3191 = vmatmul.mubr.bf16.gmra.mrb[0].mxu0 %v3150
      %v3192 = vpop.f32.mrb[0].mxu0
      %v3193 = vadd.f32 0.0, %v3192
      %v3194 = vpop.f32.mrb[0].mxu0
      %v3195 = vadd.f32 0.0, %v3194
      %v3196 = vpop.f32.mrb[0].mxu0
      %v3197 = vpop.f32.mrb[0].mxu0
      %3198 = vdwg.mxu0
      %v3199 = vadd.f32 %v3131, %v3193
      %v3200 = vadd.f32 %v3132, %v3195
      %s3201 = scalar_lea.vmem %s7, 14
      %v3202 = vld [vmem:[%s3201] sm:$0x3]
      %3206 = vrot.lane.b32.xlu0 %v3062, 112
      %v3207 = vpop.permute.xlu0 %3206
      %3208 = vrot.lane.b32.xlu0 %v3063, 112
      %v3209 = vpop.permute.xlu0 %3208
      %3210 = vrot.lane.b32.xlu0 %v3064, 112
      %v3211 = vpop.permute.xlu0 %3210
      %v3212 = vsel %vm1130, %v3207, %v3209
      %v3213 = vsel %vm1130, %v3209, %v3211
      %v3215 = vsel %vm1322, %v3202, 0
      %v3218 = vsel %vm1326, %v3212, 0
      %v3221 = vsel %vm1326, %v3213, 0
      %3223 = vmatprep.subr.bf16.mxu0 %v3221
      %3224 = vmatpush1.bf16.msra.mxu0 %v3218
      %3225 = vmatprep.subr.bf16.mxu0 0
      %3226 = vmatpush1.bf16.msra.mxu0 0
      %3227 = vmatprep.subr.bf16.mxu0 0
      %3228 = vmatpush1.bf16.msra.mxu0 0
      %3229 = vmatprep.subr.bf16.mxu0 0
      %3230 = vmatpush1.bf16.msra.mxu0 0
      %3231 = vmatprep.subr.bf16.mxu0 0
      %3232 = vmatpush1.bf16.msra.mxu0 0
      %3233 = vmatprep.subr.bf16.mxu0 0
      %3234 = vmatpush1.bf16.msra.mxu0 0
      %3235 = vmatprep.subr.bf16.mxu0 0
      %3236 = vmatpush1.bf16.msra.mxu0 0
      %3237 = vmatprep.subr.bf16.mxu0 0
      %3238 = vmatpush1.bf16.msra.mxu0 0
      %3239 = vmatprep.subr.bf16.mxu0 0
      %3240 = vmatpush1.bf16.msra.mxu0 0
      %3241 = vmatprep.subr.bf16.mxu0 0
      %3242 = vmatpush1.bf16.msra.mxu0 0
      %3243 = vmatprep.subr.bf16.mxu0 0
      %3244 = vmatpush1.bf16.msra.mxu0 0
      %3245 = vmatprep.subr.bf16.mxu0 0
      %3246 = vmatpush1.bf16.msra.mxu0 0
      %3247 = vmatprep.subr.bf16.mxu0 0
      %3248 = vmatpush1.bf16.msra.mxu0 0
      %3249 = vmatprep.subr.bf16.mxu0 0
      %3250 = vmatpush1.bf16.msra.mxu0 0
      %3251 = vmatprep.subr.bf16.mxu0 0
      %3252 = vmatpush1.bf16.msra.mxu0 0
      %3253 = vmatprep.subr.bf16.mxu0 0
      %3254 = vmatpush1.bf16.msra.mxu0 0
      %3255 = vmatprep.mubr.bf16.mxu0 0
      %3256 = vmatmul.mubr.bf16.gmra.mrb[0].mxu0 %v3215
      %v3257 = vpop.f32.mrb[0].mxu0
      %v3258 = vadd.f32 0.0, %v3257
      %v3259 = vpop.f32.mrb[0].mxu0
      %v3260 = vadd.f32 0.0, %v3259
      %v3261 = vpop.f32.mrb[0].mxu0
      %v3262 = vpop.f32.mrb[0].mxu0
      %3263 = vdwg.mxu0
      %v3264 = vadd.f32 %v3199, %v3258
      %v3265 = vadd.f32 %v3200, %v3260
      %v3266 = vsel %vm1190, %v3062, 0
      %v3267 = vsel %vm1191, %v3063, 0
      %v3268 = vsel %vm1192, %v3064, 0
      %s3269 = scalar_lea.vmem %s7, 16
      %v3270 = vld [vmem:[%s3269] sm:$0x3]
      %3274 = vrot.lane.b32.xlu0 %v3266, 111
      %v3275 = vpop.permute.xlu0 %3274
      %3276 = vrot.lane.b32.xlu0 %v3267, 111
      %v3277 = vpop.permute.xlu0 %3276
      %3278 = vrot.lane.b32.xlu0 %v3268, 111
      %v3279 = vpop.permute.xlu0 %3278
      %v3280 = vsel %vm562, %v3275, %v3277
      %v3281 = vsel %vm562, %v3277, %v3279
      %v3283 = vsel %vm1322, %v3270, 0
      %v3286 = vsel %vm1326, %v3280, 0
      %v3289 = vsel %vm1326, %v3281, 0
      %3291 = vmatprep.subr.bf16.mxu0 %v3289
      %3292 = vmatpush1.bf16.msra.mxu0 %v3286
      %3293 = vmatprep.subr.bf16.mxu0 0
      %3294 = vmatpush1.bf16.msra.mxu0 0
      %3295 = vmatprep.subr.bf16.mxu0 0
      %3296 = vmatpush1.bf16.msra.mxu0 0
      %3297 = vmatprep.subr.bf16.mxu0 0
      %3298 = vmatpush1.bf16.msra.mxu0 0
      %3299 = vmatprep.subr.bf16.mxu0 0
      %3300 = vmatpush1.bf16.msra.mxu0 0
      %3301 = vmatprep.subr.bf16.mxu0 0
      %3302 = vmatpush1.bf16.msra.mxu0 0
      %3303 = vmatprep.subr.bf16.mxu0 0
      %3304 = vmatpush1.bf16.msra.mxu0 0
      %3305 = vmatprep.subr.bf16.mxu0 0
      %3306 = vmatpush1.bf16.msra.mxu0 0
      %3307 = vmatprep.subr.bf16.mxu0 0
      %3308 = vmatpush1.bf16.msra.mxu0 0
      %3309 = vmatprep.subr.bf16.mxu0 0
      %3310 = vmatpush1.bf16.msra.mxu0 0
      %3311 = vmatprep.subr.bf16.mxu0 0
      %3312 = vmatpush1.bf16.msra.mxu0 0
      %3313 = vmatprep.subr.bf16.mxu0 0
      %3314 = vmatpush1.bf16.msra.mxu0 0
      %3315 = vmatprep.subr.bf16.mxu0 0
      %3316 = vmatpush1.bf16.msra.mxu0 0
      %3317 = vmatprep.subr.bf16.mxu0 0
      %3318 = vmatpush1.bf16.msra.mxu0 0
      %3319 = vmatprep.subr.bf16.mxu0 0
      %3320 = vmatpush1.bf16.msra.mxu0 0
      %3321 = vmatprep.subr.bf16.mxu0 0
      %3322 = vmatpush1.bf16.msra.mxu0 0
      %3323 = vmatprep.mubr.bf16.mxu0 0
      %3324 = vmatmul.mubr.bf16.gmra.mrb[0].mxu0 %v3283
      %v3325 = vpop.f32.mrb[0].mxu0
      %v3326 = vadd.f32 0.0, %v3325
      %v3327 = vpop.f32.mrb[0].mxu0
      %v3328 = vadd.f32 0.0, %v3327
      %v3329 = vpop.f32.mrb[0].mxu0
      %v3330 = vpop.f32.mrb[0].mxu0
      %3331 = vdwg.mxu0
      %v3332 = vadd.f32 %v3264, %v3326
      %v3333 = vadd.f32 %v3265, %v3328
      %v3334 = vld [vmem:[%s8] sm:$0xf]
      %3336 = vset.pattern.permute.xlu0 0
      %3337 = vperm.xlu0 %3336, %v3334
      %v3338 = vpop.permute.xlu0 %3337
      %v3340 = vadd.f32 %v3332, %v3338
      %v3341 = vadd.f32 %v3333, %v3338
      %v3344 = vrot.slane %v3340, 4
      %v3345 = vrot.slane %v3341, 4
      %3348 = vst [vmem:[#allocation3 + $0x10] sm:$0xf0] %v3344
      %3349 = vst [vmem:[#allocation3 + $0x18] sm:$0xf0] %v3345
      %v3350 = vld [vmem:[#allocation3] sm:$0xff]
      %v3351 = vld [vmem:[#allocation3 + $0x8] sm:$0xff]
      %v3352 = vld [vmem:[#allocation3 + $0x10] sm:$0xff]
      %v3353 = vld [vmem:[#allocation3 + $0x18] sm:$0xff]
      %v3354 = vadd.f32 %v3350, %v3351
      %3355 = vadd.xlane.f32.xlu0 %v3354
      %v3356 = vpop.xlane.xlu0 %3355
      %v3357 = vadd.f32 %v3352, %v3353
      %3358 = vadd.xlane.f32.xlu0 %v3357
      %v3359 = vpop.xlane.xlu0 %3358
      %v3360 = vmul.f32 %v3356, 0.00390625
      %v3361 = vmul.f32 %v3359, 0.00390625
      %v3362 = vsub.f32 %v3350, %v3360
      %v3363 = vsub.f32 %v3351, %v3360
      %v3364 = vsub.f32 %v3352, %v3361
      %v3365 = vsub.f32 %v3353, %v3361
      %v3366 = vmul.f32 %v3362, %v3362
      %v3367 = vmul.f32 %v3363, %v3363
      %v3368 = vmul.f32 %v3364, %v3364
      %v3369 = vmul.f32 %v3365, %v3365
      %v3370 = vadd.f32 %v3366, %v3367
      %3371 = vadd.xlane.f32.xlu0 %v3370
      %v3372 = vpop.xlane.xlu0 %3371
      %v3373 = vadd.f32 %v3368, %v3369
      %3374 = vadd.xlane.f32.xlu0 %v3373
      %v3375 = vpop.xlane.xlu0 %3374
      %v3376 = vmul.f32 %v3372, 0.00390625
      %v3377 = vmul.f32 %v3375, 0.00390625
      %v3378 = vrsqrt.pop %v3376
      %v3379 = vmul.f32 %v3376, %v3378
      %vm3380 = vcmp.eq.f32.partialorder %v3376, inf
      %v3381 = vsel %vm3380, %v3376, %v3379
      %vm3382 = vcmp.eq.f32.partialorder %v3376, 0.0
      %v3383 = vand.u32 %v3376, 2147483648
      %v3384 = vsel %vm3382, %v3383, %v3381
      %v3385 = vrsqrt.pop %v3377
      %v3386 = vmul.f32 %v3377, %v3385
      %vm3387 = vcmp.eq.f32.partialorder %v3377, inf
      %v3388 = vsel %vm3387, %v3377, %v3386
      %vm3389 = vcmp.eq.f32.partialorder %v3377, 0.0
      %v3390 = vand.u32 %v3377, 2147483648
      %v3391 = vsel %vm3389, %v3390, %v3388
      %v3392 = vadd.f32 %v3384, %v3360
      %v3393 = vadd.f32 %v3391, %v3361
      %v3394 = vld [vmem:[%s9] sm:$0xff]
      %v3395 = vld [vmem:[%s9 + $0x8] sm:$0xff]
      %v3396 = vmul.f32 %v3394, %v3392
      %v3397 = vmul.f32 %v3395, %v3393
      %vm3398 = vcmask 7168
      %v3399 = vsel %vm3398, %v3396, 0.0
      %v3400 = vsel %vm3398, %v3397, 0.0
      %v3401 = vadd.f32 %v3399, %v3400
      %v3402 = vrot.slane %v3401, 4
      %v3403 = vadd.f32 %v3401, %v3402
      %v3404 = vrot.slane %v3403, 2
      %v3405 = vadd.f32 %v3403, %v3404
      %v3406 = vrot.slane %v3405, 1
      %v3407 = vadd.f32 %v3405, %v3406
      %v3408 = vld [vmem:[#allocation4] sm:$0x1]
      %v3409 = vadd.f32 %v3407, %v3408
      %v3410 = vmax.f32 %v3409, 0.0
      %v3411 = vld [vmem:[%s11] sm:$0xff]
      %v3412 = vld [vmem:[%s11 + $0x8] sm:$0xff]
      %v3413 = vlaneseq
      %v3414 = vshrl.u32 %v3413, 7
      %v3415 = vsub.s32 0, %v3414
      %v3416 = vrot.slane %v3410, %v3415
      %v3417 = vmul.f32 %v3411, %v3416
      %v3418 = vmul.f32 %v3412, %v3416
      %v3419 = vadd.f32 %v3417, 0.0
      %v3420 = vadd.f32 %v3418, 0.0
      %v3421 = vld [vmem:[%s12] sm:$0xff]
      %v3422 = vld [vmem:[%s12 + $0x8] sm:$0xff]
      %v3423 = vadd.f32 %v3419, %v3421
      %v3424 = vadd.f32 %v3420, %v3422
      %v3425 = vxor.u32 %v3423, 2147483648
      %v3426 = vxor.u32 %v3424, 2147483648
      %v3427 = vmul.f32 %v3425, 1.442695
      %v3428 = vpow.pop %v3427
      %v3429 = vmul.f32 %v3426, 1.442695
      %v3430 = vpow.pop %v3429
      %v3431 = vadd.f32 %v3428, 1.0
      %v3432 = vadd.f32 %v3430, 1.0
      %v3433 = vrcp.pop %v3431
      %v3434 = vmul.f32 1.0, %v3433
      %v3435 = vrcp.pop %v3432
      %v3436 = vmul.f32 1.0, %v3435
      %3438 = vset.pattern.permute.xlu0 0
      %3439 = vperm.xlu0 %3438, %v3434
      %v3440 = vpop.permute.xlu0 %3439
      %3443 = vset.pattern.permute.xlu0 0
      %3444 = vperm.xlu0 %3443, %v3436
      %v3445 = vpop.permute.xlu0 %3444
      %v3447 = vmul.f32 %v3350, %v3440
      %v3448 = vmul.f32 %v3351, %v3440
      %v3449 = vmul.f32 %v3352, %v3445
      %v3450 = vmul.f32 %v3353, %v3445
      %v3451 = vld [vmem:[%s13] sm:$0xf]
      %v3452 = vld [vmem:[%s13 + $0x4] sm:$0xf]
      %v3453 = vpack.c.bf16 %v3449, %v3447
      %v3454 = vpack.c.bf16 %v3450, %v3448
      %v3455 = vld [vmem:[%s14] sm:$0xff]
      %v3456 = vld [vmem:[%s14 + $0x8] sm:$0xff]
      %3458 = vset.pattern.permute.xlu0 0
      %3459 = vperm.xlu0 %3458, %v3455
      %v3460 = vpop.permute.xlu0 %3459
      %3463 = vset.pattern.permute.xlu0 0
      %3464 = vperm.xlu0 %3463, %v3456
      %v3465 = vpop.permute.xlu0 %3464
      %v3469 = vunpack.c.l.b16 %v3451
      %v3470 = vunpack.c.l.b16 %v3452
      %v3471 = vpack.c.b16 %v3470, %v3469
      %v3473 = vsel %vm594, %v3471, 0
      %3475 = vmatprep.subr.bf16.mxu0 %v3454
      %3476 = vmatpush1.bf16.msra.mxu0 %v3453
      %3477 = vmatprep.subr.bf16.mxu0 0
      %3478 = vmatpush1.bf16.msra.mxu0 0
      %3479 = vmatprep.subr.bf16.mxu0 0
      %3480 = vmatpush1.bf16.msra.mxu0 0
      %3481 = vmatprep.subr.bf16.mxu0 0
      %3482 = vmatpush1.bf16.msra.mxu0 0
      %3483 = vmatprep.subr.bf16.mxu0 0
      %3484 = vmatpush1.bf16.msra.mxu0 0
      %3485 = vmatprep.subr.bf16.mxu0 0
      %3486 = vmatpush1.bf16.msra.mxu0 0
      %3487 = vmatprep.subr.bf16.mxu0 0
      %3488 = vmatpush1.bf16.msra.mxu0 0
      %3489 = vmatprep.subr.bf16.mxu0 0
      %3490 = vmatpush1.bf16.msra.mxu0 0
      %3491 = vmatprep.subr.bf16.mxu0 0
      %3492 = vmatpush1.bf16.msra.mxu0 0
      %3493 = vmatprep.subr.bf16.mxu0 0
      %3494 = vmatpush1.bf16.msra.mxu0 0
      %3495 = vmatprep.subr.bf16.mxu0 0
      %3496 = vmatpush1.bf16.msra.mxu0 0
      %3497 = vmatprep.subr.bf16.mxu0 0
      %3498 = vmatpush1.bf16.msra.mxu0 0
      %3499 = vmatprep.subr.bf16.mxu0 0
      %3500 = vmatpush1.bf16.msra.mxu0 0
      %3501 = vmatprep.subr.bf16.mxu0 0
      %3502 = vmatpush1.bf16.msra.mxu0 0
      %3503 = vmatprep.subr.bf16.mxu0 0
      %3504 = vmatpush1.bf16.msra.mxu0 0
      %3505 = vmatprep.subr.bf16.mxu0 0
      %3506 = vmatpush1.bf16.msra.mxu0 0
      %3507 = vmatprep.mubr.bf16.mxu0 0
      %3508 = vmatmul.mubr.bf16.gmra.mrb[0].mxu0 %v3473
      %v3509 = vpop.f32.mrb[0].mxu0
      %v3510 = vadd.f32 %v3460, %v3509
      %v3511 = vpop.f32.mrb[0].mxu0
      %v3512 = vadd.f32 %v3460, %v3511
      %v3513 = vpop.f32.mrb[0].mxu0
      %v3514 = vadd.f32 %v3465, %v3513
      %v3515 = vpop.f32.mrb[0].mxu0
      %v3516 = vadd.f32 %v3465, %v3515
      %3517 = vdwg.mxu0
      %v3518 = vld [vmem:[%s491] sm:$0xff]
      %v3519 = vld [vmem:[%s491 + $0x8] sm:$0xff]
      %v3520 = vld [vmem:[%s491 + $0x10] sm:$0xff]
      %v3521 = vld [vmem:[%s491 + $0x18] sm:$0xff]
      %v3522 = vadd.f32 %v3510, %v3518
      %v3523 = vadd.f32 %v3512, %v3519
      %v3524 = vadd.f32 %v3514, %v3520
      %v3525 = vadd.f32 %v3516, %v3521
      %3526 = vst [vmem:[%s496] sm:$0xff] %v3522
      %3527 = vst [vmem:[%s496 + $0x8] sm:$0xff] %v3523
      %3528 = vst [vmem:[%s496 + $0x10] sm:$0xff] %v3524
      %3529 = vst [vmem:[%s496 + $0x18] sm:$0xff] %v3525
      %p3530 = scmp.lt.s32.totalorder %s28, 1
      %s3531 = scalar_select %p3530, %s28, 1
      %s3532 = smul.addr %s3531, 4
      %s3533 = smul.addr %s3532, 8
      %s3534 = scalar_lea.vmem %s15, %s3533
      // Predicated region
      $region81: #{imdb_forward.1} parent=79 // pred_check
        %p3535 = pneg %p366
      $region82: #{imdb_forward.1} parent=79 // pred_check_branch
        %3537 = sbr.rel (%p3535) target = $region84
      $region83: #{imdb_forward.1} parent=79 // pred_region
        _
      $region84: #{imdb_forward.1} parent=79 // pred_fallthru
        _
    $region80: #{imdb_forward.1} parent=5 // pred_fallthru
      _
    %p3538 = scmp.le.s32.totalorder 2, %s23
    // Predicated region
    $region85: #{imdb_forward.1} parent=5 // pred_check
      %p3539 = pneg %p3538
    $region86: #{imdb_forward.1} parent=5 // pred_check_branch
      %3541 = sbr.rel (%p3539) target = $region88
    $region87: #{imdb_forward.1} parent=5 // pred_region
      %s3542 = ssub.s32 %s23, 2
      // Predicated region
      $region89: #{imdb_forward.1} parent=87 // pred_check
        %p3543 = pneg %p372
      $region90: #{imdb_forward.1} parent=87 // pred_check_branch
        %3545 = sbr.rel (%p3543) target = $region92
      $region91: #{imdb_forward.1} parent=87 // pred_region
        %p3546 = scmp.lt.s32.totalorder %s29, 1
        %s3547 = scalar_select %p3546, %s29, 1
        %s3548 = smul.addr %s3547, 4
        %s3549 = smul.addr %s3548, 8
        %s3550 = scalar_lea.vmem %s15, %s3549
      $region92: #{imdb_forward.1} parent=87 // pred_fallthru
        _
    $region88: #{imdb_forward.1} parent=5 // pred_fallthru
      _
  $region6: #{imdb_forward.1} parent=0 // loop_footer
    %s27 = sadd.s32 1, %s23
  $region7: #{imdb_forward.1} parent=0 // loop_footer_branch
    %22 = sbr.rel target = $region3
  $region8: #{imdb_forward.1} parent=0 // loop_exit
    _

</llo_original>
